<compile_context>
chip_gen: v6e
topology: v6e:2x2x1
jax: 0.10.0
libtpu: 0.0.40
codegen_flags: <defaults>
</compile_context>

<pallas_src>
import functools

import jax
import jax.numpy as jnp
from jax.experimental import pallas as pl
from jax.experimental.pallas import tpu as pltpu

_LANE = 128
_SUBLANE = 8
_NEG_SLOPE = 0.2          # PyG GATConv default LeakyReLU negative_slope
_TILE_DST = 128           # destination-row tile size (grid axis, "parallel")


def _round_up(v, m):
    return -(-v // m) * m


# ---------------------------------------------------------------------------
# One GATConv layer: dst-row tile per grid step, full source axis in-block.
# ---------------------------------------------------------------------------
def _gat_layer_kernel(xsrc_ref, xdst_ref, bias_ref, w_ref, asrc_ref, adst_ref,
                      cmask_ref, out_ref, *, apply_elu):
    f32 = jnp.float32
    bf16 = jnp.bfloat16

    w_bf = w_ref[...].astype(bf16)

    # Feature projection: bf16 MXU operands, f32 accumulation.
    xw_src = jnp.dot(xsrc_ref[...].astype(bf16), w_bf,
                     preferred_element_type=f32)                   # [N, D]
    xw_dst = jnp.dot(xdst_ref[...].astype(bf16), w_bf,
                     preferred_element_type=f32)                   # [T, D]

    # Packed per-node attention logits: one matmul per side, all heads at once.
    a_src = jnp.dot(xw_src, asrc_ref[...], preferred_element_type=f32)   # [N, H]
    a_dst = jnp.dot(xw_dst, adst_ref[...], preferred_element_type=f32)   # [T, H]

    # e[h, i, j] = a_dst[i, h] + a_src[j, h]  (two rank-1 broadcast adds).
    e = a_dst.T[:, :, None] + a_src.T[:, None, :]                  # [H, T, N]
    e = jnp.where(e > 0, e, _NEG_SLOPE * e)                        # LeakyReLU(0.2)
    e = e + bias_ref[...].astype(f32)[None]                        # mask non-edges

    m = jnp.max(e, axis=2, keepdims=True)                          # [H, T, 1] finite
    p = jnp.exp(e - m)                                             # masked -> exactly 0
    denom = jnp.sum(p, axis=2, keepdims=True)                      # [H, T, 1] > 0

    # Aggregation: one [H*T, N] x [N, D] bf16 matmul with f32 accumulation,
    # softmax normalization applied AFTER the matmul ([H,T,D] VPU work).
    heads, t, n = p.shape
    d = xw_src.shape[1]
    ctx = jnp.dot(p.reshape(heads * t, n).astype(bf16), xw_src.astype(bf16),
                  preferred_element_type=f32).reshape(heads, t, d)
    ctx = ctx * pl.reciprocal(denom, approx=True)

    # Head concat (layer 1) / single head (layer 2): block mask + one reduction.
    out = jnp.sum(ctx * cmask_ref[...], axis=0)                    # [T, D]

    if apply_elu:
        # exp(min(.,0)) avoids wasted/inf EUP work on the positive branch.
        out = jnp.where(out > 0, out, jnp.exp(jnp.minimum(out, 0.0)) - 1.0)

    out_ref[...] = out.astype(out_ref.dtype)


def _gat_layer(x, bias, w, att_src, att_dst, cmask, *, apply_elu):
    n_pad, f_in = x.shape
    d = w.shape[1]
    tile = min(_TILE_DST, n_pad)
    grid = (n_pad // tile,)
    kernel = functools.partial(_gat_layer_kernel, apply_elu=apply_elu)
    return pl.pallas_call(
        kernel,
        out_shape=jax.ShapeDtypeStruct((n_pad, d), jnp.float32),
        grid=grid,
        in_specs=[
            pl.BlockSpec((n_pad, f_in), lambda i: (0, 0)),    # source features (resident)
            pl.BlockSpec((tile, f_in), lambda i: (i, 0)),     # dst-tile features
            pl.BlockSpec((tile, n_pad), lambda i: (i, 0)),    # additive mask tile (bf16)
            pl.BlockSpec((f_in, d), lambda i: (0, 0)),        # W
            pl.BlockSpec(att_src.shape, lambda i: (0, 0)),    # packed att_src [D, H]
            pl.BlockSpec(att_dst.shape, lambda i: (0, 0)),    # packed att_dst [D, H]
            pl.BlockSpec(cmask.shape, lambda i: (0, 0, 0)),   # head-concat mask [H,1,D]
        ],
        out_specs=pl.BlockSpec((tile, d), lambda i: (i, 0)),
        compiler_params=pltpu.CompilerParams(
            dimension_semantics=("parallel",),
            vmem_limit_bytes=48 * 1024 * 1024,
        ),
    )(x, x, bias, w, att_src, att_dst, cmask)


# ---------------------------------------------------------------------------
# JAX-side glue: parameter init / packing, dense adjacency, padding.
# ---------------------------------------------------------------------------
def _att_packed(att, d_pad):
    """att [H, C] -> [d_pad, H]; column h holds att[h] in rows [h*C, (h+1)*C)."""
    h, c = att.shape
    mat = jnp.zeros((d_pad, h), att.dtype)
    for i in range(h):
        mat = mat.at[i * c:(i + 1) * c, i].set(att[i])
    return mat


def _concat_mask(heads, c, d_pad):
    m = jnp.zeros((heads, 1, d_pad), jnp.float32)
    for i in range(heads):
        m = m.at[i, 0, i * c:(i + 1) * c].set(1.0)
    return m


def init_gatnet_params(key, in_channels, out_channels, heads=8, hidden=8):
    ks = jax.random.split(key, 6)

    def glorot(rng, shape):
        lim = jnp.sqrt(6.0 / (shape[-2] + shape[-1]))
        return jax.random.uniform(rng, shape, jnp.float32, -lim, lim)

    return {
        "w1": glorot(ks[0], (in_channels, heads * hidden)),
        "att1_src": glorot(ks[1], (heads, hidden)),
        "att1_dst": glorot(ks[2], (heads, hidden)),
        "w2": glorot(ks[3], (heads * hidden, out_channels)),
        "att2_src": glorot(ks[4], (1, out_channels)),
        "att2_dst": glorot(ks[5], (1, out_channels)),
    }


def edge_index_to_adj(edge_index, num_nodes):
    """Dense adjacency: adj[dst, src] = 1.0, plus self-loops (PyG default)."""
    src, dst = edge_index[0], edge_index[1]
    adj = jnp.zeros((num_nodes, num_nodes), dtype=jnp.float32)
    adj = adj.at[dst, src].set(1.0)
    diag = jnp.arange(num_nodes)
    adj = adj.at[diag, diag].set(1.0)
    return adj


def gatnet_forward(params, x, adj):
    """Eval-mode GATNet forward (all dropout layers are identity)."""
    n = x.shape[0]
    heads1, hid1 = params["att1_src"].shape          # (8, 8) -- static
    c_out = params["w2"].shape[1]                    # static python int

    # Pad node count to a 128-lane multiple; padded nodes get only a self-loop.
    n_pad = _round_up(n, _LANE)
    if n_pad != n:
        x = jnp.pad(x, ((0, n_pad - n), (0, 0)))
        adj = jnp.pad(adj, ((0, n_pad - n), (0, n_pad - n)))
        pad_ids = jnp.arange(n, n_pad)
        adj = adj.at[pad_ids, pad_ids].set(1.0)

    # Additive edge mask (0 on edges, -1e30 elsewhere), shipped once in bf16.
    bias = jnp.where(adj > 0.0, 0.0, -1e30).astype(jnp.bfloat16)

    # Layer-1 params; output width 64 padded to a lane-dense 128.
    d1 = heads1 * hid1
    d1_pad = _round_up(d1, _LANE)
    w1p = jnp.pad(params["w1"], ((0, 0), (0, d1_pad - d1)))
    asrc1 = _att_packed(params["att1_src"], d1_pad)
    adst1 = _att_packed(params["att1_dst"], d1_pad)
    cmask1 = _concat_mask(heads1, hid1, d1_pad)

    # Layer-2 params; class count padded to a lane-dense 128 slab.
    c_pad = _round_up(max(c_out, _LANE), _LANE)
    w2p = jnp.zeros((d1_pad, c_pad), jnp.float32).at[:d1, :c_out].set(params["w2"])
    asrc2 = _att_packed(params["att2_src"], c_pad)
    adst2 = _att_packed(params["att2_dst"], c_pad)
    cmask2 = jnp.ones((1, 1, c_pad), jnp.float32)

    h1 = _gat_layer(x, bias, w1p, asrc1, adst1, cmask1, apply_elu=True)
    out_pad = _gat_layer(h1, bias, w2p, asrc2, adst2, cmask2, apply_elu=False)
    return out_pad[:n, :c_out]


if __name__ == "__main__":
    key = jax.random.PRNGKey(0)
    k_feat, k_src, k_dst, k_param = jax.random.split(key, 4)

    num_nodes = 32
    in_channels = 16
    out_channels = 4
    num_edges = 64

    x = jax.random.normal(k_feat, (num_nodes, in_channels), dtype=jnp.float32)
    edge_index = jnp.stack([
        jax.random.randint(k_src, (num_edges,), 0, num_nodes),   # sources
        jax.random.randint(k_dst, (num_edges,), 0, num_nodes),   # destinations
    ], axis=0)                                                   # [2, E]

    adj = edge_index_to_adj(edge_index, num_nodes)
    params = init_gatnet_params(k_param, in_channels, out_channels)

    out = jax.jit(gatnet_forward)(params, x, adj)
    out = jax.block_until_ready(out)
    assert out.shape == (num_nodes, out_channels)
    assert bool(jnp.all(jnp.isfinite(out)))
    print("KERNEL_OK")
</pallas_src>

<mosaic_0001>
module attributes {stable_mosaic.version = 11 : i64} {
  func.func @_gat_layer_kernel(%arg0: i32, %arg1: memref<128x128xf32, #tpu.memory_space<vmem>>, %arg2: memref<128x128xf32, #tpu.memory_space<vmem>>, %arg3: memref<128x128xbf16, #tpu.memory_space<vmem>>, %arg4: memref<128x128xf32, #tpu.memory_space<vmem>>, %arg5: memref<128x1xf32, #tpu.memory_space<vmem>>, %arg6: memref<128x1xf32, #tpu.memory_space<vmem>>, %arg7: memref<1x1x128xf32, #tpu.memory_space<vmem>>, %arg8: memref<128x128xf32, #tpu.memory_space<vmem>>) attributes {dimension_semantics = [#tpu.dimension_semantics<parallel>], iteration_bounds = array<i64: 1>, scalar_prefetch = 0 : i64, scratch_operands = 0 : i64, tpu.core_type = #tpu.core_type<tc>, window_params = [{pipeline_mode = #tpu.pipeline_mode<synchronous>, transform_indices = @transform_0, window_bounds = array<i64: 128, 128>}, {transform_indices = @transform_1, window_bounds = array<i64: 128, 128>}, {transform_indices = @transform_2, window_bounds = array<i64: 128, 128>}, {pipeline_mode = #tpu.pipeline_mode<synchronous>, transform_indices = @transform_3, window_bounds = array<i64: 128, 128>}, {pipeline_mode = #tpu.pipeline_mode<synchronous>, transform_indices = @transform_4, window_bounds = array<i64: 128, 1>}, {pipeline_mode = #tpu.pipeline_mode<synchronous>, transform_indices = @transform_5, window_bounds = array<i64: 128, 1>}, {pipeline_mode = #tpu.pipeline_mode<synchronous>, transform_indices = @transform_6, window_bounds = array<i64: 1, 1, 128>}, {transform_indices = @transform_7, window_bounds = array<i64: 128, 128>}]} {
    %c0 = arith.constant 0 : index
    %c0_0 = arith.constant 0 : index
    %0 = vector.load %arg4[%c0, %c0_0] : memref<128x128xf32, #tpu.memory_space<vmem>>, vector<128x128xf32>
    %1 = arith.truncf %0 : vector<128x128xf32> to vector<128x128xbf16>
    %c0_1 = arith.constant 0 : index
    %c0_2 = arith.constant 0 : index
    %2 = vector.load %arg1[%c0_1, %c0_2] : memref<128x128xf32, #tpu.memory_space<vmem>>, vector<128x128xf32>
    %3 = arith.truncf %2 : vector<128x128xf32> to vector<128x128xbf16>
    %cst = arith.constant dense<0.000000e+00> : vector<128x128xf32>
    %4 = tpu.matmul %3, %1, %cst {dimension_numbers = #tpu.dot_dimension_numbers<[1], [0], [0], [1], [0, 0, 1, 1], [], []>} : vector<128x128xbf16>, vector<128x128xbf16>, vector<128x128xf32> -> vector<128x128xf32>
    %c0_3 = arith.constant 0 : index
    %c0_4 = arith.constant 0 : index
    %5 = vector.load %arg2[%c0_3, %c0_4] : memref<128x128xf32, #tpu.memory_space<vmem>>, vector<128x128xf32>
    %6 = arith.truncf %5 : vector<128x128xf32> to vector<128x128xbf16>
    %cst_5 = arith.constant dense<0.000000e+00> : vector<128x128xf32>
    %7 = tpu.matmul %6, %1, %cst_5 {dimension_numbers = #tpu.dot_dimension_numbers<[1], [0], [0], [1], [0, 0, 1, 1], [], []>} : vector<128x128xbf16>, vector<128x128xbf16>, vector<128x128xf32> -> vector<128x128xf32>
    %c0_6 = arith.constant 0 : index
    %c0_7 = arith.constant 0 : index
    %8 = vector.load %arg5[%c0_6, %c0_7] : memref<128x1xf32, #tpu.memory_space<vmem>>, vector<128x1xf32>
    %cst_8 = arith.constant dense<0.000000e+00> : vector<128x1xf32>
    %9 = tpu.matmul %4, %8, %cst_8 {dimension_numbers = #tpu.dot_dimension_numbers<[1], [0], [0], [1], [0, 0, 1, 1], [], []>} : vector<128x128xf32>, vector<128x1xf32>, vector<128x1xf32> -> vector<128x1xf32>
    %c0_9 = arith.constant 0 : index
    %c0_10 = arith.constant 0 : index
    %10 = vector.load %arg6[%c0_9, %c0_10] : memref<128x1xf32, #tpu.memory_space<vmem>>, vector<128x1xf32>
    %cst_11 = arith.constant dense<0.000000e+00> : vector<128x1xf32>
    %11 = tpu.matmul %7, %10, %cst_11 {dimension_numbers = #tpu.dot_dimension_numbers<[1], [0], [0], [1], [0, 0, 1, 1], [], []>} : vector<128x128xf32>, vector<128x1xf32>, vector<128x1xf32> -> vector<128x1xf32>
    %12 = tpu.transpose %11, [1, 0] : vector<128x1xf32> -> vector<1x128xf32>
    %13 = vector.shape_cast %12 : vector<1x128xf32> to vector<1x128x1xf32>
    %14 = tpu.transpose %9, [1, 0] : vector<128x1xf32> -> vector<1x128xf32>
    %15 = vector.shape_cast %14 : vector<1x128xf32> to vector<1x1x128xf32>
    %16 = vector.broadcast %13 : vector<1x128x1xf32> to vector<1x128x128xf32>
    %17 = vector.broadcast %15 : vector<1x1x128xf32> to vector<1x128x128xf32>
    %18 = arith.addf %16, %17 : vector<1x128x128xf32>
    %cst_12 = arith.constant 0.000000e+00 : f32
    %19 = vector.broadcast %cst_12 : f32 to vector<1x128x128xf32>
    %20 = arith.cmpf ogt, %18, %19 : vector<1x128x128xf32>
    %cst_13 = arith.constant 2.000000e-01 : f32
    %21 = vector.broadcast %cst_13 : f32 to vector<1x128x128xf32>
    %22 = arith.mulf %21, %18 : vector<1x128x128xf32>
    %23 = arith.select %20, %18, %22 : vector<1x128x128xi1>, vector<1x128x128xf32>
    %c0_14 = arith.constant 0 : index
    %c0_15 = arith.constant 0 : index
    %24 = vector.load %arg3[%c0_14, %c0_15] : memref<128x128xbf16, #tpu.memory_space<vmem>>, vector<128x128xbf16>
    %25 = arith.extf %24 : vector<128x128xbf16> to vector<128x128xf32>
    %26 = vector.shape_cast %25 : vector<128x128xf32> to vector<1x128x128xf32>
    %27 = arith.addf %23, %26 : vector<1x128x128xf32>
    %cst_16 = arith.constant dense<0xFF800000> : vector<1x128xf32>
    %28 = vector.multi_reduction <maximumf>, %27, %cst_16 [2] : vector<1x128x128xf32> to vector<1x128xf32>
    %29 = vector.shape_cast %28 : vector<1x128xf32> to vector<1x128x1xf32>
    %30 = vector.broadcast %29 : vector<1x128x1xf32> to vector<1x128x128xf32>
    %31 = arith.subf %27, %30 : vector<1x128x128xf32>
    %32 = math.exp %31 : vector<1x128x128xf32>
    %cst_17 = arith.constant dense<0.000000e+00> : vector<1x128xf32>
    %33 = vector.multi_reduction <add>, %32, %cst_17 [2] : vector<1x128x128xf32> to vector<1x128xf32>
    %34 = vector.shape_cast %33 : vector<1x128xf32> to vector<1x128x1xf32>
    %35 = vector.shape_cast %32 : vector<1x128x128xf32> to vector<128x128xf32>
    %36 = arith.truncf %35 : vector<128x128xf32> to vector<128x128xbf16>
    %37 = arith.truncf %4 : vector<128x128xf32> to vector<128x128xbf16>
    %cst_18 = arith.constant dense<0.000000e+00> : vector<128x128xf32>
    %38 = tpu.matmul %36, %37, %cst_18 {dimension_numbers = #tpu.dot_dimension_numbers<[1], [0], [0], [1], [0, 0, 1, 1], [], []>} : vector<128x128xbf16>, vector<128x128xbf16>, vector<128x128xf32> -> vector<128x128xf32>
    %39 = vector.shape_cast %38 : vector<128x128xf32> to vector<1x128x128xf32>
    %40 = tpu.reciprocal %34 {approx = true} : vector<1x128x1xf32> -> vector<1x128x1xf32>
    %41 = vector.broadcast %40 : vector<1x128x1xf32> to vector<1x128x128xf32>
    %42 = arith.mulf %39, %41 : vector<1x128x128xf32>
    %c0_19 = arith.constant 0 : index
    %c0_20 = arith.constant 0 : index
    %c0_21 = arith.constant 0 : index
    %43 = vector.load %arg7[%c0_19, %c0_20, %c0_21] : memref<1x1x128xf32, #tpu.memory_space<vmem>>, vector<1x1x128xf32>
    %44 = vector.broadcast %43 : vector<1x1x128xf32> to vector<1x128x128xf32>
    %45 = arith.mulf %42, %44 : vector<1x128x128xf32>
    %cst_22 = arith.constant dense<0.000000e+00> : vector<128x128xf32>
    %46 = vector.multi_reduction <add>, %45, %cst_22 [0] : vector<1x128x128xf32> to vector<128x128xf32>
    %c0_23 = arith.constant 0 : index
    %c0_24 = arith.constant 0 : index
    %47 = vector.load %arg8[%c0_23, %c0_24] : memref<128x128xf32, #tpu.memory_space<vmem>>, vector<128x128xf32>
    tpu.vector_store %arg8[%c0_23, %c0_24], %46 {strides = array<i32>} : memref<128x128xf32, #tpu.memory_space<vmem>>, vector<128x128xf32>,
    return
  }
  func.func @transform_0(%arg0: i32) -> (i32, i32) {
    %c0_i32 = arith.constant 0 : i32
    %c0_i32_0 = arith.constant 0 : i32
    %c0_i32_1 = arith.constant 0 : i32
    return %c0_i32, %c0_i32_0 : i32, i32
  }
  func.func @transform_1(%arg0: i32) -> (i32, i32) {
    %c0_i32 = arith.constant 0 : i32
    %c0_i32_0 = arith.constant 0 : i32
    return %arg0, %c0_i32 : i32, i32
  }
  func.func @transform_2(%arg0: i32) -> (i32, i32) {
    %c0_i32 = arith.constant 0 : i32
    %c0_i32_0 = arith.constant 0 : i32
    return %arg0, %c0_i32 : i32, i32
  }
  func.func @transform_3(%arg0: i32) -> (i32, i32) {
    %c0_i32 = arith.constant 0 : i32
    %c0_i32_0 = arith.constant 0 : i32
    %c0_i32_1 = arith.constant 0 : i32
    return %c0_i32, %c0_i32_0 : i32, i32
  }
  func.func @transform_4(%arg0: i32) -> (i32, i32) {
    %c0_i32 = arith.constant 0 : i32
    %c0_i32_0 = arith.constant 0 : i32
    %c0_i32_1 = arith.constant 0 : i32
    return %c0_i32, %c0_i32_0 : i32, i32
  }
  func.func @transform_5(%arg0: i32) -> (i32, i32) {
    %c0_i32 = arith.constant 0 : i32
    %c0_i32_0 = arith.constant 0 : i32
    %c0_i32_1 = arith.constant 0 : i32
    return %c0_i32, %c0_i32_0 : i32, i32
  }
  func.func @transform_6(%arg0: i32) -> (i32, i32, i32) {
    %c0_i32 = arith.constant 0 : i32
    %c0_i32_0 = arith.constant 0 : i32
    %c0_i32_1 = arith.constant 0 : i32
    %c0_i32_2 = arith.constant 0 : i32
    return %c0_i32, %c0_i32_0, %c0_i32_1 : i32, i32, i32
  }
  func.func @transform_7(%arg0: i32) -> (i32, i32) {
    %c0_i32 = arith.constant 0 : i32
    %c0_i32_0 = arith.constant 0 : i32
    return %arg0, %c0_i32 : i32, i32
  }
}

module attributes {stable_mosaic.version = 11 : i64} {
  func.func @_gat_layer_kernel(%arg0: i32, %arg1: memref<128x16xf32, #tpu.memory_space<vmem>>, %arg2: memref<128x16xf32, #tpu.memory_space<vmem>>, %arg3: memref<128x128xbf16, #tpu.memory_space<vmem>>, %arg4: memref<16x128xf32, #tpu.memory_space<vmem>>, %arg5: memref<128x8xf32, #tpu.memory_space<vmem>>, %arg6: memref<128x8xf32, #tpu.memory_space<vmem>>, %arg7: memref<8x1x128xf32, #tpu.memory_space<vmem>>, %arg8: memref<128x128xf32, #tpu.memory_space<vmem>>) attributes {dimension_semantics = [#tpu.dimension_semantics<parallel>], iteration_bounds = array<i64: 1>, scalar_prefetch = 0 : i64, scratch_operands = 0 : i64, tpu.core_type = #tpu.core_type<tc>, window_params = [{pipeline_mode = #tpu.pipeline_mode<synchronous>, transform_indices = @transform_0, window_bounds = array<i64: 128, 16>}, {transform_indices = @transform_1, window_bounds = array<i64: 128, 16>}, {transform_indices = @transform_2, window_bounds = array<i64: 128, 128>}, {pipeline_mode = #tpu.pipeline_mode<synchronous>, transform_indices = @transform_3, window_bounds = array<i64: 16, 128>}, {pipeline_mode = #tpu.pipeline_mode<synchronous>, transform_indices = @transform_4, window_bounds = array<i64: 128, 8>}, {pipeline_mode = #tpu.pipeline_mode<synchronous>, transform_indices = @transform_5, window_bounds = array<i64: 128, 8>}, {pipeline_mode = #tpu.pipeline_mode<synchronous>, transform_indices = @transform_6, window_bounds = array<i64: 8, 1, 128>}, {transform_indices = @transform_7, window_bounds = array<i64: 128, 128>}]} {
    %c0 = arith.constant 0 : index
    %c0_0 = arith.constant 0 : index
    %0 = vector.load %arg4[%c0, %c0_0] : memref<16x128xf32, #tpu.memory_space<vmem>>, vector<16x128xf32>
    %1 = arith.truncf %0 : vector<16x128xf32> to vector<16x128xbf16>
    %c0_1 = arith.constant 0 : index
    %c0_2 = arith.constant 0 : index
    %2 = vector.load %arg1[%c0_1, %c0_2] : memref<128x16xf32, #tpu.memory_space<vmem>>, vector<128x16xf32>
    %3 = arith.truncf %2 : vector<128x16xf32> to vector<128x16xbf16>
    %cst = arith.constant dense<0.000000e+00> : vector<128x128xf32>
    %4 = tpu.matmul %3, %1, %cst {dimension_numbers = #tpu.dot_dimension_numbers<[1], [0], [0], [1], [0, 0, 1, 1], [], []>} : vector<128x16xbf16>, vector<16x128xbf16>, vector<128x128xf32> -> vector<128x128xf32>
    %c0_3 = arith.constant 0 : index
    %c0_4 = arith.constant 0 : index
    %5 = vector.load %arg2[%c0_3, %c0_4] : memref<128x16xf32, #tpu.memory_space<vmem>>, vector<128x16xf32>
    %6 = arith.truncf %5 : vector<128x16xf32> to vector<128x16xbf16>
    %cst_5 = arith.constant dense<0.000000e+00> : vector<128x128xf32>
    %7 = tpu.matmul %6, %1, %cst_5 {dimension_numbers = #tpu.dot_dimension_numbers<[1], [0], [0], [1], [0, 0, 1, 1], [], []>} : vector<128x16xbf16>, vector<16x128xbf16>, vector<128x128xf32> -> vector<128x128xf32>
    %c0_6 = arith.constant 0 : index
    %c0_7 = arith.constant 0 : index
    %8 = vector.load %arg5[%c0_6, %c0_7] : memref<128x8xf32, #tpu.memory_space<vmem>>, vector<128x8xf32>
    %cst_8 = arith.constant dense<0.000000e+00> : vector<128x8xf32>
    %9 = tpu.matmul %4, %8, %cst_8 {dimension_numbers = #tpu.dot_dimension_numbers<[1], [0], [0], [1], [0, 0, 1, 1], [], []>} : vector<128x128xf32>, vector<128x8xf32>, vector<128x8xf32> -> vector<128x8xf32>
    %c0_9 = arith.constant 0 : index
    %c0_10 = arith.constant 0 : index
    %10 = vector.load %arg6[%c0_9, %c0_10] : memref<128x8xf32, #tpu.memory_space<vmem>>, vector<128x8xf32>
    %cst_11 = arith.constant dense<0.000000e+00> : vector<128x8xf32>
    %11 = tpu.matmul %7, %10, %cst_11 {dimension_numbers = #tpu.dot_dimension_numbers<[1], [0], [0], [1], [0, 0, 1, 1], [], []>} : vector<128x128xf32>, vector<128x8xf32>, vector<128x8xf32> -> vector<128x8xf32>
    %12 = tpu.transpose %11, [1, 0] : vector<128x8xf32> -> vector<8x128xf32>
    %13 = vector.shape_cast %12 : vector<8x128xf32> to vector<8x128x1xf32>
    %14 = tpu.transpose %9, [1, 0] : vector<128x8xf32> -> vector<8x128xf32>
    %15 = vector.shape_cast %14 : vector<8x128xf32> to vector<8x1x128xf32>
    %16 = vector.broadcast %13 : vector<8x128x1xf32> to vector<8x128x128xf32>
    %17 = vector.broadcast %15 : vector<8x1x128xf32> to vector<8x128x128xf32>
    %18 = arith.addf %16, %17 : vector<8x128x128xf32>
    %cst_12 = arith.constant 0.000000e+00 : f32
    %19 = vector.broadcast %cst_12 : f32 to vector<8x128x128xf32>
    %20 = arith.cmpf ogt, %18, %19 : vector<8x128x128xf32>
    %cst_13 = arith.constant 2.000000e-01 : f32
    %21 = vector.broadcast %cst_13 : f32 to vector<8x128x128xf32>
    %22 = arith.mulf %21, %18 : vector<8x128x128xf32>
    %23 = arith.select %20, %18, %22 : vector<8x128x128xi1>, vector<8x128x128xf32>
    %c0_14 = arith.constant 0 : index
    %c0_15 = arith.constant 0 : index
    %24 = vector.load %arg3[%c0_14, %c0_15] : memref<128x128xbf16, #tpu.memory_space<vmem>>, vector<128x128xbf16>
    %25 = arith.extf %24 : vector<128x128xbf16> to vector<128x128xf32>
    %26 = vector.shape_cast %25 : vector<128x128xf32> to vector<1x128x128xf32>
    %27 = vector.broadcast %26 : vector<1x128x128xf32> to vector<8x128x128xf32>
    %28 = arith.addf %23, %27 : vector<8x128x128xf32>
    %cst_16 = arith.constant dense<0xFF800000> : vector<8x128xf32>
    %29 = vector.multi_reduction <maximumf>, %28, %cst_16 [2] : vector<8x128x128xf32> to vector<8x128xf32>
    %30 = vector.shape_cast %29 : vector<8x128xf32> to vector<8x128x1xf32>
    %31 = vector.broadcast %30 : vector<8x128x1xf32> to vector<8x128x128xf32>
    %32 = arith.subf %28, %31 : vector<8x128x128xf32>
    %33 = math.exp %32 : vector<8x128x128xf32>
    %cst_17 = arith.constant dense<0.000000e+00> : vector<8x128xf32>
    %34 = vector.multi_reduction <add>, %33, %cst_17 [2] : vector<8x128x128xf32> to vector<8x128xf32>
    %35 = vector.shape_cast %34 : vector<8x128xf32> to vector<8x128x1xf32>
    %36 = vector.shape_cast %33 : vector<8x128x128xf32> to vector<1024x128xf32>
    %37 = arith.truncf %36 : vector<1024x128xf32> to vector<1024x128xbf16>
    %38 = arith.truncf %4 : vector<128x128xf32> to vector<128x128xbf16>
    %cst_18 = arith.constant dense<0.000000e+00> : vector<1024x128xf32>
    %39 = tpu.matmul %37, %38, %cst_18 {dimension_numbers = #tpu.dot_dimension_numbers<[1], [0], [0], [1], [0, 0, 1, 1], [], []>} : vector<1024x128xbf16>, vector<128x128xbf16>, vector<1024x128xf32> -> vector<1024x128xf32>
    %40 = vector.shape_cast %39 : vector<1024x128xf32> to vector<8x128x128xf32>
    %41 = tpu.reciprocal %35 {approx = true} : vector<8x128x1xf32> -> vector<8x128x1xf32>
    %42 = vector.broadcast %41 : vector<8x128x1xf32> to vector<8x128x128xf32>
    %43 = arith.mulf %40, %42 : vector<8x128x128xf32>
    %c0_19 = arith.constant 0 : index
    %c0_20 = arith.constant 0 : index
    %c0_21 = arith.constant 0 : index
    %44 = vector.load %arg7[%c0_19, %c0_20, %c0_21] : memref<8x1x128xf32, #tpu.memory_space<vmem>>, vector<8x1x128xf32>
    %45 = vector.broadcast %44 : vector<8x1x128xf32> to vector<8x128x128xf32>
    %46 = arith.mulf %43, %45 : vector<8x128x128xf32>
    %cst_22 = arith.constant dense<0.000000e+00> : vector<128x128xf32>
    %47 = vector.multi_reduction <add>, %46, %cst_22 [0] : vector<8x128x128xf32> to vector<128x128xf32>
    %cst_23 = arith.constant 0.000000e+00 : f32
    %48 = vector.broadcast %cst_23 : f32 to vector<128x128xf32>
    %49 = arith.cmpf ogt, %47, %48 : vector<128x128xf32>
    %cst_24 = arith.constant 0.000000e+00 : f32
    %50 = vector.broadcast %cst_24 : f32 to vector<128x128xf32>
    %51 = arith.minimumf %47, %50 : vector<128x128xf32>
    %52 = math.exp %51 : vector<128x128xf32>
    %cst_25 = arith.constant 1.000000e+00 : f32
    %53 = vector.broadcast %cst_25 : f32 to vector<128x128xf32>
    %54 = arith.subf %52, %53 : vector<128x128xf32>
    %55 = arith.select %49, %47, %54 : vector<128x128xi1>, vector<128x128xf32>
    %c0_26 = arith.constant 0 : index
    %c0_27 = arith.constant 0 : index
    %56 = vector.load %arg8[%c0_26, %c0_27] : memref<128x128xf32, #tpu.memory_space<vmem>>, vector<128x128xf32>
    tpu.vector_store %arg8[%c0_26, %c0_27], %55 {strides = array<i32>} : memref<128x128xf32, #tpu.memory_space<vmem>>, vector<128x128xf32>,
    return
  }
  func.func @transform_0(%arg0: i32) -> (i32, i32) {
    %c0_i32 = arith.constant 0 : i32
    %c0_i32_0 = arith.constant 0 : i32
    %c0_i32_1 = arith.constant 0 : i32
    return %c0_i32, %c0_i32_0 : i32, i32
  }
  func.func @transform_1(%arg0: i32) -> (i32, i32) {
    %c0_i32 = arith.constant 0 : i32
    %c0_i32_0 = arith.constant 0 : i32
    return %arg0, %c0_i32 : i32, i32
  }
  func.func @transform_2(%arg0: i32) -> (i32, i32) {
    %c0_i32 = arith.constant 0 : i32
    %c0_i32_0 = arith.constant 0 : i32
    return %arg0, %c0_i32 : i32, i32
  }
  func.func @transform_3(%arg0: i32) -> (i32, i32) {
    %c0_i32 = arith.constant 0 : i32
    %c0_i32_0 = arith.constant 0 : i32
    %c0_i32_1 = arith.constant 0 : i32
    return %c0_i32, %c0_i32_0 : i32, i32
  }
  func.func @transform_4(%arg0: i32) -> (i32, i32) {
    %c0_i32 = arith.constant 0 : i32
    %c0_i32_0 = arith.constant 0 : i32
    %c0_i32_1 = arith.constant 0 : i32
    return %c0_i32, %c0_i32_0 : i32, i32
  }
  func.func @transform_5(%arg0: i32) -> (i32, i32) {
    %c0_i32 = arith.constant 0 : i32
    %c0_i32_0 = arith.constant 0 : i32
    %c0_i32_1 = arith.constant 0 : i32
    return %c0_i32, %c0_i32_0 : i32, i32
  }
  func.func @transform_6(%arg0: i32) -> (i32, i32, i32) {
    %c0_i32 = arith.constant 0 : i32
    %c0_i32_0 = arith.constant 0 : i32
    %c0_i32_1 = arith.constant 0 : i32
    %c0_i32_2 = arith.constant 0 : i32
    return %c0_i32, %c0_i32_0, %c0_i32_1 : i32, i32, i32
  }
  func.func @transform_7(%arg0: i32) -> (i32, i32) {
    %c0_i32 = arith.constant 0 : i32
    %c0_i32_0 = arith.constant 0 : i32
    return %arg0, %c0_i32 : i32, i32
  }
}

</mosaic_0001>

<llo_original>
// kernel: gatnet_forward.3
$region0: #{gatnet_forward.3}
  #allocation0 [shape = 'u32[]', space=smem, size = 0x4, offset = 0x4, fixed_abs, tag = 'smem constant byte address 0x4 - core index']
  #allocation1 [shape = 'u32[144,128]{1,0:T(1,128)}', space=vmem, size = 0x12000, scoped, tag = 'internal scratch']
  %s0 = inlined_call_operand.vmem [shape: f32[128,128], index: 0, kind: input, shape index: {}, may-alias: {0,1}]
  %s1 = inlined_call_operand.vmem [shape: f32[128,128], index: 1, kind: input, shape index: {}, may-alias: {0,1}]
  %s2 = inlined_call_operand.vmem [shape: bf16[128,128], index: 2, kind: input, shape index: {}]
  %s3 = inlined_call_operand.vmem [shape: f32[128,128], index: 3, kind: input, shape index: {}]
  %s4 = inlined_call_operand.vmem [shape: f32[128,1], index: 4, kind: input, shape index: {}]
  %s5 = inlined_call_operand.vmem [shape: f32[128,1], index: 5, kind: input, shape index: {}]
  %s6 = inlined_call_operand.vmem [shape: f32[1,1,128], index: 6, kind: input, shape index: {}]
  %s7 = inlined_call_operand.vmem [shape: f32[128,128], index: 7, kind: output, shape index: {}]
  %s8 = sld [smem:[#allocation0]]
  $region38: #{gatnet_forward.3} parent=0
    _
  %s10 = ssub.s32 1, %s8
  %s11 = scalar_select 0, %s10, %s8
  // Predicated region
  $region2: #{gatnet_forward.3} parent=0 // pred_check
    _
  $region3: #{gatnet_forward.3} parent=0 // pred_check_branch
    %13 = sbr.rel (0) target = $region5
  $region4: #{gatnet_forward.3} parent=0 // pred_region
    _
  $region5: #{gatnet_forward.3} parent=0 // pred_fallthru
    _
  // Predicated region
  $region6: #{gatnet_forward.3} parent=0 // pred_check
    _
  $region7: #{gatnet_forward.3} parent=0 // pred_check_branch
    %15 = sbr.rel (0) target = $region9
  $region8: #{gatnet_forward.3} parent=0 // pred_region
    _
  $region9: #{gatnet_forward.3} parent=0 // pred_fallthru
    _
  // Predicated region
  $region10: #{gatnet_forward.3} parent=0 // pred_check
    _
  $region11: #{gatnet_forward.3} parent=0 // pred_check_branch
    %17 = sbr.rel (0) target = $region13
  $region12: #{gatnet_forward.3} parent=0 // pred_region
    _
  $region13: #{gatnet_forward.3} parent=0 // pred_fallthru
    _
  // Predicated region
  $region14: #{gatnet_forward.3} parent=0 // pred_check
    _
  $region15: #{gatnet_forward.3} parent=0 // pred_check_branch
    %19 = sbr.rel (0) target = $region17
  $region16: #{gatnet_forward.3} parent=0 // pred_region
    _
  $region17: #{gatnet_forward.3} parent=0 // pred_fallthru
    _
  // Predicated region
  $region18: #{gatnet_forward.3} parent=0 // pred_check
    _
  $region19: #{gatnet_forward.3} parent=0 // pred_check_branch
    %21 = sbr.rel (0) target = $region21
  $region20: #{gatnet_forward.3} parent=0 // pred_region
    _
  $region21: #{gatnet_forward.3} parent=0 // pred_fallthru
    _
  // Predicated region
  $region22: #{gatnet_forward.3} parent=0 // pred_check
    _
  $region23: #{gatnet_forward.3} parent=0 // pred_check_branch
    %23 = sbr.rel (0) target = $region25
  $region24: #{gatnet_forward.3} parent=0 // pred_region
    _
  $region25: #{gatnet_forward.3} parent=0 // pred_fallthru
    _
  // Predicated region
  $region26: #{gatnet_forward.3} parent=0 // pred_check
    _
  $region27: #{gatnet_forward.3} parent=0 // pred_check_branch
    %25 = sbr.rel (0) target = $region29
  $region28: #{gatnet_forward.3} parent=0 // pred_region
    _
  $region29: #{gatnet_forward.3} parent=0 // pred_fallthru
    _
  %v27 = vld [vmem:[%s3] sm:$0xff]
  %v28 = vld [vmem:[%s3 + $0x8] sm:$0xff]
  %v29 = vld [vmem:[%s3 + $0x10] sm:$0xff]
  %v30 = vld [vmem:[%s3 + $0x18] sm:$0xff]
  %v31 = vld [vmem:[%s3 + $0x20] sm:$0xff]
  %v32 = vld [vmem:[%s3 + $0x28] sm:$0xff]
  %v33 = vld [vmem:[%s3 + $0x30] sm:$0xff]
  %v34 = vld [vmem:[%s3 + $0x38] sm:$0xff]
  %v35 = vld [vmem:[%s3 + $0x40] sm:$0xff]
  %v36 = vld [vmem:[%s3 + $0x48] sm:$0xff]
  %v37 = vld [vmem:[%s3 + $0x50] sm:$0xff]
  %v38 = vld [vmem:[%s3 + $0x58] sm:$0xff]
  %v39 = vld [vmem:[%s3 + $0x60] sm:$0xff]
  %v40 = vld [vmem:[%s3 + $0x68] sm:$0xff]
  %v41 = vld [vmem:[%s3 + $0x70] sm:$0xff]
  %v42 = vld [vmem:[%s3 + $0x78] sm:$0xff]
  %v43 = vpack.c.bf16 %v28, %v27
  %v44 = vpack.c.bf16 %v30, %v29
  %v45 = vpack.c.bf16 %v32, %v31
  %v46 = vpack.c.bf16 %v34, %v33
  %v47 = vpack.c.bf16 %v36, %v35
  %v48 = vpack.c.bf16 %v38, %v37
  %v49 = vpack.c.bf16 %v40, %v39
  %v50 = vpack.c.bf16 %v42, %v41
  %v51 = vld [vmem:[%s0] sm:$0xff]
  %v52 = vld [vmem:[%s0 + $0x8] sm:$0xff]
  %v53 = vld [vmem:[%s0 + $0x10] sm:$0xff]
  %v54 = vld [vmem:[%s0 + $0x18] sm:$0xff]
  %v55 = vld [vmem:[%s0 + $0x20] sm:$0xff]
  %v56 = vld [vmem:[%s0 + $0x28] sm:$0xff]
  %v57 = vld [vmem:[%s0 + $0x30] sm:$0xff]
  %v58 = vld [vmem:[%s0 + $0x38] sm:$0xff]
  %v59 = vld [vmem:[%s0 + $0x40] sm:$0xff]
  %v60 = vld [vmem:[%s0 + $0x48] sm:$0xff]
  %v61 = vld [vmem:[%s0 + $0x50] sm:$0xff]
  %v62 = vld [vmem:[%s0 + $0x58] sm:$0xff]
  %v63 = vld [vmem:[%s0 + $0x60] sm:$0xff]
  %v64 = vld [vmem:[%s0 + $0x68] sm:$0xff]
  %v65 = vld [vmem:[%s0 + $0x70] sm:$0xff]
  %v66 = vld [vmem:[%s0 + $0x78] sm:$0xff]
  %v67 = vpack.c.bf16 %v52, %v51
  %v68 = vpack.c.bf16 %v54, %v53
  %v69 = vpack.c.bf16 %v56, %v55
  %v70 = vpack.c.bf16 %v58, %v57
  %v71 = vpack.c.bf16 %v60, %v59
  %v72 = vpack.c.bf16 %v62, %v61
  %v73 = vpack.c.bf16 %v64, %v63
  %v74 = vpack.c.bf16 %v66, %v65
  %75 = vmatprep.subr.bf16.mxu0 0
  %76 = vmatpush1.bf16.msra.mxu0 %v50
  %77 = vmatprep.subr.bf16.mxu0 0
  %78 = vmatpush1.bf16.msra.mxu0 %v49
  %79 = vmatprep.subr.bf16.mxu0 0
  %80 = vmatpush1.bf16.msra.mxu0 %v48
  %81 = vmatprep.subr.bf16.mxu0 0
  %82 = vmatpush1.bf16.msra.mxu0 %v47
  %83 = vmatprep.subr.bf16.mxu0 0
  %84 = vmatpush1.bf16.msra.mxu0 %v46
  %85 = vmatprep.subr.bf16.mxu0 0
  %86 = vmatpush1.bf16.msra.mxu0 %v45
  %87 = vmatprep.subr.bf16.mxu0 0
  %88 = vmatpush1.bf16.msra.mxu0 %v44
  %89 = vmatprep.subr.bf16.mxu0 0
  %90 = vmatpush1.bf16.msra.mxu0 %v43
  %91 = vmatprep.subr.bf16.mxu0 0
  %92 = vmatpush2.bf16.msra.mxu0 0
  %93 = vmatprep.subr.bf16.mxu0 0
  %94 = vmatpush2.bf16.msra.mxu0 0
  %95 = vmatprep.subr.bf16.mxu0 0
  %96 = vmatpush2.bf16.msra.mxu0 0
  %97 = vmatprep.subr.bf16.mxu0 0
  %98 = vmatpush2.bf16.msra.mxu0 0
  %99 = vmatprep.subr.bf16.mxu0 0
  %100 = vmatpush2.bf16.msra.mxu0 0
  %101 = vmatprep.subr.bf16.mxu0 0
  %102 = vmatpush2.bf16.msra.mxu0 0
  %103 = vmatprep.subr.bf16.mxu0 0
  %104 = vmatpush2.bf16.msra.mxu0 0
  %105 = vmatprep.subr.bf16.mxu0 0
  %106 = vmatpush2.bf16.msra.mxu0 0
  %107 = vmatprep.mubr.bf16.mxu0 0
  %108 = vmatmul.mubr.bf16.gmra.mxu0 %v67
  %v109 = vpop.f32.mrf.mxu0
  %v110 = vadd.f32 0.0, %v109
  %v111 = vpop.f32.mrf.mxu0
  %v112 = vpop.f32.mrf.mxu0
  %v113 = vadd.f32 0.0, %v112
  %v114 = vpop.f32.mrf.mxu0
  %115 = vmatprep.mubr.bf16.mxu0 0
  %116 = vmatmul.mubr.bf16.gmra.mxu0 %v68
  %v117 = vpop.f32.mrf.mxu0
  %v118 = vadd.f32 0.0, %v117
  %v119 = vpop.f32.mrf.mxu0
  %v120 = vpop.f32.mrf.mxu0
  %v121 = vadd.f32 0.0, %v120
  %v122 = vpop.f32.mrf.mxu0
  %123 = vmatprep.mubr.bf16.mxu0 0
  %124 = vmatmul.mubr.bf16.gmra.mxu0 %v69
  %v125 = vpop.f32.mrf.mxu0
  %v126 = vadd.f32 0.0, %v125
  %v127 = vpop.f32.mrf.mxu0
  %v128 = vpop.f32.mrf.mxu0
  %v129 = vadd.f32 0.0, %v128
  %v130 = vpop.f32.mrf.mxu0
  %131 = vmatprep.mubr.bf16.mxu0 0
  %132 = vmatmul.mubr.bf16.gmra.mxu0 %v70
  %v133 = vpop.f32.mrf.mxu0
  %v134 = vadd.f32 0.0, %v133
  %v135 = vpop.f32.mrf.mxu0
  %v136 = vpop.f32.mrf.mxu0
  %v137 = vadd.f32 0.0, %v136
  %v138 = vpop.f32.mrf.mxu0
  %139 = vmatprep.mubr.bf16.mxu0 0
  %140 = vmatmul.mubr.bf16.gmra.mxu0 %v71
  %v141 = vpop.f32.mrf.mxu0
  %v142 = vadd.f32 0.0, %v141
  %v143 = vpop.f32.mrf.mxu0
  %v144 = vpop.f32.mrf.mxu0
  %v145 = vadd.f32 0.0, %v144
  %v146 = vpop.f32.mrf.mxu0
  %147 = vmatprep.mubr.bf16.mxu0 0
  %148 = vmatmul.mubr.bf16.gmra.mxu0 %v72
  %v149 = vpop.f32.mrf.mxu0
  %v150 = vadd.f32 0.0, %v149
  %v151 = vpop.f32.mrf.mxu0
  %v152 = vpop.f32.mrf.mxu0
  %v153 = vadd.f32 0.0, %v152
  %v154 = vpop.f32.mrf.mxu0
  %155 = vmatprep.mubr.bf16.mxu0 0
  %156 = vmatmul.mubr.bf16.gmra.mxu0 %v73
  %v157 = vpop.f32.mrf.mxu0
  %v158 = vadd.f32 0.0, %v157
  %v159 = vpop.f32.mrf.mxu0
  %v160 = vpop.f32.mrf.mxu0
  %v161 = vadd.f32 0.0, %v160
  %v162 = vpop.f32.mrf.mxu0
  %163 = vmatprep.mubr.bf16.mxu0 0
  %164 = vmatmul.mubr.bf16.gmra.mxu0 %v74
  %v165 = vpop.f32.mrf.mxu0
  %v166 = vadd.f32 0.0, %v165
  %v167 = vpop.f32.mrf.mxu0
  %v168 = vpop.f32.mrf.mxu0
  %v169 = vadd.f32 0.0, %v168
  %v170 = vpop.f32.mrf.mxu0
  %171 = vdwg.mxu0
  %v172 = vld [vmem:[%s1] sm:$0xff]
  %v173 = vld [vmem:[%s1 + $0x8] sm:$0xff]
  %v174 = vld [vmem:[%s1 + $0x10] sm:$0xff]
  %v175 = vld [vmem:[%s1 + $0x18] sm:$0xff]
  %v176 = vld [vmem:[%s1 + $0x20] sm:$0xff]
  %v177 = vld [vmem:[%s1 + $0x28] sm:$0xff]
  %v178 = vld [vmem:[%s1 + $0x30] sm:$0xff]
  %v179 = vld [vmem:[%s1 + $0x38] sm:$0xff]
  %v180 = vld [vmem:[%s1 + $0x40] sm:$0xff]
  %v181 = vld [vmem:[%s1 + $0x48] sm:$0xff]
  %v182 = vld [vmem:[%s1 + $0x50] sm:$0xff]
  %v183 = vld [vmem:[%s1 + $0x58] sm:$0xff]
  %v184 = vld [vmem:[%s1 + $0x60] sm:$0xff]
  %v185 = vld [vmem:[%s1 + $0x68] sm:$0xff]
  %v186 = vld [vmem:[%s1 + $0x70] sm:$0xff]
  %v187 = vld [vmem:[%s1 + $0x78] sm:$0xff]
  %v188 = vpack.c.bf16 %v173, %v172
  %v189 = vpack.c.bf16 %v175, %v174
  %v190 = vpack.c.bf16 %v177, %v176
  %v191 = vpack.c.bf16 %v179, %v178
  %v192 = vpack.c.bf16 %v181, %v180
  %v193 = vpack.c.bf16 %v183, %v182
  %v194 = vpack.c.bf16 %v185, %v184
  %v195 = vpack.c.bf16 %v187, %v186
  %196 = vmatprep.subr.bf16.mxu0 0
  %197 = vmatpush1.bf16.msra.mxu0 %v50
  %198 = vmatprep.subr.bf16.mxu0 0
  %199 = vmatpush1.bf16.msra.mxu0 %v49
  %200 = vmatprep.subr.bf16.mxu0 0
  %201 = vmatpush1.bf16.msra.mxu0 %v48
  %202 = vmatprep.subr.bf16.mxu0 0
  %203 = vmatpush1.bf16.msra.mxu0 %v47
  %204 = vmatprep.subr.bf16.mxu0 0
  %205 = vmatpush1.bf16.msra.mxu0 %v46
  %206 = vmatprep.subr.bf16.mxu0 0
  %207 = vmatpush1.bf16.msra.mxu0 %v45
  %208 = vmatprep.subr.bf16.mxu0 0
  %209 = vmatpush1.bf16.msra.mxu0 %v44
  %210 = vmatprep.subr.bf16.mxu0 0
  %211 = vmatpush1.bf16.msra.mxu0 %v43
  %212 = vmatprep.subr.bf16.mxu0 0
  %213 = vmatpush2.bf16.msra.mxu0 0
  %214 = vmatprep.subr.bf16.mxu0 0
  %215 = vmatpush2.bf16.msra.mxu0 0
  %216 = vmatprep.subr.bf16.mxu0 0
  %217 = vmatpush2.bf16.msra.mxu0 0
  %218 = vmatprep.subr.bf16.mxu0 0
  %219 = vmatpush2.bf16.msra.mxu0 0
  %220 = vmatprep.subr.bf16.mxu0 0
  %221 = vmatpush2.bf16.msra.mxu0 0
  %222 = vmatprep.subr.bf16.mxu0 0
  %223 = vmatpush2.bf16.msra.mxu0 0
  %224 = vmatprep.subr.bf16.mxu0 0
  %225 = vmatpush2.bf16.msra.mxu0 0
  %226 = vmatprep.subr.bf16.mxu0 0
  %227 = vmatpush2.bf16.msra.mxu0 0
  %228 = vmatprep.mubr.bf16.mxu0 0
  %229 = vmatmul.mubr.bf16.gmra.mxu0 %v188
  %v230 = vpop.f32.mrf.mxu0
  %v231 = vadd.f32 0.0, %v230
  %v232 = vpop.f32.mrf.mxu0
  %v233 = vpop.f32.mrf.mxu0
  %v234 = vadd.f32 0.0, %v233
  %v235 = vpop.f32.mrf.mxu0
  %236 = vmatprep.mubr.bf16.mxu0 0
  %237 = vmatmul.mubr.bf16.gmra.mxu0 %v189
  %v238 = vpop.f32.mrf.mxu0
  %v239 = vadd.f32 0.0, %v238
  %v240 = vpop.f32.mrf.mxu0
  %v241 = vpop.f32.mrf.mxu0
  %v242 = vadd.f32 0.0, %v241
  %v243 = vpop.f32.mrf.mxu0
  %244 = vmatprep.mubr.bf16.mxu0 0
  %245 = vmatmul.mubr.bf16.gmra.mxu0 %v190
  %v246 = vpop.f32.mrf.mxu0
  %v247 = vadd.f32 0.0, %v246
  %v248 = vpop.f32.mrf.mxu0
  %v249 = vpop.f32.mrf.mxu0
  %v250 = vadd.f32 0.0, %v249
  %v251 = vpop.f32.mrf.mxu0
  %252 = vmatprep.mubr.bf16.mxu0 0
  %253 = vmatmul.mubr.bf16.gmra.mxu0 %v191
  %v254 = vpop.f32.mrf.mxu0
  %v255 = vadd.f32 0.0, %v254
  %v256 = vpop.f32.mrf.mxu0
  %v257 = vpop.f32.mrf.mxu0
  %v258 = vadd.f32 0.0, %v257
  %v259 = vpop.f32.mrf.mxu0
  %260 = vmatprep.mubr.bf16.mxu0 0
  %261 = vmatmul.mubr.bf16.gmra.mxu0 %v192
  %v262 = vpop.f32.mrf.mxu0
  %v263 = vadd.f32 0.0, %v262
  %v264 = vpop.f32.mrf.mxu0
  %v265 = vpop.f32.mrf.mxu0
  %v266 = vadd.f32 0.0, %v265
  %v267 = vpop.f32.mrf.mxu0
  %268 = vmatprep.mubr.bf16.mxu0 0
  %269 = vmatmul.mubr.bf16.gmra.mxu0 %v193
  %v270 = vpop.f32.mrf.mxu0
  %v271 = vadd.f32 0.0, %v270
  %v272 = vpop.f32.mrf.mxu0
  %v273 = vpop.f32.mrf.mxu0
  %v274 = vadd.f32 0.0, %v273
  %v275 = vpop.f32.mrf.mxu0
  %276 = vmatprep.mubr.bf16.mxu0 0
  %277 = vmatmul.mubr.bf16.gmra.mxu0 %v194
  %v278 = vpop.f32.mrf.mxu0
  %v279 = vadd.f32 0.0, %v278
  %v280 = vpop.f32.mrf.mxu0
  %v281 = vpop.f32.mrf.mxu0
  %v282 = vadd.f32 0.0, %v281
  %v283 = vpop.f32.mrf.mxu0
  %284 = vmatprep.mubr.bf16.mxu0 0
  %285 = vmatmul.mubr.bf16.gmra.mxu0 %v195
  %v286 = vpop.f32.mrf.mxu0
  %v287 = vadd.f32 0.0, %v286
  %v288 = vpop.f32.mrf.mxu0
  %v289 = vpop.f32.mrf.mxu0
  %v290 = vadd.f32 0.0, %v289
  %v291 = vpop.f32.mrf.mxu0
  %292 = vdwg.mxu0
  %v293 = vld [vmem:[%s4] sm:$0xff]
  %v294 = vld [vmem:[%s4 + $0x8] sm:$0xff]
  %v295 = vld [vmem:[%s4 + $0x10] sm:$0xff]
  %v296 = vld [vmem:[%s4 + $0x18] sm:$0xff]
  %v297 = vld [vmem:[%s4 + $0x20] sm:$0xff]
  %v298 = vld [vmem:[%s4 + $0x28] sm:$0xff]
  %v299 = vld [vmem:[%s4 + $0x30] sm:$0xff]
  %v300 = vld [vmem:[%s4 + $0x38] sm:$0xff]
  %v301 = vld [vmem:[%s4 + $0x40] sm:$0xff]
  %v302 = vld [vmem:[%s4 + $0x48] sm:$0xff]
  %v303 = vld [vmem:[%s4 + $0x50] sm:$0xff]
  %v304 = vld [vmem:[%s4 + $0x58] sm:$0xff]
  %v305 = vld [vmem:[%s4 + $0x60] sm:$0xff]
  %v306 = vld [vmem:[%s4 + $0x68] sm:$0xff]
  %v307 = vld [vmem:[%s4 + $0x70] sm:$0xff]
  %v308 = vld [vmem:[%s4 + $0x78] sm:$0xff]
  %309 = vmatprep.subr.mxu0 0.0
  %310 = vmatpush1.msra.mxu0 %v308
  %311 = vmatprep.subr.mxu0 0.0
  %312 = vmatpush1.msra.mxu0 %v307
  %313 = vmatprep.subr.mxu0 0.0
  %314 = vmatpush1.msra.mxu0 %v306
  %315 = vmatprep.subr.mxu0 0.0
  %316 = vmatpush1.msra.mxu0 %v305
  %317 = vmatprep.subr.mxu0 0.0
  %318 = vmatpush1.msra.mxu0 %v304
  %319 = vmatprep.subr.mxu0 0.0
  %320 = vmatpush1.msra.mxu0 %v303
  %321 = vmatprep.subr.mxu0 0.0
  %322 = vmatpush1.msra.mxu0 %v302
  %323 = vmatprep.subr.mxu0 0.0
  %324 = vmatpush1.msra.mxu0 %v301
  %325 = vmatprep.subr.mxu0 0.0
  %326 = vmatpush1.msra.mxu0 %v300
  %327 = vmatprep.subr.mxu0 0.0
  %328 = vmatpush1.msra.mxu0 %v299
  %329 = vmatprep.subr.mxu0 0.0
  %330 = vmatpush1.msra.mxu0 %v298
  %331 = vmatprep.subr.mxu0 0.0
  %332 = vmatpush1.msra.mxu0 %v297
  %333 = vmatprep.subr.mxu0 0.0
  %334 = vmatpush1.msra.mxu0 %v296
  %335 = vmatprep.subr.mxu0 0.0
  %336 = vmatpush1.msra.mxu0 %v295
  %337 = vmatprep.subr.mxu0 0.0
  %338 = vmatpush1.msra.mxu0 %v294
  %339 = vmatprep.subr.mxu0 0.0
  %340 = vmatpush1.msra.mxu0 %v293
  %341 = vmatprep.subr.mxu0 0.0
  %342 = vmatpush2.msra.mxu0 0.0
  %343 = vmatprep.subr.mxu0 0.0
  %344 = vmatpush2.msra.mxu0 0.0
  %345 = vmatprep.subr.mxu0 0.0
  %346 = vmatpush2.msra.mxu0 0.0
  %347 = vmatprep.subr.mxu0 0.0
  %348 = vmatpush2.msra.mxu0 0.0
  %349 = vmatprep.subr.mxu0 0.0
  %350 = vmatpush2.msra.mxu0 0.0
  %351 = vmatprep.subr.mxu0 0.0
  %352 = vmatpush2.msra.mxu0 0.0
  %353 = vmatprep.subr.mxu0 0.0
  %354 = vmatpush2.msra.mxu0 0.0
  %355 = vmatprep.subr.mxu0 0.0
  %356 = vmatpush2.msra.mxu0 0.0
  %357 = vmatprep.subr.mxu0 0.0
  %358 = vmatpush2.msra.mxu0 0.0
  %359 = vmatprep.subr.mxu0 0.0
  %360 = vmatpush2.msra.mxu0 0.0
  %361 = vmatprep.subr.mxu0 0.0
  %362 = vmatpush2.msra.mxu0 0.0
  %363 = vmatprep.subr.mxu0 0.0
  %364 = vmatpush2.msra.mxu0 0.0
  %365 = vmatprep.subr.mxu0 0.0
  %366 = vmatpush2.msra.mxu0 0.0
  %367 = vmatprep.subr.mxu0 0.0
  %368 = vmatpush2.msra.mxu0 0.0
  %369 = vmatprep.subr.mxu0 0.0
  %370 = vmatpush2.msra.mxu0 0.0
  %371 = vmatprep.subr.mxu0 0.0
  %372 = vmatpush2.msra.mxu0 0.0
  %373 = vmatprep.mubr.f32.mxu0 0.0
  %374 = vmatmul.mubr.f32.gmra.mxu0 %v110
  %v375 = vpop.f32.mrf.mxu0
  %v376 = vadd.f32 0.0, %v375
  %v377 = vpop.f32.mrf.mxu0
  %378 = vmatprep.mubr.f32.mxu0 0.0
  %379 = vmatmul.mubr.f32.gmra.mxu0 %v113
  %v380 = vpop.f32.mrf.mxu0
  %v381 = vadd.f32 0.0, %v380
  %v382 = vpop.f32.mrf.mxu0
  %383 = vmatprep.mubr.f32.mxu0 0.0
  %384 = vmatmul.mubr.f32.gmra.mxu0 %v118
  %v385 = vpop.f32.mrf.mxu0
  %v386 = vadd.f32 0.0, %v385
  %v387 = vpop.f32.mrf.mxu0
  %388 = vmatprep.mubr.f32.mxu0 0.0
  %389 = vmatmul.mubr.f32.gmra.mxu0 %v121
  %v390 = vpop.f32.mrf.mxu0
  %v391 = vadd.f32 0.0, %v390
  %v392 = vpop.f32.mrf.mxu0
  %393 = vmatprep.mubr.f32.mxu0 0.0
  %394 = vmatmul.mubr.f32.gmra.mxu0 %v126
  %v395 = vpop.f32.mrf.mxu0
  %v396 = vadd.f32 0.0, %v395
  %v397 = vpop.f32.mrf.mxu0
  %398 = vmatprep.mubr.f32.mxu0 0.0
  %399 = vmatmul.mubr.f32.gmra.mxu0 %v129
  %v400 = vpop.f32.mrf.mxu0
  %v401 = vadd.f32 0.0, %v400
  %v402 = vpop.f32.mrf.mxu0
  %403 = vmatprep.mubr.f32.mxu0 0.0
  %404 = vmatmul.mubr.f32.gmra.mxu0 %v134
  %v405 = vpop.f32.mrf.mxu0
  %v406 = vadd.f32 0.0, %v405
  %v407 = vpop.f32.mrf.mxu0
  %408 = vmatprep.mubr.f32.mxu0 0.0
  %409 = vmatmul.mubr.f32.gmra.mxu0 %v137
  %v410 = vpop.f32.mrf.mxu0
  %v411 = vadd.f32 0.0, %v410
  %v412 = vpop.f32.mrf.mxu0
  %413 = vmatprep.mubr.f32.mxu0 0.0
  %414 = vmatmul.mubr.f32.gmra.mxu0 %v142
  %v415 = vpop.f32.mrf.mxu0
  %v416 = vadd.f32 0.0, %v415
  %v417 = vpop.f32.mrf.mxu0
  %418 = vmatprep.mubr.f32.mxu0 0.0
  %419 = vmatmul.mubr.f32.gmra.mxu0 %v145
  %v420 = vpop.f32.mrf.mxu0
  %v421 = vadd.f32 0.0, %v420
  %v422 = vpop.f32.mrf.mxu0
  %423 = vmatprep.mubr.f32.mxu0 0.0
  %424 = vmatmul.mubr.f32.gmra.mxu0 %v150
  %v425 = vpop.f32.mrf.mxu0
  %v426 = vadd.f32 0.0, %v425
  %v427 = vpop.f32.mrf.mxu0
  %428 = vmatprep.mubr.f32.mxu0 0.0
  %429 = vmatmul.mubr.f32.gmra.mxu0 %v153
  %v430 = vpop.f32.mrf.mxu0
  %v431 = vadd.f32 0.0, %v430
  %v432 = vpop.f32.mrf.mxu0
  %433 = vmatprep.mubr.f32.mxu0 0.0
  %434 = vmatmul.mubr.f32.gmra.mxu0 %v158
  %v435 = vpop.f32.mrf.mxu0
  %v436 = vadd.f32 0.0, %v435
  %v437 = vpop.f32.mrf.mxu0
  %438 = vmatprep.mubr.f32.mxu0 0.0
  %439 = vmatmul.mubr.f32.gmra.mxu0 %v161
  %v440 = vpop.f32.mrf.mxu0
  %v441 = vadd.f32 0.0, %v440
  %v442 = vpop.f32.mrf.mxu0
  %443 = vmatprep.mubr.f32.mxu0 0.0
  %444 = vmatmul.mubr.f32.gmra.mxu0 %v166
  %v445 = vpop.f32.mrf.mxu0
  %v446 = vadd.f32 0.0, %v445
  %v447 = vpop.f32.mrf.mxu0
  %448 = vmatprep.mubr.f32.mxu0 0.0
  %449 = vmatmul.mubr.f32.gmra.mxu0 %v169
  %v450 = vpop.f32.mrf.mxu0
  %v451 = vadd.f32 0.0, %v450
  %v452 = vpop.f32.mrf.mxu0
  %453 = vdwg.mxu0
  %v454 = vld [vmem:[%s5] sm:$0xff]
  %v455 = vld [vmem:[%s5 + $0x8] sm:$0xff]
  %v456 = vld [vmem:[%s5 + $0x10] sm:$0xff]
  %v457 = vld [vmem:[%s5 + $0x18] sm:$0xff]
  %v458 = vld [vmem:[%s5 + $0x20] sm:$0xff]
  %v459 = vld [vmem:[%s5 + $0x28] sm:$0xff]
  %v460 = vld [vmem:[%s5 + $0x30] sm:$0xff]
  %v461 = vld [vmem:[%s5 + $0x38] sm:$0xff]
  %v462 = vld [vmem:[%s5 + $0x40] sm:$0xff]
  %v463 = vld [vmem:[%s5 + $0x48] sm:$0xff]
  %v464 = vld [vmem:[%s5 + $0x50] sm:$0xff]
  %v465 = vld [vmem:[%s5 + $0x58] sm:$0xff]
  %v466 = vld [vmem:[%s5 + $0x60] sm:$0xff]
  %v467 = vld [vmem:[%s5 + $0x68] sm:$0xff]
  %v468 = vld [vmem:[%s5 + $0x70] sm:$0xff]
  %v469 = vld [vmem:[%s5 + $0x78] sm:$0xff]
  %470 = vmatprep.subr.mxu0 0.0
  %471 = vmatpush1.msra.mxu0 %v469
  %472 = vmatprep.subr.mxu0 0.0
  %473 = vmatpush1.msra.mxu0 %v468
  %474 = vmatprep.subr.mxu0 0.0
  %475 = vmatpush1.msra.mxu0 %v467
  %476 = vmatprep.subr.mxu0 0.0
  %477 = vmatpush1.msra.mxu0 %v466
  %478 = vmatprep.subr.mxu0 0.0
  %479 = vmatpush1.msra.mxu0 %v465
  %480 = vmatprep.subr.mxu0 0.0
  %481 = vmatpush1.msra.mxu0 %v464
  %482 = vmatprep.subr.mxu0 0.0
  %483 = vmatpush1.msra.mxu0 %v463
  %484 = vmatprep.subr.mxu0 0.0
  %485 = vmatpush1.msra.mxu0 %v462
  %486 = vmatprep.subr.mxu0 0.0
  %487 = vmatpush1.msra.mxu0 %v461
  %488 = vmatprep.subr.mxu0 0.0
  %489 = vmatpush1.msra.mxu0 %v460
  %490 = vmatprep.subr.mxu0 0.0
  %491 = vmatpush1.msra.mxu0 %v459
  %492 = vmatprep.subr.mxu0 0.0
  %493 = vmatpush1.msra.mxu0 %v458
  %494 = vmatprep.subr.mxu0 0.0
  %495 = vmatpush1.msra.mxu0 %v457
  %496 = vmatprep.subr.mxu0 0.0
  %497 = vmatpush1.msra.mxu0 %v456
  %498 = vmatprep.subr.mxu0 0.0
  %499 = vmatpush1.msra.mxu0 %v455
  %500 = vmatprep.subr.mxu0 0.0
  %501 = vmatpush1.msra.mxu0 %v454
  %502 = vmatprep.subr.mxu0 0.0
  %503 = vmatpush2.msra.mxu0 0.0
  %504 = vmatprep.subr.mxu0 0.0
  %505 = vmatpush2.msra.mxu0 0.0
  %506 = vmatprep.subr.mxu0 0.0
  %507 = vmatpush2.msra.mxu0 0.0
  %508 = vmatprep.subr.mxu0 0.0
  %509 = vmatpush2.msra.mxu0 0.0
  %510 = vmatprep.subr.mxu0 0.0
  %511 = vmatpush2.msra.mxu0 0.0
  %512 = vmatprep.subr.mxu0 0.0
  %513 = vmatpush2.msra.mxu0 0.0
  %514 = vmatprep.subr.mxu0 0.0
  %515 = vmatpush2.msra.mxu0 0.0
  %516 = vmatprep.subr.mxu0 0.0
  %517 = vmatpush2.msra.mxu0 0.0
  %518 = vmatprep.subr.mxu0 0.0
  %519 = vmatpush2.msra.mxu0 0.0
  %520 = vmatprep.subr.mxu0 0.0
  %521 = vmatpush2.msra.mxu0 0.0
  %522 = vmatprep.subr.mxu0 0.0
  %523 = vmatpush2.msra.mxu0 0.0
  %524 = vmatprep.subr.mxu0 0.0
  %525 = vmatpush2.msra.mxu0 0.0
  %526 = vmatprep.subr.mxu0 0.0
  %527 = vmatpush2.msra.mxu0 0.0
  %528 = vmatprep.subr.mxu0 0.0
  %529 = vmatpush2.msra.mxu0 0.0
  %530 = vmatprep.subr.mxu0 0.0
  %531 = vmatpush2.msra.mxu0 0.0
  %532 = vmatprep.subr.mxu0 0.0
  %533 = vmatpush2.msra.mxu0 0.0
  %534 = vmatprep.mubr.f32.mxu0 0.0
  %535 = vmatmul.mubr.f32.gmra.mxu0 %v231
  %v536 = vpop.f32.mrf.mxu0
  %v537 = vadd.f32 0.0, %v536
  %v538 = vpop.f32.mrf.mxu0
  %539 = vmatprep.mubr.f32.mxu0 0.0
  %540 = vmatmul.mubr.f32.gmra.mxu0 %v234
  %v541 = vpop.f32.mrf.mxu0
  %v542 = vadd.f32 0.0, %v541
  %v543 = vpop.f32.mrf.mxu0
  %544 = vmatprep.mubr.f32.mxu0 0.0
  %545 = vmatmul.mubr.f32.gmra.mxu0 %v239
  %v546 = vpop.f32.mrf.mxu0
  %v547 = vadd.f32 0.0, %v546
  %v548 = vpop.f32.mrf.mxu0
  %549 = vmatprep.mubr.f32.mxu0 0.0
  %550 = vmatmul.mubr.f32.gmra.mxu0 %v242
  %v551 = vpop.f32.mrf.mxu0
  %v552 = vadd.f32 0.0, %v551
  %v553 = vpop.f32.mrf.mxu0
  %554 = vmatprep.mubr.f32.mxu0 0.0
  %555 = vmatmul.mubr.f32.gmra.mxu0 %v247
  %v556 = vpop.f32.mrf.mxu0
  %v557 = vadd.f32 0.0, %v556
  %v558 = vpop.f32.mrf.mxu0
  %559 = vmatprep.mubr.f32.mxu0 0.0
  %560 = vmatmul.mubr.f32.gmra.mxu0 %v250
  %v561 = vpop.f32.mrf.mxu0
  %v562 = vadd.f32 0.0, %v561
  %v563 = vpop.f32.mrf.mxu0
  %564 = vmatprep.mubr.f32.mxu0 0.0
  %565 = vmatmul.mubr.f32.gmra.mxu0 %v255
  %v566 = vpop.f32.mrf.mxu0
  %v567 = vadd.f32 0.0, %v566
  %v568 = vpop.f32.mrf.mxu0
  %569 = vmatprep.mubr.f32.mxu0 0.0
  %570 = vmatmul.mubr.f32.gmra.mxu0 %v258
  %v571 = vpop.f32.mrf.mxu0
  %v572 = vadd.f32 0.0, %v571
  %v573 = vpop.f32.mrf.mxu0
  %574 = vmatprep.mubr.f32.mxu0 0.0
  %575 = vmatmul.mubr.f32.gmra.mxu0 %v263
  %v576 = vpop.f32.mrf.mxu0
  %v577 = vadd.f32 0.0, %v576
  %v578 = vpop.f32.mrf.mxu0
  %579 = vmatprep.mubr.f32.mxu0 0.0
  %580 = vmatmul.mubr.f32.gmra.mxu0 %v266
  %v581 = vpop.f32.mrf.mxu0
  %v582 = vadd.f32 0.0, %v581
  %v583 = vpop.f32.mrf.mxu0
  %584 = vmatprep.mubr.f32.mxu0 0.0
  %585 = vmatmul.mubr.f32.gmra.mxu0 %v271
  %v586 = vpop.f32.mrf.mxu0
  %v587 = vadd.f32 0.0, %v586
  %v588 = vpop.f32.mrf.mxu0
  %589 = vmatprep.mubr.f32.mxu0 0.0
  %590 = vmatmul.mubr.f32.gmra.mxu0 %v274
  %v591 = vpop.f32.mrf.mxu0
  %v592 = vadd.f32 0.0, %v591
  %v593 = vpop.f32.mrf.mxu0
  %594 = vmatprep.mubr.f32.mxu0 0.0
  %595 = vmatmul.mubr.f32.gmra.mxu0 %v279
  %v596 = vpop.f32.mrf.mxu0
  %v597 = vadd.f32 0.0, %v596
  %v598 = vpop.f32.mrf.mxu0
  %599 = vmatprep.mubr.f32.mxu0 0.0
  %600 = vmatmul.mubr.f32.gmra.mxu0 %v282
  %v601 = vpop.f32.mrf.mxu0
  %v602 = vadd.f32 0.0, %v601
  %v603 = vpop.f32.mrf.mxu0
  %604 = vmatprep.mubr.f32.mxu0 0.0
  %605 = vmatmul.mubr.f32.gmra.mxu0 %v287
  %v606 = vpop.f32.mrf.mxu0
  %v607 = vadd.f32 0.0, %v606
  %v608 = vpop.f32.mrf.mxu0
  %609 = vmatprep.mubr.f32.mxu0 0.0
  %610 = vmatmul.mubr.f32.gmra.mxu0 %v290
  %v611 = vpop.f32.mrf.mxu0
  %v612 = vadd.f32 0.0, %v611
  %v613 = vpop.f32.mrf.mxu0
  %614 = vdwg.mxu0
  %615 = vxpose.xlu0.b32.start [1/16] %v537, 128
  %616 = vxpose.xlu0.b32.cont [2/16] %v542, 128
  %617 = vxpose.xlu0.b32.cont [3/16] %v547, 128
  %618 = vxpose.xlu0.b32.cont [4/16] %v552, 128
  %619 = vxpose.xlu0.b32.cont [5/16] %v557, 128
  %620 = vxpose.xlu0.b32.cont [6/16] %v562, 128
  %621 = vxpose.xlu0.b32.cont [7/16] %v567, 128
  %622 = vxpose.xlu0.b32.cont [8/16] %v572, 128
  %623 = vxpose.xlu0.b32.cont [9/16] %v577, 128
  %624 = vxpose.xlu0.b32.cont [10/16] %v582, 128
  %625 = vxpose.xlu0.b32.cont [11/16] %v587, 128
  %626 = vxpose.xlu0.b32.cont [12/16] %v592, 128
  %627 = vxpose.xlu0.b32.cont [13/16] %v597, 128
  %628 = vxpose.xlu0.b32.cont [14/16] %v602, 128
  %629 = vxpose.xlu0.b32.cont [15/16] %v607, 128
  %630 = vxpose.xlu0.b32.end [16/16] %v612, 128
  %v631 = vpop.trf.xlu0
  %v632 = vpop.trf.xlu0
  %v633 = vpop.trf.xlu0
  %v634 = vpop.trf.xlu0
  %v635 = vpop.trf.xlu0
  %v636 = vpop.trf.xlu0
  %v637 = vpop.trf.xlu0
  %v638 = vpop.trf.xlu0
  %v639 = vpop.trf.xlu0
  %v640 = vpop.trf.xlu0
  %v641 = vpop.trf.xlu0
  %v642 = vpop.trf.xlu0
  %v643 = vpop.trf.xlu0
  %v644 = vpop.trf.xlu0
  %v645 = vpop.trf.xlu0
  %v646 = vpop.trf.xlu0
  %v647 = vlaneseq
  %v648 = vshrl.u32 %v647, 7
  %v649 = vsub.s32 0, %v648
  %v650 = vrot.slane %v631, %v649
  %652 = vbcast.lane.b32.xlu0 %v650, 256
  %v653 = vpop.permute.xlu0 %652
  %s655 = sor.u32 256, 8
  %656 = vbcast.lane.b32.xlu0 %v650, %s655
  %v657 = vpop.permute.xlu0 %656
  %s659 = sor.u32 256, 16
  %660 = vbcast.lane.b32.xlu0 %v650, %s659
  %v661 = vpop.permute.xlu0 %660
  %s663 = sor.u32 256, 24
  %664 = vbcast.lane.b32.xlu0 %v650, %s663
  %v665 = vpop.permute.xlu0 %664
  %s667 = sor.u32 256, 32
  %668 = vbcast.lane.b32.xlu0 %v650, %s667
  %v669 = vpop.permute.xlu0 %668
  %s671 = sor.u32 256, 40
  %672 = vbcast.lane.b32.xlu0 %v650, %s671
  %v673 = vpop.permute.xlu0 %672
  %s675 = sor.u32 256, 48
  %676 = vbcast.lane.b32.xlu0 %v650, %s675
  %v677 = vpop.permute.xlu0 %676
  %s679 = sor.u32 256, 56
  %680 = vbcast.lane.b32.xlu0 %v650, %s679
  %v681 = vpop.permute.xlu0 %680
  %s683 = sor.u32 256, 64
  %684 = vbcast.lane.b32.xlu0 %v650, %s683
  %v685 = vpop.permute.xlu0 %684
  %s687 = sor.u32 256, 72
  %688 = vbcast.lane.b32.xlu0 %v650, %s687
  %v689 = vpop.permute.xlu0 %688
  %s691 = sor.u32 256, 80
  %692 = vbcast.lane.b32.xlu0 %v650, %s691
  %v693 = vpop.permute.xlu0 %692
  %s695 = sor.u32 256, 88
  %696 = vbcast.lane.b32.xlu0 %v650, %s695
  %v697 = vpop.permute.xlu0 %696
  %s699 = sor.u32 256, 96
  %700 = vbcast.lane.b32.xlu0 %v650, %s699
  %v701 = vpop.permute.xlu0 %700
  %s703 = sor.u32 256, 104
  %704 = vbcast.lane.b32.xlu0 %v650, %s703
  %v705 = vpop.permute.xlu0 %704
  %s707 = sor.u32 256, 112
  %708 = vbcast.lane.b32.xlu0 %v650, %s707
  %v709 = vpop.permute.xlu0 %708
  %s711 = sor.u32 256, 120
  %712 = vbcast.lane.b32.xlu0 %v650, %s711
  %v713 = vpop.permute.xlu0 %712
  %714 = vxpose.xlu0.b32.start [1/16] %v376, 128
  %715 = vxpose.xlu0.b32.cont [2/16] %v381, 128
  %716 = vxpose.xlu0.b32.cont [3/16] %v386, 128
  %717 = vxpose.xlu0.b32.cont [4/16] %v391, 128
  %718 = vxpose.xlu0.b32.cont [5/16] %v396, 128
  %719 = vxpose.xlu0.b32.cont [6/16] %v401, 128
  %720 = vxpose.xlu0.b32.cont [7/16] %v406, 128
  %721 = vxpose.xlu0.b32.cont [8/16] %v411, 128
  %722 = vxpose.xlu0.b32.cont [9/16] %v416, 128
  %723 = vxpose.xlu0.b32.cont [10/16] %v421, 128
  %724 = vxpose.xlu0.b32.cont [11/16] %v426, 128
  %725 = vxpose.xlu0.b32.cont [12/16] %v431, 128
  %726 = vxpose.xlu0.b32.cont [13/16] %v436, 128
  %727 = vxpose.xlu0.b32.cont [14/16] %v441, 128
  %728 = vxpose.xlu0.b32.cont [15/16] %v446, 128
  %729 = vxpose.xlu0.b32.end [16/16] %v451, 128
  %v730 = vpop.trf.xlu0
  %v731 = vpop.trf.xlu0
  %v732 = vpop.trf.xlu0
  %v733 = vpop.trf.xlu0
  %v734 = vpop.trf.xlu0
  %v735 = vpop.trf.xlu0
  %v736 = vpop.trf.xlu0
  %v737 = vpop.trf.xlu0
  %v738 = vpop.trf.xlu0
  %v739 = vpop.trf.xlu0
  %v740 = vpop.trf.xlu0
  %v741 = vpop.trf.xlu0
  %v742 = vpop.trf.xlu0
  %v743 = vpop.trf.xlu0
  %v744 = vpop.trf.xlu0
  %v745 = vpop.trf.xlu0
  %v746 = vlaneseq
  %v747 = vshrl.u32 %v746, 7
  %v748 = vsub.s32 0, %v747
  %v749 = vrot.slane %v730, %v748
  %v750 = vadd.f32 %v653, %v749
  %v751 = vadd.f32 %v657, %v749
  %v752 = vadd.f32 %v661, %v749
  %v753 = vadd.f32 %v665, %v749
  %v754 = vadd.f32 %v669, %v749
  %v755 = vadd.f32 %v673, %v749
  %v756 = vadd.f32 %v677, %v749
  %v757 = vadd.f32 %v681, %v749
  %v758 = vadd.f32 %v685, %v749
  %v759 = vadd.f32 %v689, %v749
  %v760 = vadd.f32 %v693, %v749
  %v761 = vadd.f32 %v697, %v749
  %v762 = vadd.f32 %v701, %v749
  %v763 = vadd.f32 %v705, %v749
  %v764 = vadd.f32 %v709, %v749
  %v765 = vadd.f32 %v713, %v749
  %vm766 = vcmp.gt.f32.partialorder %v750, 0.0
  %vm767 = vcmp.gt.f32.partialorder %v751, 0.0
  %vm768 = vcmp.gt.f32.partialorder %v752, 0.0
  %vm769 = vcmp.gt.f32.partialorder %v753, 0.0
  %vm770 = vcmp.gt.f32.partialorder %v754, 0.0
  %vm771 = vcmp.gt.f32.partialorder %v755, 0.0
  %vm772 = vcmp.gt.f32.partialorder %v756, 0.0
  %vm773 = vcmp.gt.f32.partialorder %v757, 0.0
  %vm774 = vcmp.gt.f32.partialorder %v758, 0.0
  %vm775 = vcmp.gt.f32.partialorder %v759, 0.0
  %vm776 = vcmp.gt.f32.partialorder %v760, 0.0
  %vm777 = vcmp.gt.f32.partialorder %v761, 0.0
  %vm778 = vcmp.gt.f32.partialorder %v762, 0.0
  %vm779 = vcmp.gt.f32.partialorder %v763, 0.0
  %vm780 = vcmp.gt.f32.partialorder %v764, 0.0
  %vm781 = vcmp.gt.f32.partialorder %v765, 0.0
  %v782 = vmul.f32 %v750, 0.2
  %v783 = vmul.f32 %v751, 0.2
  %v784 = vmul.f32 %v752, 0.2
  %v785 = vmul.f32 %v753, 0.2
  %v786 = vmul.f32 %v754, 0.2
  %v787 = vmul.f32 %v755, 0.2
  %v788 = vmul.f32 %v756, 0.2
  %v789 = vmul.f32 %v757, 0.2
  %v790 = vmul.f32 %v758, 0.2
  %v791 = vmul.f32 %v759, 0.2
  %v792 = vmul.f32 %v760, 0.2
  %v793 = vmul.f32 %v761, 0.2
  %v794 = vmul.f32 %v762, 0.2
  %v795 = vmul.f32 %v763, 0.2
  %v796 = vmul.f32 %v764, 0.2
  %v797 = vmul.f32 %v765, 0.2
  %v798 = vsel %vm766, %v750, %v782
  %v799 = vsel %vm767, %v751, %v783
  %v800 = vsel %vm768, %v752, %v784
  %v801 = vsel %vm769, %v753, %v785
  %v802 = vsel %vm770, %v754, %v786
  %v803 = vsel %vm771, %v755, %v787
  %v804 = vsel %vm772, %v756, %v788
  %v805 = vsel %vm773, %v757, %v789
  %v806 = vsel %vm774, %v758, %v790
  %v807 = vsel %vm775, %v759, %v791
  %v808 = vsel %vm776, %v760, %v792
  %v809 = vsel %vm777, %v761, %v793
  %v810 = vsel %vm778, %v762, %v794
  %v811 = vsel %vm779, %v763, %v795
  %v812 = vsel %vm780, %v764, %v796
  %v813 = vsel %vm781, %v765, %v797
  %v814 = vld [vmem:[%s2] sm:$0xf]
  %v815 = vld [vmem:[%s2 + $0x4] sm:$0xf]
  %v816 = vld [vmem:[%s2 + $0x8] sm:$0xf]
  %v817 = vld [vmem:[%s2 + $0xc] sm:$0xf]
  %v818 = vld [vmem:[%s2 + $0x10] sm:$0xf]
  %v819 = vld [vmem:[%s2 + $0x14] sm:$0xf]
  %v820 = vld [vmem:[%s2 + $0x18] sm:$0xf]
  %v821 = vld [vmem:[%s2 + $0x1c] sm:$0xf]
  %v822 = vld [vmem:[%s2 + $0x20] sm:$0xf]
  %v823 = vld [vmem:[%s2 + $0x24] sm:$0xf]
  %v824 = vld [vmem:[%s2 + $0x28] sm:$0xf]
  %v825 = vld [vmem:[%s2 + $0x2c] sm:$0xf]
  %v826 = vld [vmem:[%s2 + $0x30] sm:$0xf]
  %v827 = vld [vmem:[%s2 + $0x34] sm:$0xf]
  %v828 = vld [vmem:[%s2 + $0x38] sm:$0xf]
  %v829 = vld [vmem:[%s2 + $0x3c] sm:$0xf]
  %v830 = vunpack.c.l.bf16 %v814
  %v831 = vunpack.c.l.bf16 %v815
  %v832 = vunpack.c.l.bf16 %v816
  %v833 = vunpack.c.l.bf16 %v817
  %v834 = vunpack.c.l.bf16 %v818
  %v835 = vunpack.c.l.bf16 %v819
  %v836 = vunpack.c.l.bf16 %v820
  %v837 = vunpack.c.l.bf16 %v821
  %v838 = vunpack.c.l.bf16 %v822
  %v839 = vunpack.c.l.bf16 %v823
  %v840 = vunpack.c.l.bf16 %v824
  %v841 = vunpack.c.l.bf16 %v825
  %v842 = vunpack.c.l.bf16 %v826
  %v843 = vunpack.c.l.bf16 %v827
  %v844 = vunpack.c.l.bf16 %v828
  %v845 = vunpack.c.l.bf16 %v829
  %v846 = vadd.f32 %v798, %v830
  %v847 = vadd.f32 %v799, %v831
  %v848 = vadd.f32 %v800, %v832
  %v849 = vadd.f32 %v801, %v833
  %v850 = vadd.f32 %v802, %v834
  %v851 = vadd.f32 %v803, %v835
  %v852 = vadd.f32 %v804, %v836
  %v853 = vadd.f32 %v805, %v837
  %v854 = vadd.f32 %v806, %v838
  %v855 = vadd.f32 %v807, %v839
  %v856 = vadd.f32 %v808, %v840
  %v857 = vadd.f32 %v809, %v841
  %v858 = vadd.f32 %v810, %v842
  %v859 = vadd.f32 %v811, %v843
  %v860 = vadd.f32 %v812, %v844
  %v861 = vadd.f32 %v813, %v845
  %862 = vmax.xlane.f32.xlu0 %v846
  %v863 = vpop.xlane.xlu0 %862
  %864 = vmax.xlane.f32.xlu0 %v847
  %v865 = vpop.xlane.xlu0 %864
  %866 = vmax.xlane.f32.xlu0 %v848
  %v867 = vpop.xlane.xlu0 %866
  %868 = vmax.xlane.f32.xlu0 %v849
  %v869 = vpop.xlane.xlu0 %868
  %870 = vmax.xlane.f32.xlu0 %v850
  %v871 = vpop.xlane.xlu0 %870
  %872 = vmax.xlane.f32.xlu0 %v851
  %v873 = vpop.xlane.xlu0 %872
  %874 = vmax.xlane.f32.xlu0 %v852
  %v875 = vpop.xlane.xlu0 %874
  %876 = vmax.xlane.f32.xlu0 %v853
  %v877 = vpop.xlane.xlu0 %876
  %878 = vmax.xlane.f32.xlu0 %v854
  %v879 = vpop.xlane.xlu0 %878
  %880 = vmax.xlane.f32.xlu0 %v855
  %v881 = vpop.xlane.xlu0 %880
  %882 = vmax.xlane.f32.xlu0 %v856
  %v883 = vpop.xlane.xlu0 %882
  %884 = vmax.xlane.f32.xlu0 %v857
  %v885 = vpop.xlane.xlu0 %884
  %886 = vmax.xlane.f32.xlu0 %v858
  %v887 = vpop.xlane.xlu0 %886
  %888 = vmax.xlane.f32.xlu0 %v859
  %v889 = vpop.xlane.xlu0 %888
  %890 = vmax.xlane.f32.xlu0 %v860
  %v891 = vpop.xlane.xlu0 %890
  %892 = vmax.xlane.f32.xlu0 %v861
  %v893 = vpop.xlane.xlu0 %892
  %v894 = vsub.f32 %v846, %v863
  %v895 = vsub.f32 %v847, %v865
  %v896 = vsub.f32 %v848, %v867
  %v897 = vsub.f32 %v849, %v869
  %v898 = vsub.f32 %v850, %v871
  %v899 = vsub.f32 %v851, %v873
  %v900 = vsub.f32 %v852, %v875
  %v901 = vsub.f32 %v853, %v877
  %v902 = vsub.f32 %v854, %v879
  %v903 = vsub.f32 %v855, %v881
  %v904 = vsub.f32 %v856, %v883
  %v905 = vsub.f32 %v857, %v885
  %v906 = vsub.f32 %v858, %v887
  %v907 = vsub.f32 %v859, %v889
  %v908 = vsub.f32 %v860, %v891
  %v909 = vsub.f32 %v861, %v893
  %v910 = vmul.f32 %v894, 1.442695
  %v911 = vpow.pop %v910
  %v912 = vmul.f32 %v895, 1.442695
  %v913 = vpow.pop %v912
  %v914 = vmul.f32 %v896, 1.442695
  %v915 = vpow.pop %v914
  %v916 = vmul.f32 %v897, 1.442695
  %v917 = vpow.pop %v916
  %v918 = vmul.f32 %v898, 1.442695
  %v919 = vpow.pop %v918
  %v920 = vmul.f32 %v899, 1.442695
  %v921 = vpow.pop %v920
  %v922 = vmul.f32 %v900, 1.442695
  %v923 = vpow.pop %v922
  %v924 = vmul.f32 %v901, 1.442695
  %v925 = vpow.pop %v924
  %v926 = vmul.f32 %v902, 1.442695
  %v927 = vpow.pop %v926
  %v928 = vmul.f32 %v903, 1.442695
  %v929 = vpow.pop %v928
  %v930 = vmul.f32 %v904, 1.442695
  %v931 = vpow.pop %v930
  %v932 = vmul.f32 %v905, 1.442695
  %v933 = vpow.pop %v932
  %v934 = vmul.f32 %v906, 1.442695
  %v935 = vpow.pop %v934
  %v936 = vmul.f32 %v907, 1.442695
  %v937 = vpow.pop %v936
  %v938 = vmul.f32 %v908, 1.442695
  %v939 = vpow.pop %v938
  %v940 = vmul.f32 %v909, 1.442695
  %v941 = vpow.pop %v940
  %942 = vadd.xlane.f32.xlu0 %v911
  %v943 = vpop.xlane.xlu0 %942
  %944 = vadd.xlane.f32.xlu0 %v913
  %v945 = vpop.xlane.xlu0 %944
  %946 = vadd.xlane.f32.xlu0 %v915
  %v947 = vpop.xlane.xlu0 %946
  %948 = vadd.xlane.f32.xlu0 %v917
  %v949 = vpop.xlane.xlu0 %948
  %950 = vadd.xlane.f32.xlu0 %v919
  %v951 = vpop.xlane.xlu0 %950
  %952 = vadd.xlane.f32.xlu0 %v921
  %v953 = vpop.xlane.xlu0 %952
  %954 = vadd.xlane.f32.xlu0 %v923
  %v955 = vpop.xlane.xlu0 %954
  %956 = vadd.xlane.f32.xlu0 %v925
  %v957 = vpop.xlane.xlu0 %956
  %958 = vadd.xlane.f32.xlu0 %v927
  %v959 = vpop.xlane.xlu0 %958
  %960 = vadd.xlane.f32.xlu0 %v929
  %v961 = vpop.xlane.xlu0 %960
  %962 = vadd.xlane.f32.xlu0 %v931
  %v963 = vpop.xlane.xlu0 %962
  %964 = vadd.xlane.f32.xlu0 %v933
  %v965 = vpop.xlane.xlu0 %964
  %966 = vadd.xlane.f32.xlu0 %v935
  %v967 = vpop.xlane.xlu0 %966
  %968 = vadd.xlane.f32.xlu0 %v937
  %v969 = vpop.xlane.xlu0 %968
  %970 = vadd.xlane.f32.xlu0 %v939
  %v971 = vpop.xlane.xlu0 %970
  %972 = vadd.xlane.f32.xlu0 %v941
  %v973 = vpop.xlane.xlu0 %972
  %v974 = vpack.c.bf16 %v913, %v911
  %v975 = vpack.c.bf16 %v917, %v915
  %v976 = vpack.c.bf16 %v921, %v919
  %v977 = vpack.c.bf16 %v925, %v923
  %v978 = vpack.c.bf16 %v929, %v927
  %v979 = vpack.c.bf16 %v933, %v931
  %v980 = vpack.c.bf16 %v937, %v935
  %v981 = vpack.c.bf16 %v941, %v939
  %v982 = vpack.c.bf16 %v113, %v110
  %v983 = vpack.c.bf16 %v121, %v118
  %v984 = vpack.c.bf16 %v129, %v126
  %v985 = vpack.c.bf16 %v137, %v134
  %v986 = vpack.c.bf16 %v145, %v142
  %v987 = vpack.c.bf16 %v153, %v150
  %v988 = vpack.c.bf16 %v161, %v158
  %v989 = vpack.c.bf16 %v169, %v166
  %990 = vmatprep.subr.bf16.mxu0 0
  %991 = vmatpush1.bf16.msra.mxu0 %v989
  %992 = vmatprep.subr.bf16.mxu0 0
  %993 = vmatpush1.bf16.msra.mxu0 %v988
  %994 = vmatprep.subr.bf16.mxu0 0
  %995 = vmatpush1.bf16.msra.mxu0 %v987
  %996 = vmatprep.subr.bf16.mxu0 0
  %997 = vmatpush1.bf16.msra.mxu0 %v986
  %998 = vmatprep.subr.bf16.mxu0 0
  %999 = vmatpush1.bf16.msra.mxu0 %v985
  %1000 = vmatprep.subr.bf16.mxu0 0
  %1001 = vmatpush1.bf16.msra.mxu0 %v984
  %1002 = vmatprep.subr.bf16.mxu0 0
  %1003 = vmatpush1.bf16.msra.mxu0 %v983
  %1004 = vmatprep.subr.bf16.mxu0 0
  %1005 = vmatpush1.bf16.msra.mxu0 %v982
  %1006 = vmatprep.subr.bf16.mxu0 0
  %1007 = vmatpush2.bf16.msra.mxu0 0
  %1008 = vmatprep.subr.bf16.mxu0 0
  %1009 = vmatpush2.bf16.msra.mxu0 0
  %1010 = vmatprep.subr.bf16.mxu0 0
  %1011 = vmatpush2.bf16.msra.mxu0 0
  %1012 = vmatprep.subr.bf16.mxu0 0
  %1013 = vmatpush2.bf16.msra.mxu0 0
  %1014 = vmatprep.subr.bf16.mxu0 0
  %1015 = vmatpush2.bf16.msra.mxu0 0
  %1016 = vmatprep.subr.bf16.mxu0 0
  %1017 = vmatpush2.bf16.msra.mxu0 0
  %1018 = vmatprep.subr.bf16.mxu0 0
  %1019 = vmatpush2.bf16.msra.mxu0 0
  %1020 = vmatprep.subr.bf16.mxu0 0
  %1021 = vmatpush2.bf16.msra.mxu0 0
  %1022 = vmatprep.mubr.bf16.mxu0 0
  %1023 = vmatmul.mubr.bf16.gmra.mxu0 %v974
  %v1024 = vpop.f32.mrf.mxu0
  %v1025 = vadd.f32 0.0, %v1024
  %v1026 = vpop.f32.mrf.mxu0
  %v1027 = vpop.f32.mrf.mxu0
  %v1028 = vadd.f32 0.0, %v1027
  %v1029 = vpop.f32.mrf.mxu0
  %1030 = vmatprep.mubr.bf16.mxu0 0
  %1031 = vmatmul.mubr.bf16.gmra.mxu0 %v975
  %v1032 = vpop.f32.mrf.mxu0
  %v1033 = vadd.f32 0.0, %v1032
  %v1034 = vpop.f32.mrf.mxu0
  %v1035 = vpop.f32.mrf.mxu0
  %v1036 = vadd.f32 0.0, %v1035
  %v1037 = vpop.f32.mrf.mxu0
  %1038 = vmatprep.mubr.bf16.mxu0 0
  %1039 = vmatmul.mubr.bf16.gmra.mxu0 %v976
  %v1040 = vpop.f32.mrf.mxu0
  %v1041 = vadd.f32 0.0, %v1040
  %v1042 = vpop.f32.mrf.mxu0
  %v1043 = vpop.f32.mrf.mxu0
  %v1044 = vadd.f32 0.0, %v1043
  %v1045 = vpop.f32.mrf.mxu0
  %1046 = vmatprep.mubr.bf16.mxu0 0
  %1047 = vmatmul.mubr.bf16.gmra.mxu0 %v977
  %v1048 = vpop.f32.mrf.mxu0
  %v1049 = vadd.f32 0.0, %v1048
  %v1050 = vpop.f32.mrf.mxu0
  %v1051 = vpop.f32.mrf.mxu0
  %v1052 = vadd.f32 0.0, %v1051
  %v1053 = vpop.f32.mrf.mxu0
  %1054 = vmatprep.mubr.bf16.mxu0 0
  %1055 = vmatmul.mubr.bf16.gmra.mxu0 %v978
  %v1056 = vpop.f32.mrf.mxu0
  %v1057 = vadd.f32 0.0, %v1056
  %v1058 = vpop.f32.mrf.mxu0
  %v1059 = vpop.f32.mrf.mxu0
  %v1060 = vadd.f32 0.0, %v1059
  %v1061 = vpop.f32.mrf.mxu0
  %1062 = vmatprep.mubr.bf16.mxu0 0
  %1063 = vmatmul.mubr.bf16.gmra.mxu0 %v979
  %v1064 = vpop.f32.mrf.mxu0
  %v1065 = vadd.f32 0.0, %v1064
  %v1066 = vpop.f32.mrf.mxu0
  %v1067 = vpop.f32.mrf.mxu0
  %v1068 = vadd.f32 0.0, %v1067
  %v1069 = vpop.f32.mrf.mxu0
  %1070 = vmatprep.mubr.bf16.mxu0 0
  %1071 = vmatmul.mubr.bf16.gmra.mxu0 %v980
  %v1072 = vpop.f32.mrf.mxu0
  %v1073 = vadd.f32 0.0, %v1072
  %v1074 = vpop.f32.mrf.mxu0
  %v1075 = vpop.f32.mrf.mxu0
  %v1076 = vadd.f32 0.0, %v1075
  %v1077 = vpop.f32.mrf.mxu0
  %1078 = vmatprep.mubr.bf16.mxu0 0
  %1079 = vmatmul.mubr.bf16.gmra.mxu0 %v981
  %v1080 = vpop.f32.mrf.mxu0
  %v1081 = vadd.f32 0.0, %v1080
  %v1082 = vpop.f32.mrf.mxu0
  %v1083 = vpop.f32.mrf.mxu0
  %v1084 = vadd.f32 0.0, %v1083
  %v1085 = vpop.f32.mrf.mxu0
  %1086 = vdwg.mxu0
  %v1087 = vrcp.pop %v943
  %v1088 = vrcp.pop %v945
  %v1089 = vrcp.pop %v947
  %v1090 = vrcp.pop %v949
  %v1091 = vrcp.pop %v951
  %v1092 = vrcp.pop %v953
  %v1093 = vrcp.pop %v955
  %v1094 = vrcp.pop %v957
  %v1095 = vrcp.pop %v959
  %v1096 = vrcp.pop %v961
  %v1097 = vrcp.pop %v963
  %v1098 = vrcp.pop %v965
  %v1099 = vrcp.pop %v967
  %v1100 = vrcp.pop %v969
  %v1101 = vrcp.pop %v971
  %v1102 = vrcp.pop %v973
  %v1103 = vmul.f32 %v1025, %v1087
  %v1104 = vmul.f32 %v1028, %v1088
  %v1105 = vmul.f32 %v1033, %v1089
  %v1106 = vmul.f32 %v1036, %v1090
  %v1107 = vmul.f32 %v1041, %v1091
  %v1108 = vmul.f32 %v1044, %v1092
  %v1109 = vmul.f32 %v1049, %v1093
  %v1110 = vmul.f32 %v1052, %v1094
  %v1111 = vmul.f32 %v1057, %v1095
  %v1112 = vmul.f32 %v1060, %v1096
  %v1113 = vmul.f32 %v1065, %v1097
  %v1114 = vmul.f32 %v1068, %v1098
  %v1115 = vmul.f32 %v1073, %v1099
  %v1116 = vmul.f32 %v1076, %v1100
  %v1117 = vmul.f32 %v1081, %v1101
  %v1118 = vmul.f32 %v1084, %v1102
  %v1119 = vld [vmem:[%s6] sm:$0x1]
  %v1121 = vlaneseq
  %v1122 = vshrl.u32 %v1121, 7
  %v1123 = vsub.s32 0, %v1122
  %v1124 = vrot.slane %v1119, %v1123
  %v1126 = vmul.f32 %v1103, %v1124
  %v1127 = vmul.f32 %v1104, %v1124
  %v1128 = vmul.f32 %v1105, %v1124
  %v1129 = vmul.f32 %v1106, %v1124
  %v1130 = vmul.f32 %v1107, %v1124
  %v1131 = vmul.f32 %v1108, %v1124
  %v1132 = vmul.f32 %v1109, %v1124
  %v1133 = vmul.f32 %v1110, %v1124
  %v1134 = vmul.f32 %v1111, %v1124
  %v1135 = vmul.f32 %v1112, %v1124
  %v1136 = vmul.f32 %v1113, %v1124
  %v1137 = vmul.f32 %v1114, %v1124
  %v1138 = vmul.f32 %v1115, %v1124
  %v1139 = vmul.f32 %v1116, %v1124
  %v1140 = vmul.f32 %v1117, %v1124
  %v1141 = vmul.f32 %v1118, %v1124
  %v1142 = vadd.f32 %v1126, 0.0
  %v1143 = vadd.f32 %v1127, 0.0
  %v1144 = vadd.f32 %v1128, 0.0
  %v1145 = vadd.f32 %v1129, 0.0
  %v1146 = vadd.f32 %v1130, 0.0
  %v1147 = vadd.f32 %v1131, 0.0
  %v1148 = vadd.f32 %v1132, 0.0
  %v1149 = vadd.f32 %v1133, 0.0
  %v1150 = vadd.f32 %v1134, 0.0
  %v1151 = vadd.f32 %v1135, 0.0
  %v1152 = vadd.f32 %v1136, 0.0
  %v1153 = vadd.f32 %v1137, 0.0
  %v1154 = vadd.f32 %v1138, 0.0
  %v1155 = vadd.f32 %v1139, 0.0
  %v1156 = vadd.f32 %v1140, 0.0
  %v1157 = vadd.f32 %v1141, 0.0
  %1158 = vst [vmem:[%s7] sm:$0xff] %v1142
  %1159 = vst [vmem:[%s7 + $0x8] sm:$0xff] %v1143
  %1160 = vst [vmem:[%s7 + $0x10] sm:$0xff] %v1144
  %1161 = vst [vmem:[%s7 + $0x18] sm:$0xff] %v1145
  %1162 = vst [vmem:[%s7 + $0x20] sm:$0xff] %v1146
  %1163 = vst [vmem:[%s7 + $0x28] sm:$0xff] %v1147
  %1164 = vst [vmem:[%s7 + $0x30] sm:$0xff] %v1148
  %1165 = vst [vmem:[%s7 + $0x38] sm:$0xff] %v1149
  %1166 = vst [vmem:[%s7 + $0x40] sm:$0xff] %v1150
  %1167 = vst [vmem:[%s7 + $0x48] sm:$0xff] %v1151
  %1168 = vst [vmem:[%s7 + $0x50] sm:$0xff] %v1152
  %1169 = vst [vmem:[%s7 + $0x58] sm:$0xff] %v1153
  %1170 = vst [vmem:[%s7 + $0x60] sm:$0xff] %v1154
  %1171 = vst [vmem:[%s7 + $0x68] sm:$0xff] %v1155
  %1172 = vst [vmem:[%s7 + $0x70] sm:$0xff] %v1156
  %1173 = vst [vmem:[%s7 + $0x78] sm:$0xff] %v1157
  // Predicated region
  $region30: #{gatnet_forward.3} parent=0 // pred_check
    _
  $region31: #{gatnet_forward.3} parent=0 // pred_check_branch
    %1175 = sbr.rel (0) target = $region33
  $region32: #{gatnet_forward.3} parent=0 // pred_region
    _
  $region33: #{gatnet_forward.3} parent=0 // pred_fallthru
    _
  // Predicated region
  $region34: #{gatnet_forward.3} parent=0 // pred_check
    _
  $region35: #{gatnet_forward.3} parent=0 // pred_check_branch
    %1177 = sbr.rel (0) target = $region37
  $region36: #{gatnet_forward.3} parent=0 // pred_region
    _
  $region37: #{gatnet_forward.3} parent=0 // pred_fallthru
    _

// kernel: gatnet_forward.2
$region0: #{gatnet_forward.2}
  #allocation0 [shape = 'u32[]', space=smem, size = 0x4, offset = 0x4, fixed_abs, tag = 'smem constant byte address 0x4 - core index']
  #allocation1 [shape = 'u32[144,128]{1,0:T(1,128)}', space=vmem, size = 0x12000, scoped, tag = 'internal scratch']
  %s0 = inlined_call_operand.vmem [shape: f32[128,16], index: 0, kind: input, shape index: {}, may-alias: {0,1}]
  %s1 = inlined_call_operand.vmem [shape: f32[128,16], index: 1, kind: input, shape index: {}, may-alias: {0,1}]
  %s2 = inlined_call_operand.vmem [shape: bf16[128,128], index: 2, kind: input, shape index: {}]
  %s3 = inlined_call_operand.vmem [shape: f32[16,128], index: 3, kind: input, shape index: {}]
  %s4 = inlined_call_operand.vmem [shape: f32[128,8], index: 4, kind: input, shape index: {}]
  %s5 = inlined_call_operand.vmem [shape: f32[128,8], index: 5, kind: input, shape index: {}]
  %s6 = inlined_call_operand.vmem [shape: f32[8,1,128], index: 6, kind: input, shape index: {}]
  %s7 = inlined_call_operand.vmem [shape: f32[128,128], index: 7, kind: output, shape index: {}]
  %s8 = sld [smem:[#allocation0]]
  $region38: #{gatnet_forward.2} parent=0
    _
  %s10 = ssub.s32 1, %s8
  %s11 = scalar_select 0, %s10, %s8
  // Predicated region
  $region2: #{gatnet_forward.2} parent=0 // pred_check
    _
  $region3: #{gatnet_forward.2} parent=0 // pred_check_branch
    %13 = sbr.rel (0) target = $region5
  $region4: #{gatnet_forward.2} parent=0 // pred_region
    _
  $region5: #{gatnet_forward.2} parent=0 // pred_fallthru
    _
  // Predicated region
  $region6: #{gatnet_forward.2} parent=0 // pred_check
    _
  $region7: #{gatnet_forward.2} parent=0 // pred_check_branch
    %15 = sbr.rel (0) target = $region9
  $region8: #{gatnet_forward.2} parent=0 // pred_region
    _
  $region9: #{gatnet_forward.2} parent=0 // pred_fallthru
    _
  // Predicated region
  $region10: #{gatnet_forward.2} parent=0 // pred_check
    _
  $region11: #{gatnet_forward.2} parent=0 // pred_check_branch
    %17 = sbr.rel (0) target = $region13
  $region12: #{gatnet_forward.2} parent=0 // pred_region
    _
  $region13: #{gatnet_forward.2} parent=0 // pred_fallthru
    _
  // Predicated region
  $region14: #{gatnet_forward.2} parent=0 // pred_check
    _
  $region15: #{gatnet_forward.2} parent=0 // pred_check_branch
    %19 = sbr.rel (0) target = $region17
  $region16: #{gatnet_forward.2} parent=0 // pred_region
    _
  $region17: #{gatnet_forward.2} parent=0 // pred_fallthru
    _
  // Predicated region
  $region18: #{gatnet_forward.2} parent=0 // pred_check
    _
  $region19: #{gatnet_forward.2} parent=0 // pred_check_branch
    %21 = sbr.rel (0) target = $region21
  $region20: #{gatnet_forward.2} parent=0 // pred_region
    _
  $region21: #{gatnet_forward.2} parent=0 // pred_fallthru
    _
  // Predicated region
  $region22: #{gatnet_forward.2} parent=0 // pred_check
    _
  $region23: #{gatnet_forward.2} parent=0 // pred_check_branch
    %23 = sbr.rel (0) target = $region25
  $region24: #{gatnet_forward.2} parent=0 // pred_region
    _
  $region25: #{gatnet_forward.2} parent=0 // pred_fallthru
    _
  // Predicated region
  $region26: #{gatnet_forward.2} parent=0 // pred_check
    _
  $region27: #{gatnet_forward.2} parent=0 // pred_check_branch
    %25 = sbr.rel (0) target = $region29
  $region28: #{gatnet_forward.2} parent=0 // pred_region
    _
  $region29: #{gatnet_forward.2} parent=0 // pred_fallthru
    _
  %v27 = vld [vmem:[%s3] sm:$0xff]
  %v28 = vld [vmem:[%s3 + $0x8] sm:$0xff]
  %v29 = vpack.c.bf16 %v28, %v27
  %v30 = vld [vmem:[%s0] sm:$0xff]
  %v31 = vld [vmem:[%s0 + $0x8] sm:$0xff]
  %v32 = vld [vmem:[%s0 + $0x10] sm:$0xff]
  %v33 = vld [vmem:[%s0 + $0x18] sm:$0xff]
  %v34 = vld [vmem:[%s0 + $0x20] sm:$0xff]
  %v35 = vld [vmem:[%s0 + $0x28] sm:$0xff]
  %v36 = vld [vmem:[%s0 + $0x30] sm:$0xff]
  %v37 = vld [vmem:[%s0 + $0x38] sm:$0xff]
  %v38 = vld [vmem:[%s0 + $0x40] sm:$0xff]
  %v39 = vld [vmem:[%s0 + $0x48] sm:$0xff]
  %v40 = vld [vmem:[%s0 + $0x50] sm:$0xff]
  %v41 = vld [vmem:[%s0 + $0x58] sm:$0xff]
  %v42 = vld [vmem:[%s0 + $0x60] sm:$0xff]
  %v43 = vld [vmem:[%s0 + $0x68] sm:$0xff]
  %v44 = vld [vmem:[%s0 + $0x70] sm:$0xff]
  %v45 = vld [vmem:[%s0 + $0x78] sm:$0xff]
  %v46 = vpack.c.bf16 %v31, %v30
  %v47 = vpack.c.bf16 %v33, %v32
  %v48 = vpack.c.bf16 %v35, %v34
  %v49 = vpack.c.bf16 %v37, %v36
  %v50 = vpack.c.bf16 %v39, %v38
  %v51 = vpack.c.bf16 %v41, %v40
  %v52 = vpack.c.bf16 %v43, %v42
  %v53 = vpack.c.bf16 %v45, %v44
  %vm54 = vcmask 130048
  %v56 = vsel %vm54, %v46, 0
  %v59 = vsel %vm54, %v47, 0
  %v62 = vsel %vm54, %v48, 0
  %v65 = vsel %vm54, %v49, 0
  %v68 = vsel %vm54, %v50, 0
  %v71 = vsel %vm54, %v51, 0
  %v74 = vsel %vm54, %v52, 0
  %v77 = vsel %vm54, %v53, 0
  %79 = vmatprep.subr.bf16.mxu0 0
  %80 = vmatpush1.bf16.msra.mxu0 0
  %81 = vmatprep.subr.bf16.mxu0 0
  %82 = vmatpush1.bf16.msra.mxu0 0
  %83 = vmatprep.subr.bf16.mxu0 0
  %84 = vmatpush1.bf16.msra.mxu0 0
  %85 = vmatprep.subr.bf16.mxu0 0
  %86 = vmatpush1.bf16.msra.mxu0 0
  %87 = vmatprep.subr.bf16.mxu0 0
  %88 = vmatpush1.bf16.msra.mxu0 0
  %89 = vmatprep.subr.bf16.mxu0 0
  %90 = vmatpush1.bf16.msra.mxu0 0
  %91 = vmatprep.subr.bf16.mxu0 0
  %92 = vmatpush1.bf16.msra.mxu0 0
  %93 = vmatprep.subr.bf16.mxu0 0
  %94 = vmatpush1.bf16.msra.mxu0 %v29
  %95 = vmatprep.subr.bf16.mxu0 0
  %96 = vmatpush2.bf16.msra.mxu0 0
  %97 = vmatprep.subr.bf16.mxu0 0
  %98 = vmatpush2.bf16.msra.mxu0 0
  %99 = vmatprep.subr.bf16.mxu0 0
  %100 = vmatpush2.bf16.msra.mxu0 0
  %101 = vmatprep.subr.bf16.mxu0 0
  %102 = vmatpush2.bf16.msra.mxu0 0
  %103 = vmatprep.subr.bf16.mxu0 0
  %104 = vmatpush2.bf16.msra.mxu0 0
  %105 = vmatprep.subr.bf16.mxu0 0
  %106 = vmatpush2.bf16.msra.mxu0 0
  %107 = vmatprep.subr.bf16.mxu0 0
  %108 = vmatpush2.bf16.msra.mxu0 0
  %109 = vmatprep.subr.bf16.mxu0 0
  %110 = vmatpush2.bf16.msra.mxu0 0
  %111 = vmatprep.mubr.bf16.mxu0 0
  %112 = vmatmul.mubr.bf16.gmra.mxu0 %v56
  %v113 = vpop.f32.mrf.mxu0
  %v114 = vadd.f32 0.0, %v113
  %v115 = vpop.f32.mrf.mxu0
  %v116 = vpop.f32.mrf.mxu0
  %v117 = vadd.f32 0.0, %v116
  %v118 = vpop.f32.mrf.mxu0
  %119 = vmatprep.mubr.bf16.mxu0 0
  %120 = vmatmul.mubr.bf16.gmra.mxu0 %v59
  %v121 = vpop.f32.mrf.mxu0
  %v122 = vadd.f32 0.0, %v121
  %v123 = vpop.f32.mrf.mxu0
  %v124 = vpop.f32.mrf.mxu0
  %v125 = vadd.f32 0.0, %v124
  %v126 = vpop.f32.mrf.mxu0
  %127 = vmatprep.mubr.bf16.mxu0 0
  %128 = vmatmul.mubr.bf16.gmra.mxu0 %v62
  %v129 = vpop.f32.mrf.mxu0
  %v130 = vadd.f32 0.0, %v129
  %v131 = vpop.f32.mrf.mxu0
  %v132 = vpop.f32.mrf.mxu0
  %v133 = vadd.f32 0.0, %v132
  %v134 = vpop.f32.mrf.mxu0
  %135 = vmatprep.mubr.bf16.mxu0 0
  %136 = vmatmul.mubr.bf16.gmra.mxu0 %v65
  %v137 = vpop.f32.mrf.mxu0
  %v138 = vadd.f32 0.0, %v137
  %v139 = vpop.f32.mrf.mxu0
  %v140 = vpop.f32.mrf.mxu0
  %v141 = vadd.f32 0.0, %v140
  %v142 = vpop.f32.mrf.mxu0
  %143 = vmatprep.mubr.bf16.mxu0 0
  %144 = vmatmul.mubr.bf16.gmra.mxu0 %v68
  %v145 = vpop.f32.mrf.mxu0
  %v146 = vadd.f32 0.0, %v145
  %v147 = vpop.f32.mrf.mxu0
  %v148 = vpop.f32.mrf.mxu0
  %v149 = vadd.f32 0.0, %v148
  %v150 = vpop.f32.mrf.mxu0
  %151 = vmatprep.mubr.bf16.mxu0 0
  %152 = vmatmul.mubr.bf16.gmra.mxu0 %v71
  %v153 = vpop.f32.mrf.mxu0
  %v154 = vadd.f32 0.0, %v153
  %v155 = vpop.f32.mrf.mxu0
  %v156 = vpop.f32.mrf.mxu0
  %v157 = vadd.f32 0.0, %v156
  %v158 = vpop.f32.mrf.mxu0
  %159 = vmatprep.mubr.bf16.mxu0 0
  %160 = vmatmul.mubr.bf16.gmra.mxu0 %v74
  %v161 = vpop.f32.mrf.mxu0
  %v162 = vadd.f32 0.0, %v161
  %v163 = vpop.f32.mrf.mxu0
  %v164 = vpop.f32.mrf.mxu0
  %v165 = vadd.f32 0.0, %v164
  %v166 = vpop.f32.mrf.mxu0
  %167 = vmatprep.mubr.bf16.mxu0 0
  %168 = vmatmul.mubr.bf16.gmra.mxu0 %v77
  %v169 = vpop.f32.mrf.mxu0
  %v170 = vadd.f32 0.0, %v169
  %v171 = vpop.f32.mrf.mxu0
  %v172 = vpop.f32.mrf.mxu0
  %v173 = vadd.f32 0.0, %v172
  %v174 = vpop.f32.mrf.mxu0
  %175 = vdwg.mxu0
  %v176 = vld [vmem:[%s1] sm:$0xff]
  %v177 = vld [vmem:[%s1 + $0x8] sm:$0xff]
  %v178 = vld [vmem:[%s1 + $0x10] sm:$0xff]
  %v179 = vld [vmem:[%s1 + $0x18] sm:$0xff]
  %v180 = vld [vmem:[%s1 + $0x20] sm:$0xff]
  %v181 = vld [vmem:[%s1 + $0x28] sm:$0xff]
  %v182 = vld [vmem:[%s1 + $0x30] sm:$0xff]
  %v183 = vld [vmem:[%s1 + $0x38] sm:$0xff]
  %v184 = vld [vmem:[%s1 + $0x40] sm:$0xff]
  %v185 = vld [vmem:[%s1 + $0x48] sm:$0xff]
  %v186 = vld [vmem:[%s1 + $0x50] sm:$0xff]
  %v187 = vld [vmem:[%s1 + $0x58] sm:$0xff]
  %v188 = vld [vmem:[%s1 + $0x60] sm:$0xff]
  %v189 = vld [vmem:[%s1 + $0x68] sm:$0xff]
  %v190 = vld [vmem:[%s1 + $0x70] sm:$0xff]
  %v191 = vld [vmem:[%s1 + $0x78] sm:$0xff]
  %v192 = vpack.c.bf16 %v177, %v176
  %v193 = vpack.c.bf16 %v179, %v178
  %v194 = vpack.c.bf16 %v181, %v180
  %v195 = vpack.c.bf16 %v183, %v182
  %v196 = vpack.c.bf16 %v185, %v184
  %v197 = vpack.c.bf16 %v187, %v186
  %v198 = vpack.c.bf16 %v189, %v188
  %v199 = vpack.c.bf16 %v191, %v190
  %v201 = vsel %vm54, %v192, 0
  %v204 = vsel %vm54, %v193, 0
  %v207 = vsel %vm54, %v194, 0
  %v210 = vsel %vm54, %v195, 0
  %v213 = vsel %vm54, %v196, 0
  %v216 = vsel %vm54, %v197, 0
  %v219 = vsel %vm54, %v198, 0
  %v222 = vsel %vm54, %v199, 0
  %224 = vmatprep.subr.bf16.mxu0 0
  %225 = vmatpush1.bf16.msra.mxu0 0
  %226 = vmatprep.subr.bf16.mxu0 0
  %227 = vmatpush1.bf16.msra.mxu0 0
  %228 = vmatprep.subr.bf16.mxu0 0
  %229 = vmatpush1.bf16.msra.mxu0 0
  %230 = vmatprep.subr.bf16.mxu0 0
  %231 = vmatpush1.bf16.msra.mxu0 0
  %232 = vmatprep.subr.bf16.mxu0 0
  %233 = vmatpush1.bf16.msra.mxu0 0
  %234 = vmatprep.subr.bf16.mxu0 0
  %235 = vmatpush1.bf16.msra.mxu0 0
  %236 = vmatprep.subr.bf16.mxu0 0
  %237 = vmatpush1.bf16.msra.mxu0 0
  %238 = vmatprep.subr.bf16.mxu0 0
  %239 = vmatpush1.bf16.msra.mxu0 %v29
  %240 = vmatprep.subr.bf16.mxu0 0
  %241 = vmatpush2.bf16.msra.mxu0 0
  %242 = vmatprep.subr.bf16.mxu0 0
  %243 = vmatpush2.bf16.msra.mxu0 0
  %244 = vmatprep.subr.bf16.mxu0 0
  %245 = vmatpush2.bf16.msra.mxu0 0
  %246 = vmatprep.subr.bf16.mxu0 0
  %247 = vmatpush2.bf16.msra.mxu0 0
  %248 = vmatprep.subr.bf16.mxu0 0
  %249 = vmatpush2.bf16.msra.mxu0 0
  %250 = vmatprep.subr.bf16.mxu0 0
  %251 = vmatpush2.bf16.msra.mxu0 0
  %252 = vmatprep.subr.bf16.mxu0 0
  %253 = vmatpush2.bf16.msra.mxu0 0
  %254 = vmatprep.subr.bf16.mxu0 0
  %255 = vmatpush2.bf16.msra.mxu0 0
  %256 = vmatprep.mubr.bf16.mxu0 0
  %257 = vmatmul.mubr.bf16.gmra.mxu0 %v201
  %v258 = vpop.f32.mrf.mxu0
  %v259 = vadd.f32 0.0, %v258
  %v260 = vpop.f32.mrf.mxu0
  %v261 = vpop.f32.mrf.mxu0
  %v262 = vadd.f32 0.0, %v261
  %v263 = vpop.f32.mrf.mxu0
  %264 = vmatprep.mubr.bf16.mxu0 0
  %265 = vmatmul.mubr.bf16.gmra.mxu0 %v204
  %v266 = vpop.f32.mrf.mxu0
  %v267 = vadd.f32 0.0, %v266
  %v268 = vpop.f32.mrf.mxu0
  %v269 = vpop.f32.mrf.mxu0
  %v270 = vadd.f32 0.0, %v269
  %v271 = vpop.f32.mrf.mxu0
  %272 = vmatprep.mubr.bf16.mxu0 0
  %273 = vmatmul.mubr.bf16.gmra.mxu0 %v207
  %v274 = vpop.f32.mrf.mxu0
  %v275 = vadd.f32 0.0, %v274
  %v276 = vpop.f32.mrf.mxu0
  %v277 = vpop.f32.mrf.mxu0
  %v278 = vadd.f32 0.0, %v277
  %v279 = vpop.f32.mrf.mxu0
  %280 = vmatprep.mubr.bf16.mxu0 0
  %281 = vmatmul.mubr.bf16.gmra.mxu0 %v210
  %v282 = vpop.f32.mrf.mxu0
  %v283 = vadd.f32 0.0, %v282
  %v284 = vpop.f32.mrf.mxu0
  %v285 = vpop.f32.mrf.mxu0
  %v286 = vadd.f32 0.0, %v285
  %v287 = vpop.f32.mrf.mxu0
  %288 = vmatprep.mubr.bf16.mxu0 0
  %289 = vmatmul.mubr.bf16.gmra.mxu0 %v213
  %v290 = vpop.f32.mrf.mxu0
  %v291 = vadd.f32 0.0, %v290
  %v292 = vpop.f32.mrf.mxu0
  %v293 = vpop.f32.mrf.mxu0
  %v294 = vadd.f32 0.0, %v293
  %v295 = vpop.f32.mrf.mxu0
  %296 = vmatprep.mubr.bf16.mxu0 0
  %297 = vmatmul.mubr.bf16.gmra.mxu0 %v216
  %v298 = vpop.f32.mrf.mxu0
  %v299 = vadd.f32 0.0, %v298
  %v300 = vpop.f32.mrf.mxu0
  %v301 = vpop.f32.mrf.mxu0
  %v302 = vadd.f32 0.0, %v301
  %v303 = vpop.f32.mrf.mxu0
  %304 = vmatprep.mubr.bf16.mxu0 0
  %305 = vmatmul.mubr.bf16.gmra.mxu0 %v219
  %v306 = vpop.f32.mrf.mxu0
  %v307 = vadd.f32 0.0, %v306
  %v308 = vpop.f32.mrf.mxu0
  %v309 = vpop.f32.mrf.mxu0
  %v310 = vadd.f32 0.0, %v309
  %v311 = vpop.f32.mrf.mxu0
  %312 = vmatprep.mubr.bf16.mxu0 0
  %313 = vmatmul.mubr.bf16.gmra.mxu0 %v222
  %v314 = vpop.f32.mrf.mxu0
  %v315 = vadd.f32 0.0, %v314
  %v316 = vpop.f32.mrf.mxu0
  %v317 = vpop.f32.mrf.mxu0
  %v318 = vadd.f32 0.0, %v317
  %v319 = vpop.f32.mrf.mxu0
  %320 = vdwg.mxu0
  %v321 = vld [vmem:[%s4] sm:$0xff]
  %v322 = vld [vmem:[%s4 + $0x8] sm:$0xff]
  %v323 = vld [vmem:[%s4 + $0x10] sm:$0xff]
  %v324 = vld [vmem:[%s4 + $0x18] sm:$0xff]
  %v325 = vld [vmem:[%s4 + $0x20] sm:$0xff]
  %v326 = vld [vmem:[%s4 + $0x28] sm:$0xff]
  %v327 = vld [vmem:[%s4 + $0x30] sm:$0xff]
  %v328 = vld [vmem:[%s4 + $0x38] sm:$0xff]
  %v329 = vld [vmem:[%s4 + $0x40] sm:$0xff]
  %v330 = vld [vmem:[%s4 + $0x48] sm:$0xff]
  %v331 = vld [vmem:[%s4 + $0x50] sm:$0xff]
  %v332 = vld [vmem:[%s4 + $0x58] sm:$0xff]
  %v333 = vld [vmem:[%s4 + $0x60] sm:$0xff]
  %v334 = vld [vmem:[%s4 + $0x68] sm:$0xff]
  %v335 = vld [vmem:[%s4 + $0x70] sm:$0xff]
  %v336 = vld [vmem:[%s4 + $0x78] sm:$0xff]
  %337 = vmatprep.subr.mxu0 0.0
  %338 = vmatpush1.msra.mxu0 %v336
  %339 = vmatprep.subr.mxu0 0.0
  %340 = vmatpush1.msra.mxu0 %v335
  %341 = vmatprep.subr.mxu0 0.0
  %342 = vmatpush1.msra.mxu0 %v334
  %343 = vmatprep.subr.mxu0 0.0
  %344 = vmatpush1.msra.mxu0 %v333
  %345 = vmatprep.subr.mxu0 0.0
  %346 = vmatpush1.msra.mxu0 %v332
  %347 = vmatprep.subr.mxu0 0.0
  %348 = vmatpush1.msra.mxu0 %v331
  %349 = vmatprep.subr.mxu0 0.0
  %350 = vmatpush1.msra.mxu0 %v330
  %351 = vmatprep.subr.mxu0 0.0
  %352 = vmatpush1.msra.mxu0 %v329
  %353 = vmatprep.subr.mxu0 0.0
  %354 = vmatpush1.msra.mxu0 %v328
  %355 = vmatprep.subr.mxu0 0.0
  %356 = vmatpush1.msra.mxu0 %v327
  %357 = vmatprep.subr.mxu0 0.0
  %358 = vmatpush1.msra.mxu0 %v326
  %359 = vmatprep.subr.mxu0 0.0
  %360 = vmatpush1.msra.mxu0 %v325
  %361 = vmatprep.subr.mxu0 0.0
  %362 = vmatpush1.msra.mxu0 %v324
  %363 = vmatprep.subr.mxu0 0.0
  %364 = vmatpush1.msra.mxu0 %v323
  %365 = vmatprep.subr.mxu0 0.0
  %366 = vmatpush1.msra.mxu0 %v322
  %367 = vmatprep.subr.mxu0 0.0
  %368 = vmatpush1.msra.mxu0 %v321
  %369 = vmatprep.subr.mxu0 0.0
  %370 = vmatpush2.msra.mxu0 0.0
  %371 = vmatprep.subr.mxu0 0.0
  %372 = vmatpush2.msra.mxu0 0.0
  %373 = vmatprep.subr.mxu0 0.0
  %374 = vmatpush2.msra.mxu0 0.0
  %375 = vmatprep.subr.mxu0 0.0
  %376 = vmatpush2.msra.mxu0 0.0
  %377 = vmatprep.subr.mxu0 0.0
  %378 = vmatpush2.msra.mxu0 0.0
  %379 = vmatprep.subr.mxu0 0.0
  %380 = vmatpush2.msra.mxu0 0.0
  %381 = vmatprep.subr.mxu0 0.0
  %382 = vmatpush2.msra.mxu0 0.0
  %383 = vmatprep.subr.mxu0 0.0
  %384 = vmatpush2.msra.mxu0 0.0
  %385 = vmatprep.subr.mxu0 0.0
  %386 = vmatpush2.msra.mxu0 0.0
  %387 = vmatprep.subr.mxu0 0.0
  %388 = vmatpush2.msra.mxu0 0.0
  %389 = vmatprep.subr.mxu0 0.0
  %390 = vmatpush2.msra.mxu0 0.0
  %391 = vmatprep.subr.mxu0 0.0
  %392 = vmatpush2.msra.mxu0 0.0
  %393 = vmatprep.subr.mxu0 0.0
  %394 = vmatpush2.msra.mxu0 0.0
  %395 = vmatprep.subr.mxu0 0.0
  %396 = vmatpush2.msra.mxu0 0.0
  %397 = vmatprep.subr.mxu0 0.0
  %398 = vmatpush2.msra.mxu0 0.0
  %399 = vmatprep.subr.mxu0 0.0
  %400 = vmatpush2.msra.mxu0 0.0
  %401 = vmatprep.mubr.f32.mxu0 0.0
  %402 = vmatmul.mubr.f32.gmra.mxu0 %v114
  %v403 = vpop.f32.mrf.mxu0
  %v404 = vadd.f32 0.0, %v403
  %v405 = vpop.f32.mrf.mxu0
  %406 = vmatprep.mubr.f32.mxu0 0.0
  %407 = vmatmul.mubr.f32.gmra.mxu0 %v117
  %v408 = vpop.f32.mrf.mxu0
  %v409 = vadd.f32 0.0, %v408
  %v410 = vpop.f32.mrf.mxu0
  %411 = vmatprep.mubr.f32.mxu0 0.0
  %412 = vmatmul.mubr.f32.gmra.mxu0 %v122
  %v413 = vpop.f32.mrf.mxu0
  %v414 = vadd.f32 0.0, %v413
  %v415 = vpop.f32.mrf.mxu0
  %416 = vmatprep.mubr.f32.mxu0 0.0
  %417 = vmatmul.mubr.f32.gmra.mxu0 %v125
  %v418 = vpop.f32.mrf.mxu0
  %v419 = vadd.f32 0.0, %v418
  %v420 = vpop.f32.mrf.mxu0
  %421 = vmatprep.mubr.f32.mxu0 0.0
  %422 = vmatmul.mubr.f32.gmra.mxu0 %v130
  %v423 = vpop.f32.mrf.mxu0
  %v424 = vadd.f32 0.0, %v423
  %v425 = vpop.f32.mrf.mxu0
  %426 = vmatprep.mubr.f32.mxu0 0.0
  %427 = vmatmul.mubr.f32.gmra.mxu0 %v133
  %v428 = vpop.f32.mrf.mxu0
  %v429 = vadd.f32 0.0, %v428
  %v430 = vpop.f32.mrf.mxu0
  %431 = vmatprep.mubr.f32.mxu0 0.0
  %432 = vmatmul.mubr.f32.gmra.mxu0 %v138
  %v433 = vpop.f32.mrf.mxu0
  %v434 = vadd.f32 0.0, %v433
  %v435 = vpop.f32.mrf.mxu0
  %436 = vmatprep.mubr.f32.mxu0 0.0
  %437 = vmatmul.mubr.f32.gmra.mxu0 %v141
  %v438 = vpop.f32.mrf.mxu0
  %v439 = vadd.f32 0.0, %v438
  %v440 = vpop.f32.mrf.mxu0
  %441 = vmatprep.mubr.f32.mxu0 0.0
  %442 = vmatmul.mubr.f32.gmra.mxu0 %v146
  %v443 = vpop.f32.mrf.mxu0
  %v444 = vadd.f32 0.0, %v443
  %v445 = vpop.f32.mrf.mxu0
  %446 = vmatprep.mubr.f32.mxu0 0.0
  %447 = vmatmul.mubr.f32.gmra.mxu0 %v149
  %v448 = vpop.f32.mrf.mxu0
  %v449 = vadd.f32 0.0, %v448
  %v450 = vpop.f32.mrf.mxu0
  %451 = vmatprep.mubr.f32.mxu0 0.0
  %452 = vmatmul.mubr.f32.gmra.mxu0 %v154
  %v453 = vpop.f32.mrf.mxu0
  %v454 = vadd.f32 0.0, %v453
  %v455 = vpop.f32.mrf.mxu0
  %456 = vmatprep.mubr.f32.mxu0 0.0
  %457 = vmatmul.mubr.f32.gmra.mxu0 %v157
  %v458 = vpop.f32.mrf.mxu0
  %v459 = vadd.f32 0.0, %v458
  %v460 = vpop.f32.mrf.mxu0
  %461 = vmatprep.mubr.f32.mxu0 0.0
  %462 = vmatmul.mubr.f32.gmra.mxu0 %v162
  %v463 = vpop.f32.mrf.mxu0
  %v464 = vadd.f32 0.0, %v463
  %v465 = vpop.f32.mrf.mxu0
  %466 = vmatprep.mubr.f32.mxu0 0.0
  %467 = vmatmul.mubr.f32.gmra.mxu0 %v165
  %v468 = vpop.f32.mrf.mxu0
  %v469 = vadd.f32 0.0, %v468
  %v470 = vpop.f32.mrf.mxu0
  %471 = vmatprep.mubr.f32.mxu0 0.0
  %472 = vmatmul.mubr.f32.gmra.mxu0 %v170
  %v473 = vpop.f32.mrf.mxu0
  %v474 = vadd.f32 0.0, %v473
  %v475 = vpop.f32.mrf.mxu0
  %476 = vmatprep.mubr.f32.mxu0 0.0
  %477 = vmatmul.mubr.f32.gmra.mxu0 %v173
  %v478 = vpop.f32.mrf.mxu0
  %v479 = vadd.f32 0.0, %v478
  %v480 = vpop.f32.mrf.mxu0
  %481 = vdwg.mxu0
  %v482 = vld [vmem:[%s5] sm:$0xff]
  %v483 = vld [vmem:[%s5 + $0x8] sm:$0xff]
  %v484 = vld [vmem:[%s5 + $0x10] sm:$0xff]
  %v485 = vld [vmem:[%s5 + $0x18] sm:$0xff]
  %v486 = vld [vmem:[%s5 + $0x20] sm:$0xff]
  %v487 = vld [vmem:[%s5 + $0x28] sm:$0xff]
  %v488 = vld [vmem:[%s5 + $0x30] sm:$0xff]
  %v489 = vld [vmem:[%s5 + $0x38] sm:$0xff]
  %v490 = vld [vmem:[%s5 + $0x40] sm:$0xff]
  %v491 = vld [vmem:[%s5 + $0x48] sm:$0xff]
  %v492 = vld [vmem:[%s5 + $0x50] sm:$0xff]
  %v493 = vld [vmem:[%s5 + $0x58] sm:$0xff]
  %v494 = vld [vmem:[%s5 + $0x60] sm:$0xff]
  %v495 = vld [vmem:[%s5 + $0x68] sm:$0xff]
  %v496 = vld [vmem:[%s5 + $0x70] sm:$0xff]
  %v497 = vld [vmem:[%s5 + $0x78] sm:$0xff]
  %498 = vmatprep.subr.mxu0 0.0
  %499 = vmatpush1.msra.mxu0 %v497
  %500 = vmatprep.subr.mxu0 0.0
  %501 = vmatpush1.msra.mxu0 %v496
  %502 = vmatprep.subr.mxu0 0.0
  %503 = vmatpush1.msra.mxu0 %v495
  %504 = vmatprep.subr.mxu0 0.0
  %505 = vmatpush1.msra.mxu0 %v494
  %506 = vmatprep.subr.mxu0 0.0
  %507 = vmatpush1.msra.mxu0 %v493
  %508 = vmatprep.subr.mxu0 0.0
  %509 = vmatpush1.msra.mxu0 %v492
  %510 = vmatprep.subr.mxu0 0.0
  %511 = vmatpush1.msra.mxu0 %v491
  %512 = vmatprep.subr.mxu0 0.0
  %513 = vmatpush1.msra.mxu0 %v490
  %514 = vmatprep.subr.mxu0 0.0
  %515 = vmatpush1.msra.mxu0 %v489
  %516 = vmatprep.subr.mxu0 0.0
  %517 = vmatpush1.msra.mxu0 %v488
  %518 = vmatprep.subr.mxu0 0.0
  %519 = vmatpush1.msra.mxu0 %v487
  %520 = vmatprep.subr.mxu0 0.0
  %521 = vmatpush1.msra.mxu0 %v486
  %522 = vmatprep.subr.mxu0 0.0
  %523 = vmatpush1.msra.mxu0 %v485
  %524 = vmatprep.subr.mxu0 0.0
  %525 = vmatpush1.msra.mxu0 %v484
  %526 = vmatprep.subr.mxu0 0.0
  %527 = vmatpush1.msra.mxu0 %v483
  %528 = vmatprep.subr.mxu0 0.0
  %529 = vmatpush1.msra.mxu0 %v482
  %530 = vmatprep.subr.mxu0 0.0
  %531 = vmatpush2.msra.mxu0 0.0
  %532 = vmatprep.subr.mxu0 0.0
  %533 = vmatpush2.msra.mxu0 0.0
  %534 = vmatprep.subr.mxu0 0.0
  %535 = vmatpush2.msra.mxu0 0.0
  %536 = vmatprep.subr.mxu0 0.0
  %537 = vmatpush2.msra.mxu0 0.0
  %538 = vmatprep.subr.mxu0 0.0
  %539 = vmatpush2.msra.mxu0 0.0
  %540 = vmatprep.subr.mxu0 0.0
  %541 = vmatpush2.msra.mxu0 0.0
  %542 = vmatprep.subr.mxu0 0.0
  %543 = vmatpush2.msra.mxu0 0.0
  %544 = vmatprep.subr.mxu0 0.0
  %545 = vmatpush2.msra.mxu0 0.0
  %546 = vmatprep.subr.mxu0 0.0
  %547 = vmatpush2.msra.mxu0 0.0
  %548 = vmatprep.subr.mxu0 0.0
  %549 = vmatpush2.msra.mxu0 0.0
  %550 = vmatprep.subr.mxu0 0.0
  %551 = vmatpush2.msra.mxu0 0.0
  %552 = vmatprep.subr.mxu0 0.0
  %553 = vmatpush2.msra.mxu0 0.0
  %554 = vmatprep.subr.mxu0 0.0
  %555 = vmatpush2.msra.mxu0 0.0
  %556 = vmatprep.subr.mxu0 0.0
  %557 = vmatpush2.msra.mxu0 0.0
  %558 = vmatprep.subr.mxu0 0.0
  %559 = vmatpush2.msra.mxu0 0.0
  %560 = vmatprep.subr.mxu0 0.0
  %561 = vmatpush2.msra.mxu0 0.0
  %562 = vmatprep.mubr.f32.mxu0 0.0
  %563 = vmatmul.mubr.f32.gmra.mxu0 %v259
  %v564 = vpop.f32.mrf.mxu0
  %v565 = vadd.f32 0.0, %v564
  %v566 = vpop.f32.mrf.mxu0
  %567 = vmatprep.mubr.f32.mxu0 0.0
  %568 = vmatmul.mubr.f32.gmra.mxu0 %v262
  %v569 = vpop.f32.mrf.mxu0
  %v570 = vadd.f32 0.0, %v569
  %v571 = vpop.f32.mrf.mxu0
  %572 = vmatprep.mubr.f32.mxu0 0.0
  %573 = vmatmul.mubr.f32.gmra.mxu0 %v267
  %v574 = vpop.f32.mrf.mxu0
  %v575 = vadd.f32 0.0, %v574
  %v576 = vpop.f32.mrf.mxu0
  %577 = vmatprep.mubr.f32.mxu0 0.0
  %578 = vmatmul.mubr.f32.gmra.mxu0 %v270
  %v579 = vpop.f32.mrf.mxu0
  %v580 = vadd.f32 0.0, %v579
  %v581 = vpop.f32.mrf.mxu0
  %582 = vmatprep.mubr.f32.mxu0 0.0
  %583 = vmatmul.mubr.f32.gmra.mxu0 %v275
  %v584 = vpop.f32.mrf.mxu0
  %v585 = vadd.f32 0.0, %v584
  %v586 = vpop.f32.mrf.mxu0
  %587 = vmatprep.mubr.f32.mxu0 0.0
  %588 = vmatmul.mubr.f32.gmra.mxu0 %v278
  %v589 = vpop.f32.mrf.mxu0
  %v590 = vadd.f32 0.0, %v589
  %v591 = vpop.f32.mrf.mxu0
  %592 = vmatprep.mubr.f32.mxu0 0.0
  %593 = vmatmul.mubr.f32.gmra.mxu0 %v283
  %v594 = vpop.f32.mrf.mxu0
  %v595 = vadd.f32 0.0, %v594
  %v596 = vpop.f32.mrf.mxu0
  %597 = vmatprep.mubr.f32.mxu0 0.0
  %598 = vmatmul.mubr.f32.gmra.mxu0 %v286
  %v599 = vpop.f32.mrf.mxu0
  %v600 = vadd.f32 0.0, %v599
  %v601 = vpop.f32.mrf.mxu0
  %602 = vmatprep.mubr.f32.mxu0 0.0
  %603 = vmatmul.mubr.f32.gmra.mxu0 %v291
  %v604 = vpop.f32.mrf.mxu0
  %v605 = vadd.f32 0.0, %v604
  %v606 = vpop.f32.mrf.mxu0
  %607 = vmatprep.mubr.f32.mxu0 0.0
  %608 = vmatmul.mubr.f32.gmra.mxu0 %v294
  %v609 = vpop.f32.mrf.mxu0
  %v610 = vadd.f32 0.0, %v609
  %v611 = vpop.f32.mrf.mxu0
  %612 = vmatprep.mubr.f32.mxu0 0.0
  %613 = vmatmul.mubr.f32.gmra.mxu0 %v299
  %v614 = vpop.f32.mrf.mxu0
  %v615 = vadd.f32 0.0, %v614
  %v616 = vpop.f32.mrf.mxu0
  %617 = vmatprep.mubr.f32.mxu0 0.0
  %618 = vmatmul.mubr.f32.gmra.mxu0 %v302
  %v619 = vpop.f32.mrf.mxu0
  %v620 = vadd.f32 0.0, %v619
  %v621 = vpop.f32.mrf.mxu0
  %622 = vmatprep.mubr.f32.mxu0 0.0
  %623 = vmatmul.mubr.f32.gmra.mxu0 %v307
  %v624 = vpop.f32.mrf.mxu0
  %v625 = vadd.f32 0.0, %v624
  %v626 = vpop.f32.mrf.mxu0
  %627 = vmatprep.mubr.f32.mxu0 0.0
  %628 = vmatmul.mubr.f32.gmra.mxu0 %v310
  %v629 = vpop.f32.mrf.mxu0
  %v630 = vadd.f32 0.0, %v629
  %v631 = vpop.f32.mrf.mxu0
  %632 = vmatprep.mubr.f32.mxu0 0.0
  %633 = vmatmul.mubr.f32.gmra.mxu0 %v315
  %v634 = vpop.f32.mrf.mxu0
  %v635 = vadd.f32 0.0, %v634
  %v636 = vpop.f32.mrf.mxu0
  %637 = vmatprep.mubr.f32.mxu0 0.0
  %638 = vmatmul.mubr.f32.gmra.mxu0 %v318
  %v639 = vpop.f32.mrf.mxu0
  %v640 = vadd.f32 0.0, %v639
  %v641 = vpop.f32.mrf.mxu0
  %642 = vdwg.mxu0
  %643 = vxpose.xlu0.b32.start [1/16] %v565, 128
  %644 = vxpose.xlu0.b32.cont [2/16] %v570, 128
  %645 = vxpose.xlu0.b32.cont [3/16] %v575, 128
  %646 = vxpose.xlu0.b32.cont [4/16] %v580, 128
  %647 = vxpose.xlu0.b32.cont [5/16] %v585, 128
  %648 = vxpose.xlu0.b32.cont [6/16] %v590, 128
  %649 = vxpose.xlu0.b32.cont [7/16] %v595, 128
  %650 = vxpose.xlu0.b32.cont [8/16] %v600, 128
  %651 = vxpose.xlu0.b32.cont [9/16] %v605, 128
  %652 = vxpose.xlu0.b32.cont [10/16] %v610, 128
  %653 = vxpose.xlu0.b32.cont [11/16] %v615, 128
  %654 = vxpose.xlu0.b32.cont [12/16] %v620, 128
  %655 = vxpose.xlu0.b32.cont [13/16] %v625, 128
  %656 = vxpose.xlu0.b32.cont [14/16] %v630, 128
  %657 = vxpose.xlu0.b32.cont [15/16] %v635, 128
  %658 = vxpose.xlu0.b32.end [16/16] %v640, 128
  %v659 = vpop.trf.xlu0
  %v660 = vpop.trf.xlu0
  %v661 = vpop.trf.xlu0
  %v662 = vpop.trf.xlu0
  %v663 = vpop.trf.xlu0
  %v664 = vpop.trf.xlu0
  %v665 = vpop.trf.xlu0
  %v666 = vpop.trf.xlu0
  %v667 = vpop.trf.xlu0
  %v668 = vpop.trf.xlu0
  %v669 = vpop.trf.xlu0
  %v670 = vpop.trf.xlu0
  %v671 = vpop.trf.xlu0
  %v672 = vpop.trf.xlu0
  %v673 = vpop.trf.xlu0
  %v674 = vpop.trf.xlu0
  %v675 = vlaneseq
  %v676 = vshrl.u32 %v675, 7
  %v677 = vsub.s32 0, %v676
  %v678 = vrot.slane %v659, %v677
  %680 = vbcast.lane.b32.xlu0 %v678, 256
  %v681 = vpop.permute.xlu0 %680
  %s683 = sor.u32 256, 8
  %684 = vbcast.lane.b32.xlu0 %v678, %s683
  %v685 = vpop.permute.xlu0 %684
  %s687 = sor.u32 256, 16
  %688 = vbcast.lane.b32.xlu0 %v678, %s687
  %v689 = vpop.permute.xlu0 %688
  %s691 = sor.u32 256, 24
  %692 = vbcast.lane.b32.xlu0 %v678, %s691
  %v693 = vpop.permute.xlu0 %692
  %s695 = sor.u32 256, 32
  %696 = vbcast.lane.b32.xlu0 %v678, %s695
  %v697 = vpop.permute.xlu0 %696
  %s699 = sor.u32 256, 40
  %700 = vbcast.lane.b32.xlu0 %v678, %s699
  %v701 = vpop.permute.xlu0 %700
  %s703 = sor.u32 256, 48
  %704 = vbcast.lane.b32.xlu0 %v678, %s703
  %v705 = vpop.permute.xlu0 %704
  %s707 = sor.u32 256, 56
  %708 = vbcast.lane.b32.xlu0 %v678, %s707
  %v709 = vpop.permute.xlu0 %708
  %s711 = sor.u32 256, 64
  %712 = vbcast.lane.b32.xlu0 %v678, %s711
  %v713 = vpop.permute.xlu0 %712
  %s715 = sor.u32 256, 72
  %716 = vbcast.lane.b32.xlu0 %v678, %s715
  %v717 = vpop.permute.xlu0 %716
  %s719 = sor.u32 256, 80
  %720 = vbcast.lane.b32.xlu0 %v678, %s719
  %v721 = vpop.permute.xlu0 %720
  %s723 = sor.u32 256, 88
  %724 = vbcast.lane.b32.xlu0 %v678, %s723
  %v725 = vpop.permute.xlu0 %724
  %s727 = sor.u32 256, 96
  %728 = vbcast.lane.b32.xlu0 %v678, %s727
  %v729 = vpop.permute.xlu0 %728
  %s731 = sor.u32 256, 104
  %732 = vbcast.lane.b32.xlu0 %v678, %s731
  %v733 = vpop.permute.xlu0 %732
  %s735 = sor.u32 256, 112
  %736 = vbcast.lane.b32.xlu0 %v678, %s735
  %v737 = vpop.permute.xlu0 %736
  %s739 = sor.u32 256, 120
  %740 = vbcast.lane.b32.xlu0 %v678, %s739
  %v741 = vpop.permute.xlu0 %740
  %v742 = vlaneseq
  %v743 = vshrl.u32 %v742, 7
  %v744 = vsub.s32 1, %v743
  %v745 = vrot.slane %v659, %v744
  %747 = vbcast.lane.b32.xlu0 %v745, 256
  %v748 = vpop.permute.xlu0 %747
  %s750 = sor.u32 256, 8
  %751 = vbcast.lane.b32.xlu0 %v745, %s750
  %v752 = vpop.permute.xlu0 %751
  %s754 = sor.u32 256, 16
  %755 = vbcast.lane.b32.xlu0 %v745, %s754
  %v756 = vpop.permute.xlu0 %755
  %s758 = sor.u32 256, 24
  %759 = vbcast.lane.b32.xlu0 %v745, %s758
  %v760 = vpop.permute.xlu0 %759
  %s762 = sor.u32 256, 32
  %763 = vbcast.lane.b32.xlu0 %v745, %s762
  %v764 = vpop.permute.xlu0 %763
  %s766 = sor.u32 256, 40
  %767 = vbcast.lane.b32.xlu0 %v745, %s766
  %v768 = vpop.permute.xlu0 %767
  %s770 = sor.u32 256, 48
  %771 = vbcast.lane.b32.xlu0 %v745, %s770
  %v772 = vpop.permute.xlu0 %771
  %s774 = sor.u32 256, 56
  %775 = vbcast.lane.b32.xlu0 %v745, %s774
  %v776 = vpop.permute.xlu0 %775
  %s778 = sor.u32 256, 64
  %779 = vbcast.lane.b32.xlu0 %v745, %s778
  %v780 = vpop.permute.xlu0 %779
  %s782 = sor.u32 256, 72
  %783 = vbcast.lane.b32.xlu0 %v745, %s782
  %v784 = vpop.permute.xlu0 %783
  %s786 = sor.u32 256, 80
  %787 = vbcast.lane.b32.xlu0 %v745, %s786
  %v788 = vpop.permute.xlu0 %787
  %s790 = sor.u32 256, 88
  %791 = vbcast.lane.b32.xlu0 %v745, %s790
  %v792 = vpop.permute.xlu0 %791
  %s794 = sor.u32 256, 96
  %795 = vbcast.lane.b32.xlu0 %v745, %s794
  %v796 = vpop.permute.xlu0 %795
  %s798 = sor.u32 256, 104
  %799 = vbcast.lane.b32.xlu0 %v745, %s798
  %v800 = vpop.permute.xlu0 %799
  %s802 = sor.u32 256, 112
  %803 = vbcast.lane.b32.xlu0 %v745, %s802
  %v804 = vpop.permute.xlu0 %803
  %s806 = sor.u32 256, 120
  %807 = vbcast.lane.b32.xlu0 %v745, %s806
  %v808 = vpop.permute.xlu0 %807
  %v809 = vlaneseq
  %v810 = vshrl.u32 %v809, 7
  %v811 = vsub.s32 2, %v810
  %v812 = vrot.slane %v659, %v811
  %814 = vbcast.lane.b32.xlu0 %v812, 256
  %v815 = vpop.permute.xlu0 %814
  %s817 = sor.u32 256, 8
  %818 = vbcast.lane.b32.xlu0 %v812, %s817
  %v819 = vpop.permute.xlu0 %818
  %s821 = sor.u32 256, 16
  %822 = vbcast.lane.b32.xlu0 %v812, %s821
  %v823 = vpop.permute.xlu0 %822
  %s825 = sor.u32 256, 24
  %826 = vbcast.lane.b32.xlu0 %v812, %s825
  %v827 = vpop.permute.xlu0 %826
  %s829 = sor.u32 256, 32
  %830 = vbcast.lane.b32.xlu0 %v812, %s829
  %v831 = vpop.permute.xlu0 %830
  %s833 = sor.u32 256, 40
  %834 = vbcast.lane.b32.xlu0 %v812, %s833
  %v835 = vpop.permute.xlu0 %834
  %s837 = sor.u32 256, 48
  %838 = vbcast.lane.b32.xlu0 %v812, %s837
  %v839 = vpop.permute.xlu0 %838
  %s841 = sor.u32 256, 56
  %842 = vbcast.lane.b32.xlu0 %v812, %s841
  %v843 = vpop.permute.xlu0 %842
  %s845 = sor.u32 256, 64
  %846 = vbcast.lane.b32.xlu0 %v812, %s845
  %v847 = vpop.permute.xlu0 %846
  %s849 = sor.u32 256, 72
  %850 = vbcast.lane.b32.xlu0 %v812, %s849
  %v851 = vpop.permute.xlu0 %850
  %s853 = sor.u32 256, 80
  %854 = vbcast.lane.b32.xlu0 %v812, %s853
  %v855 = vpop.permute.xlu0 %854
  %s857 = sor.u32 256, 88
  %858 = vbcast.lane.b32.xlu0 %v812, %s857
  %v859 = vpop.permute.xlu0 %858
  %s861 = sor.u32 256, 96
  %862 = vbcast.lane.b32.xlu0 %v812, %s861
  %v863 = vpop.permute.xlu0 %862
  %s865 = sor.u32 256, 104
  %866 = vbcast.lane.b32.xlu0 %v812, %s865
  %v867 = vpop.permute.xlu0 %866
  %s869 = sor.u32 256, 112
  %870 = vbcast.lane.b32.xlu0 %v812, %s869
  %v871 = vpop.permute.xlu0 %870
  %s873 = sor.u32 256, 120
  %874 = vbcast.lane.b32.xlu0 %v812, %s873
  %v875 = vpop.permute.xlu0 %874
  %v876 = vlaneseq
  %v877 = vshrl.u32 %v876, 7
  %v878 = vsub.s32 3, %v877
  %v879 = vrot.slane %v659, %v878
  %881 = vbcast.lane.b32.xlu0 %v879, 256
  %v882 = vpop.permute.xlu0 %881
  %s884 = sor.u32 256, 8
  %885 = vbcast.lane.b32.xlu0 %v879, %s884
  %v886 = vpop.permute.xlu0 %885
  %s888 = sor.u32 256, 16
  %889 = vbcast.lane.b32.xlu0 %v879, %s888
  %v890 = vpop.permute.xlu0 %889
  %s892 = sor.u32 256, 24
  %893 = vbcast.lane.b32.xlu0 %v879, %s892
  %v894 = vpop.permute.xlu0 %893
  %s896 = sor.u32 256, 32
  %897 = vbcast.lane.b32.xlu0 %v879, %s896
  %v898 = vpop.permute.xlu0 %897
  %s900 = sor.u32 256, 40
  %901 = vbcast.lane.b32.xlu0 %v879, %s900
  %v902 = vpop.permute.xlu0 %901
  %s904 = sor.u32 256, 48
  %905 = vbcast.lane.b32.xlu0 %v879, %s904
  %v906 = vpop.permute.xlu0 %905
  %s908 = sor.u32 256, 56
  %909 = vbcast.lane.b32.xlu0 %v879, %s908
  %v910 = vpop.permute.xlu0 %909
  %s912 = sor.u32 256, 64
  %913 = vbcast.lane.b32.xlu0 %v879, %s912
  %v914 = vpop.permute.xlu0 %913
  %s916 = sor.u32 256, 72
  %917 = vbcast.lane.b32.xlu0 %v879, %s916
  %v918 = vpop.permute.xlu0 %917
  %s920 = sor.u32 256, 80
  %921 = vbcast.lane.b32.xlu0 %v879, %s920
  %v922 = vpop.permute.xlu0 %921
  %s924 = sor.u32 256, 88
  %925 = vbcast.lane.b32.xlu0 %v879, %s924
  %v926 = vpop.permute.xlu0 %925
  %s928 = sor.u32 256, 96
  %929 = vbcast.lane.b32.xlu0 %v879, %s928
  %v930 = vpop.permute.xlu0 %929
  %s932 = sor.u32 256, 104
  %933 = vbcast.lane.b32.xlu0 %v879, %s932
  %v934 = vpop.permute.xlu0 %933
  %s936 = sor.u32 256, 112
  %937 = vbcast.lane.b32.xlu0 %v879, %s936
  %v938 = vpop.permute.xlu0 %937
  %s940 = sor.u32 256, 120
  %941 = vbcast.lane.b32.xlu0 %v879, %s940
  %v942 = vpop.permute.xlu0 %941
  %v943 = vlaneseq
  %v944 = vshrl.u32 %v943, 7
  %v945 = vsub.s32 4, %v944
  %v946 = vrot.slane %v659, %v945
  %948 = vbcast.lane.b32.xlu0 %v946, 256
  %v949 = vpop.permute.xlu0 %948
  %s951 = sor.u32 256, 8
  %952 = vbcast.lane.b32.xlu0 %v946, %s951
  %v953 = vpop.permute.xlu0 %952
  %s955 = sor.u32 256, 16
  %956 = vbcast.lane.b32.xlu0 %v946, %s955
  %v957 = vpop.permute.xlu0 %956
  %s959 = sor.u32 256, 24
  %960 = vbcast.lane.b32.xlu0 %v946, %s959
  %v961 = vpop.permute.xlu0 %960
  %s963 = sor.u32 256, 32
  %964 = vbcast.lane.b32.xlu0 %v946, %s963
  %v965 = vpop.permute.xlu0 %964
  %s967 = sor.u32 256, 40
  %968 = vbcast.lane.b32.xlu0 %v946, %s967
  %v969 = vpop.permute.xlu0 %968
  %s971 = sor.u32 256, 48
  %972 = vbcast.lane.b32.xlu0 %v946, %s971
  %v973 = vpop.permute.xlu0 %972
  %s975 = sor.u32 256, 56
  %976 = vbcast.lane.b32.xlu0 %v946, %s975
  %v977 = vpop.permute.xlu0 %976
  %s979 = sor.u32 256, 64
  %980 = vbcast.lane.b32.xlu0 %v946, %s979
  %v981 = vpop.permute.xlu0 %980
  %s983 = sor.u32 256, 72
  %984 = vbcast.lane.b32.xlu0 %v946, %s983
  %v985 = vpop.permute.xlu0 %984
  %s987 = sor.u32 256, 80
  %988 = vbcast.lane.b32.xlu0 %v946, %s987
  %v989 = vpop.permute.xlu0 %988
  %s991 = sor.u32 256, 88
  %992 = vbcast.lane.b32.xlu0 %v946, %s991
  %v993 = vpop.permute.xlu0 %992
  %s995 = sor.u32 256, 96
  %996 = vbcast.lane.b32.xlu0 %v946, %s995
  %v997 = vpop.permute.xlu0 %996
  %s999 = sor.u32 256, 104
  %1000 = vbcast.lane.b32.xlu0 %v946, %s999
  %v1001 = vpop.permute.xlu0 %1000
  %s1003 = sor.u32 256, 112
  %1004 = vbcast.lane.b32.xlu0 %v946, %s1003
  %v1005 = vpop.permute.xlu0 %1004
  %s1007 = sor.u32 256, 120
  %1008 = vbcast.lane.b32.xlu0 %v946, %s1007
  %v1009 = vpop.permute.xlu0 %1008
  %v1010 = vlaneseq
  %v1011 = vshrl.u32 %v1010, 7
  %v1012 = vsub.s32 5, %v1011
  %v1013 = vrot.slane %v659, %v1012
  %1015 = vbcast.lane.b32.xlu0 %v1013, 256
  %v1016 = vpop.permute.xlu0 %1015
  %s1018 = sor.u32 256, 8
  %1019 = vbcast.lane.b32.xlu0 %v1013, %s1018
  %v1020 = vpop.permute.xlu0 %1019
  %s1022 = sor.u32 256, 16
  %1023 = vbcast.lane.b32.xlu0 %v1013, %s1022
  %v1024 = vpop.permute.xlu0 %1023
  %s1026 = sor.u32 256, 24
  %1027 = vbcast.lane.b32.xlu0 %v1013, %s1026
  %v1028 = vpop.permute.xlu0 %1027
  %s1030 = sor.u32 256, 32
  %1031 = vbcast.lane.b32.xlu0 %v1013, %s1030
  %v1032 = vpop.permute.xlu0 %1031
  %s1034 = sor.u32 256, 40
  %1035 = vbcast.lane.b32.xlu0 %v1013, %s1034
  %v1036 = vpop.permute.xlu0 %1035
  %s1038 = sor.u32 256, 48
  %1039 = vbcast.lane.b32.xlu0 %v1013, %s1038
  %v1040 = vpop.permute.xlu0 %1039
  %s1042 = sor.u32 256, 56
  %1043 = vbcast.lane.b32.xlu0 %v1013, %s1042
  %v1044 = vpop.permute.xlu0 %1043
  %s1046 = sor.u32 256, 64
  %1047 = vbcast.lane.b32.xlu0 %v1013, %s1046
  %v1048 = vpop.permute.xlu0 %1047
  %s1050 = sor.u32 256, 72
  %1051 = vbcast.lane.b32.xlu0 %v1013, %s1050
  %v1052 = vpop.permute.xlu0 %1051
  %s1054 = sor.u32 256, 80
  %1055 = vbcast.lane.b32.xlu0 %v1013, %s1054
  %v1056 = vpop.permute.xlu0 %1055
  %s1058 = sor.u32 256, 88
  %1059 = vbcast.lane.b32.xlu0 %v1013, %s1058
  %v1060 = vpop.permute.xlu0 %1059
  %s1062 = sor.u32 256, 96
  %1063 = vbcast.lane.b32.xlu0 %v1013, %s1062
  %v1064 = vpop.permute.xlu0 %1063
  %s1066 = sor.u32 256, 104
  %1067 = vbcast.lane.b32.xlu0 %v1013, %s1066
  %v1068 = vpop.permute.xlu0 %1067
  %s1070 = sor.u32 256, 112
  %1071 = vbcast.lane.b32.xlu0 %v1013, %s1070
  %v1072 = vpop.permute.xlu0 %1071
  %s1074 = sor.u32 256, 120
  %1075 = vbcast.lane.b32.xlu0 %v1013, %s1074
  %v1076 = vpop.permute.xlu0 %1075
  %v1077 = vlaneseq
  %v1078 = vshrl.u32 %v1077, 7
  %v1079 = vsub.s32 6, %v1078
  %v1080 = vrot.slane %v659, %v1079
  %1082 = vbcast.lane.b32.xlu0 %v1080, 256
  %v1083 = vpop.permute.xlu0 %1082
  %s1085 = sor.u32 256, 8
  %1086 = vbcast.lane.b32.xlu0 %v1080, %s1085
  %v1087 = vpop.permute.xlu0 %1086
  %s1089 = sor.u32 256, 16
  %1090 = vbcast.lane.b32.xlu0 %v1080, %s1089
  %v1091 = vpop.permute.xlu0 %1090
  %s1093 = sor.u32 256, 24
  %1094 = vbcast.lane.b32.xlu0 %v1080, %s1093
  %v1095 = vpop.permute.xlu0 %1094
  %s1097 = sor.u32 256, 32
  %1098 = vbcast.lane.b32.xlu0 %v1080, %s1097
  %v1099 = vpop.permute.xlu0 %1098
  %s1101 = sor.u32 256, 40
  %1102 = vbcast.lane.b32.xlu0 %v1080, %s1101
  %v1103 = vpop.permute.xlu0 %1102
  %s1105 = sor.u32 256, 48
  %1106 = vbcast.lane.b32.xlu0 %v1080, %s1105
  %v1107 = vpop.permute.xlu0 %1106
  %s1109 = sor.u32 256, 56
  %1110 = vbcast.lane.b32.xlu0 %v1080, %s1109
  %v1111 = vpop.permute.xlu0 %1110
  %s1113 = sor.u32 256, 64
  %1114 = vbcast.lane.b32.xlu0 %v1080, %s1113
  %v1115 = vpop.permute.xlu0 %1114
  %s1117 = sor.u32 256, 72
  %1118 = vbcast.lane.b32.xlu0 %v1080, %s1117
  %v1119 = vpop.permute.xlu0 %1118
  %s1121 = sor.u32 256, 80
  %1122 = vbcast.lane.b32.xlu0 %v1080, %s1121
  %v1123 = vpop.permute.xlu0 %1122
  %s1125 = sor.u32 256, 88
  %1126 = vbcast.lane.b32.xlu0 %v1080, %s1125
  %v1127 = vpop.permute.xlu0 %1126
  %s1129 = sor.u32 256, 96
  %1130 = vbcast.lane.b32.xlu0 %v1080, %s1129
  %v1131 = vpop.permute.xlu0 %1130
  %s1133 = sor.u32 256, 104
  %1134 = vbcast.lane.b32.xlu0 %v1080, %s1133
  %v1135 = vpop.permute.xlu0 %1134
  %s1137 = sor.u32 256, 112
  %1138 = vbcast.lane.b32.xlu0 %v1080, %s1137
  %v1139 = vpop.permute.xlu0 %1138
  %s1141 = sor.u32 256, 120
  %1142 = vbcast.lane.b32.xlu0 %v1080, %s1141
  %v1143 = vpop.permute.xlu0 %1142
  %v1144 = vlaneseq
  %v1145 = vshrl.u32 %v1144, 7
  %v1146 = vsub.s32 7, %v1145
  %v1147 = vrot.slane %v659, %v1146
  %1149 = vbcast.lane.b32.xlu0 %v1147, 256
  %v1150 = vpop.permute.xlu0 %1149
  %s1152 = sor.u32 256, 8
  %1153 = vbcast.lane.b32.xlu0 %v1147, %s1152
  %v1154 = vpop.permute.xlu0 %1153
  %s1156 = sor.u32 256, 16
  %1157 = vbcast.lane.b32.xlu0 %v1147, %s1156
  %v1158 = vpop.permute.xlu0 %1157
  %s1160 = sor.u32 256, 24
  %1161 = vbcast.lane.b32.xlu0 %v1147, %s1160
  %v1162 = vpop.permute.xlu0 %1161
  %s1164 = sor.u32 256, 32
  %1165 = vbcast.lane.b32.xlu0 %v1147, %s1164
  %v1166 = vpop.permute.xlu0 %1165
  %s1168 = sor.u32 256, 40
  %1169 = vbcast.lane.b32.xlu0 %v1147, %s1168
  %v1170 = vpop.permute.xlu0 %1169
  %s1172 = sor.u32 256, 48
  %1173 = vbcast.lane.b32.xlu0 %v1147, %s1172
  %v1174 = vpop.permute.xlu0 %1173
  %s1176 = sor.u32 256, 56
  %1177 = vbcast.lane.b32.xlu0 %v1147, %s1176
  %v1178 = vpop.permute.xlu0 %1177
  %s1180 = sor.u32 256, 64
  %1181 = vbcast.lane.b32.xlu0 %v1147, %s1180
  %v1182 = vpop.permute.xlu0 %1181
  %s1184 = sor.u32 256, 72
  %1185 = vbcast.lane.b32.xlu0 %v1147, %s1184
  %v1186 = vpop.permute.xlu0 %1185
  %s1188 = sor.u32 256, 80
  %1189 = vbcast.lane.b32.xlu0 %v1147, %s1188
  %v1190 = vpop.permute.xlu0 %1189
  %s1192 = sor.u32 256, 88
  %1193 = vbcast.lane.b32.xlu0 %v1147, %s1192
  %v1194 = vpop.permute.xlu0 %1193
  %s1196 = sor.u32 256, 96
  %1197 = vbcast.lane.b32.xlu0 %v1147, %s1196
  %v1198 = vpop.permute.xlu0 %1197
  %s1200 = sor.u32 256, 104
  %1201 = vbcast.lane.b32.xlu0 %v1147, %s1200
  %v1202 = vpop.permute.xlu0 %1201
  %s1204 = sor.u32 256, 112
  %1205 = vbcast.lane.b32.xlu0 %v1147, %s1204
  %v1206 = vpop.permute.xlu0 %1205
  %s1208 = sor.u32 256, 120
  %1209 = vbcast.lane.b32.xlu0 %v1147, %s1208
  %v1210 = vpop.permute.xlu0 %1209
  %1211 = vxpose.xlu0.b32.start [1/16] %v404, 128
  %1212 = vxpose.xlu0.b32.cont [2/16] %v409, 128
  %1213 = vxpose.xlu0.b32.cont [3/16] %v414, 128
  %1214 = vxpose.xlu0.b32.cont [4/16] %v419, 128
  %1215 = vxpose.xlu0.b32.cont [5/16] %v424, 128
  %1216 = vxpose.xlu0.b32.cont [6/16] %v429, 128
  %1217 = vxpose.xlu0.b32.cont [7/16] %v434, 128
  %1218 = vxpose.xlu0.b32.cont [8/16] %v439, 128
  %1219 = vxpose.xlu0.b32.cont [9/16] %v444, 128
  %1220 = vxpose.xlu0.b32.cont [10/16] %v449, 128
  %1221 = vxpose.xlu0.b32.cont [11/16] %v454, 128
  %1222 = vxpose.xlu0.b32.cont [12/16] %v459, 128
  %1223 = vxpose.xlu0.b32.cont [13/16] %v464, 128
  %1224 = vxpose.xlu0.b32.cont [14/16] %v469, 128
  %1225 = vxpose.xlu0.b32.cont [15/16] %v474, 128
  %1226 = vxpose.xlu0.b32.end [16/16] %v479, 128
  %v1227 = vpop.trf.xlu0
  %v1228 = vpop.trf.xlu0
  %v1229 = vpop.trf.xlu0
  %v1230 = vpop.trf.xlu0
  %v1231 = vpop.trf.xlu0
  %v1232 = vpop.trf.xlu0
  %v1233 = vpop.trf.xlu0
  %v1234 = vpop.trf.xlu0
  %v1235 = vpop.trf.xlu0
  %v1236 = vpop.trf.xlu0
  %v1237 = vpop.trf.xlu0
  %v1238 = vpop.trf.xlu0
  %v1239 = vpop.trf.xlu0
  %v1240 = vpop.trf.xlu0
  %v1241 = vpop.trf.xlu0
  %v1242 = vpop.trf.xlu0
  %v1244 = vcombine.high %v1227, %v1227
  %v1246 = vunpack.c.l.s4 1966171168
  %v1247 = vunpack.c.0.s8 %v1246
  %v1248 = vlaneseq
  %v1249 = vshrl.u32 %v1248, 7
  %v1250 = vsub.s32 %v1247, %v1249
  %v1251 = vrot.slane %v1227, %v1250
  %v1253 = vunpack.c.l.s4 1966171168
  %v1254 = vunpack.c.0.s8 %v1253
  %v1255 = vlaneseq
  %v1256 = vshrl.u32 %v1255, 7
  %v1257 = vsub.s32 %v1254, %v1256
  %v1258 = vrot.slane %v1244, %v1257
  %v1259 = vcombine.high %v1251, %v1251
  %v1260 = vcombine.high %v1258, %v1258
  %v1262 = vunpack.c.l.s4 1966171168
  %v1263 = vunpack.c.0.s8 %v1262
  %v1264 = vlaneseq
  %v1265 = vshrl.u32 %v1264, 7
  %v1266 = vsub.s32 %v1263, %v1265
  %v1267 = vrot.slane %v1251, %v1266
  %v1269 = vunpack.c.l.s4 1966171168
  %v1270 = vunpack.c.0.s8 %v1269
  %v1271 = vlaneseq
  %v1272 = vshrl.u32 %v1271, 7
  %v1273 = vsub.s32 %v1270, %v1272
  %v1274 = vrot.slane %v1258, %v1273
  %v1276 = vunpack.c.l.s4 1966171168
  %v1277 = vunpack.c.0.s8 %v1276
  %v1278 = vlaneseq
  %v1279 = vshrl.u32 %v1278, 7
  %v1280 = vsub.s32 %v1277, %v1279
  %v1281 = vrot.slane %v1259, %v1280
  %v1283 = vunpack.c.l.s4 1966171168
  %v1284 = vunpack.c.0.s8 %v1283
  %v1285 = vlaneseq
  %v1286 = vshrl.u32 %v1285, 7
  %v1287 = vsub.s32 %v1284, %v1286
  %v1288 = vrot.slane %v1260, %v1287
  %v1289 = vcombine.high %v1267, %v1267
  %v1290 = vcombine.high %v1274, %v1274
  %v1291 = vcombine.high %v1281, %v1281
  %v1292 = vcombine.high %v1288, %v1288
  %v1293 = vlaneseq
  %v1294 = vshrl.u32 %v1293, 7
  %v1295 = vsub.s32 0, %v1294
  %v1296 = vrot.slane %v1267, %v1295
  %v1297 = vlaneseq
  %v1298 = vshrl.u32 %v1297, 7
  %v1299 = vsub.s32 0, %v1298
  %v1300 = vrot.slane %v1281, %v1299
  %v1301 = vlaneseq
  %v1302 = vshrl.u32 %v1301, 7
  %v1303 = vsub.s32 0, %v1302
  %v1304 = vrot.slane %v1289, %v1303
  %v1305 = vlaneseq
  %v1306 = vshrl.u32 %v1305, 7
  %v1307 = vsub.s32 0, %v1306
  %v1308 = vrot.slane %v1291, %v1307
  %v1309 = vlaneseq
  %v1310 = vshrl.u32 %v1309, 7
  %v1311 = vsub.s32 0, %v1310
  %v1312 = vrot.slane %v1274, %v1311
  %v1313 = vlaneseq
  %v1314 = vshrl.u32 %v1313, 7
  %v1315 = vsub.s32 0, %v1314
  %v1316 = vrot.slane %v1288, %v1315
  %v1317 = vlaneseq
  %v1318 = vshrl.u32 %v1317, 7
  %v1319 = vsub.s32 0, %v1318
  %v1320 = vrot.slane %v1290, %v1319
  %v1321 = vlaneseq
  %v1322 = vshrl.u32 %v1321, 7
  %v1323 = vsub.s32 0, %v1322
  %v1324 = vrot.slane %v1292, %v1323
  %v1333 = vadd.f32 %v681, %v1296
  %v1334 = vadd.f32 %v685, %v1296
  %v1335 = vadd.f32 %v689, %v1296
  %v1336 = vadd.f32 %v693, %v1296
  %v1337 = vadd.f32 %v697, %v1296
  %v1338 = vadd.f32 %v701, %v1296
  %v1339 = vadd.f32 %v705, %v1296
  %v1340 = vadd.f32 %v709, %v1296
  %v1341 = vadd.f32 %v713, %v1296
  %v1342 = vadd.f32 %v717, %v1296
  %v1343 = vadd.f32 %v721, %v1296
  %v1344 = vadd.f32 %v725, %v1296
  %v1345 = vadd.f32 %v729, %v1296
  %v1346 = vadd.f32 %v733, %v1296
  %v1347 = vadd.f32 %v737, %v1296
  %v1348 = vadd.f32 %v741, %v1296
  %v1349 = vadd.f32 %v748, %v1300
  %v1350 = vadd.f32 %v752, %v1300
  %v1351 = vadd.f32 %v756, %v1300
  %v1352 = vadd.f32 %v760, %v1300
  %v1353 = vadd.f32 %v764, %v1300
  %v1354 = vadd.f32 %v768, %v1300
  %v1355 = vadd.f32 %v772, %v1300
  %v1356 = vadd.f32 %v776, %v1300
  %v1357 = vadd.f32 %v780, %v1300
  %v1358 = vadd.f32 %v784, %v1300
  %v1359 = vadd.f32 %v788, %v1300
  %v1360 = vadd.f32 %v792, %v1300
  %v1361 = vadd.f32 %v796, %v1300
  %v1362 = vadd.f32 %v800, %v1300
  %v1363 = vadd.f32 %v804, %v1300
  %v1364 = vadd.f32 %v808, %v1300
  %v1365 = vadd.f32 %v815, %v1304
  %v1366 = vadd.f32 %v819, %v1304
  %v1367 = vadd.f32 %v823, %v1304
  %v1368 = vadd.f32 %v827, %v1304
  %v1369 = vadd.f32 %v831, %v1304
  %v1370 = vadd.f32 %v835, %v1304
  %v1371 = vadd.f32 %v839, %v1304
  %v1372 = vadd.f32 %v843, %v1304
  %v1373 = vadd.f32 %v847, %v1304
  %v1374 = vadd.f32 %v851, %v1304
  %v1375 = vadd.f32 %v855, %v1304
  %v1376 = vadd.f32 %v859, %v1304
  %v1377 = vadd.f32 %v863, %v1304
  %v1378 = vadd.f32 %v867, %v1304
  %v1379 = vadd.f32 %v871, %v1304
  %v1380 = vadd.f32 %v875, %v1304
  %v1381 = vadd.f32 %v882, %v1308
  %v1382 = vadd.f32 %v886, %v1308
  %v1383 = vadd.f32 %v890, %v1308
  %v1384 = vadd.f32 %v894, %v1308
  %v1385 = vadd.f32 %v898, %v1308
  %v1386 = vadd.f32 %v902, %v1308
  %v1387 = vadd.f32 %v906, %v1308
  %v1388 = vadd.f32 %v910, %v1308
  %v1389 = vadd.f32 %v914, %v1308
  %v1390 = vadd.f32 %v918, %v1308
  %v1391 = vadd.f32 %v922, %v1308
  %v1392 = vadd.f32 %v926, %v1308
  %v1393 = vadd.f32 %v930, %v1308
  %v1394 = vadd.f32 %v934, %v1308
  %v1395 = vadd.f32 %v938, %v1308
  %v1396 = vadd.f32 %v942, %v1308
  %v1397 = vadd.f32 %v949, %v1312
  %v1398 = vadd.f32 %v953, %v1312
  %v1399 = vadd.f32 %v957, %v1312
  %v1400 = vadd.f32 %v961, %v1312
  %v1401 = vadd.f32 %v965, %v1312
  %v1402 = vadd.f32 %v969, %v1312
  %v1403 = vadd.f32 %v973, %v1312
  %v1404 = vadd.f32 %v977, %v1312
  %v1405 = vadd.f32 %v981, %v1312
  %v1406 = vadd.f32 %v985, %v1312
  %v1407 = vadd.f32 %v989, %v1312
  %v1408 = vadd.f32 %v993, %v1312
  %v1409 = vadd.f32 %v997, %v1312
  %v1410 = vadd.f32 %v1001, %v1312
  %v1411 = vadd.f32 %v1005, %v1312
  %v1412 = vadd.f32 %v1009, %v1312
  %v1413 = vadd.f32 %v1016, %v1316
  %v1414 = vadd.f32 %v1020, %v1316
  %v1415 = vadd.f32 %v1024, %v1316
  %v1416 = vadd.f32 %v1028, %v1316
  %v1417 = vadd.f32 %v1032, %v1316
  %v1418 = vadd.f32 %v1036, %v1316
  %v1419 = vadd.f32 %v1040, %v1316
  %v1420 = vadd.f32 %v1044, %v1316
  %v1421 = vadd.f32 %v1048, %v1316
  %v1422 = vadd.f32 %v1052, %v1316
  %v1423 = vadd.f32 %v1056, %v1316
  %v1424 = vadd.f32 %v1060, %v1316
  %v1425 = vadd.f32 %v1064, %v1316
  %v1426 = vadd.f32 %v1068, %v1316
  %v1427 = vadd.f32 %v1072, %v1316
  %v1428 = vadd.f32 %v1076, %v1316
  %v1429 = vadd.f32 %v1083, %v1320
  %v1430 = vadd.f32 %v1087, %v1320
  %v1431 = vadd.f32 %v1091, %v1320
  %v1432 = vadd.f32 %v1095, %v1320
  %v1433 = vadd.f32 %v1099, %v1320
  %v1434 = vadd.f32 %v1103, %v1320
  %v1435 = vadd.f32 %v1107, %v1320
  %v1436 = vadd.f32 %v1111, %v1320
  %v1437 = vadd.f32 %v1115, %v1320
  %v1438 = vadd.f32 %v1119, %v1320
  %v1439 = vadd.f32 %v1123, %v1320
  %v1440 = vadd.f32 %v1127, %v1320
  %v1441 = vadd.f32 %v1131, %v1320
  %v1442 = vadd.f32 %v1135, %v1320
  %v1443 = vadd.f32 %v1139, %v1320
  %v1444 = vadd.f32 %v1143, %v1320
  %v1445 = vadd.f32 %v1150, %v1324
  %v1446 = vadd.f32 %v1154, %v1324
  %v1447 = vadd.f32 %v1158, %v1324
  %v1448 = vadd.f32 %v1162, %v1324
  %v1449 = vadd.f32 %v1166, %v1324
  %v1450 = vadd.f32 %v1170, %v1324
  %v1451 = vadd.f32 %v1174, %v1324
  %v1452 = vadd.f32 %v1178, %v1324
  %v1453 = vadd.f32 %v1182, %v1324
  %v1454 = vadd.f32 %v1186, %v1324
  %v1455 = vadd.f32 %v1190, %v1324
  %v1456 = vadd.f32 %v1194, %v1324
  %v1457 = vadd.f32 %v1198, %v1324
  %v1458 = vadd.f32 %v1202, %v1324
  %v1459 = vadd.f32 %v1206, %v1324
  %v1460 = vadd.f32 %v1210, %v1324
  %vm1461 = vcmp.gt.f32.partialorder %v1333, 0.0
  %vm1462 = vcmp.gt.f32.partialorder %v1334, 0.0
  %vm1463 = vcmp.gt.f32.partialorder %v1335, 0.0
  %vm1464 = vcmp.gt.f32.partialorder %v1336, 0.0
  %vm1465 = vcmp.gt.f32.partialorder %v1337, 0.0
  %vm1466 = vcmp.gt.f32.partialorder %v1338, 0.0
  %vm1467 = vcmp.gt.f32.partialorder %v1339, 0.0
  %vm1468 = vcmp.gt.f32.partialorder %v1340, 0.0
  %vm1469 = vcmp.gt.f32.partialorder %v1341, 0.0
  %vm1470 = vcmp.gt.f32.partialorder %v1342, 0.0
  %vm1471 = vcmp.gt.f32.partialorder %v1343, 0.0
  %vm1472 = vcmp.gt.f32.partialorder %v1344, 0.0
  %vm1473 = vcmp.gt.f32.partialorder %v1345, 0.0
  %vm1474 = vcmp.gt.f32.partialorder %v1346, 0.0
  %vm1475 = vcmp.gt.f32.partialorder %v1347, 0.0
  %vm1476 = vcmp.gt.f32.partialorder %v1348, 0.0
  %vm1477 = vcmp.gt.f32.partialorder %v1349, 0.0
  %vm1478 = vcmp.gt.f32.partialorder %v1350, 0.0
  %vm1479 = vcmp.gt.f32.partialorder %v1351, 0.0
  %vm1480 = vcmp.gt.f32.partialorder %v1352, 0.0
  %vm1481 = vcmp.gt.f32.partialorder %v1353, 0.0
  %vm1482 = vcmp.gt.f32.partialorder %v1354, 0.0
  %vm1483 = vcmp.gt.f32.partialorder %v1355, 0.0
  %vm1484 = vcmp.gt.f32.partialorder %v1356, 0.0
  %vm1485 = vcmp.gt.f32.partialorder %v1357, 0.0
  %vm1486 = vcmp.gt.f32.partialorder %v1358, 0.0
  %vm1487 = vcmp.gt.f32.partialorder %v1359, 0.0
  %vm1488 = vcmp.gt.f32.partialorder %v1360, 0.0
  %vm1489 = vcmp.gt.f32.partialorder %v1361, 0.0
  %vm1490 = vcmp.gt.f32.partialorder %v1362, 0.0
  %vm1491 = vcmp.gt.f32.partialorder %v1363, 0.0
  %vm1492 = vcmp.gt.f32.partialorder %v1364, 0.0
  %vm1493 = vcmp.gt.f32.partialorder %v1365, 0.0
  %vm1494 = vcmp.gt.f32.partialorder %v1366, 0.0
  %vm1495 = vcmp.gt.f32.partialorder %v1367, 0.0
  %vm1496 = vcmp.gt.f32.partialorder %v1368, 0.0
  %vm1497 = vcmp.gt.f32.partialorder %v1369, 0.0
  %vm1498 = vcmp.gt.f32.partialorder %v1370, 0.0
  %vm1499 = vcmp.gt.f32.partialorder %v1371, 0.0
  %vm1500 = vcmp.gt.f32.partialorder %v1372, 0.0
  %vm1501 = vcmp.gt.f32.partialorder %v1373, 0.0
  %vm1502 = vcmp.gt.f32.partialorder %v1374, 0.0
  %vm1503 = vcmp.gt.f32.partialorder %v1375, 0.0
  %vm1504 = vcmp.gt.f32.partialorder %v1376, 0.0
  %vm1505 = vcmp.gt.f32.partialorder %v1377, 0.0
  %vm1506 = vcmp.gt.f32.partialorder %v1378, 0.0
  %vm1507 = vcmp.gt.f32.partialorder %v1379, 0.0
  %vm1508 = vcmp.gt.f32.partialorder %v1380, 0.0
  %vm1509 = vcmp.gt.f32.partialorder %v1381, 0.0
  %vm1510 = vcmp.gt.f32.partialorder %v1382, 0.0
  %vm1511 = vcmp.gt.f32.partialorder %v1383, 0.0
  %vm1512 = vcmp.gt.f32.partialorder %v1384, 0.0
  %vm1513 = vcmp.gt.f32.partialorder %v1385, 0.0
  %vm1514 = vcmp.gt.f32.partialorder %v1386, 0.0
  %vm1515 = vcmp.gt.f32.partialorder %v1387, 0.0
  %vm1516 = vcmp.gt.f32.partialorder %v1388, 0.0
  %vm1517 = vcmp.gt.f32.partialorder %v1389, 0.0
  %vm1518 = vcmp.gt.f32.partialorder %v1390, 0.0
  %vm1519 = vcmp.gt.f32.partialorder %v1391, 0.0
  %vm1520 = vcmp.gt.f32.partialorder %v1392, 0.0
  %vm1521 = vcmp.gt.f32.partialorder %v1393, 0.0
  %vm1522 = vcmp.gt.f32.partialorder %v1394, 0.0
  %vm1523 = vcmp.gt.f32.partialorder %v1395, 0.0
  %vm1524 = vcmp.gt.f32.partialorder %v1396, 0.0
  %vm1525 = vcmp.gt.f32.partialorder %v1397, 0.0
  %vm1526 = vcmp.gt.f32.partialorder %v1398, 0.0
  %vm1527 = vcmp.gt.f32.partialorder %v1399, 0.0
  %vm1528 = vcmp.gt.f32.partialorder %v1400, 0.0
  %vm1529 = vcmp.gt.f32.partialorder %v1401, 0.0
  %vm1530 = vcmp.gt.f32.partialorder %v1402, 0.0
  %vm1531 = vcmp.gt.f32.partialorder %v1403, 0.0
  %vm1532 = vcmp.gt.f32.partialorder %v1404, 0.0
  %vm1533 = vcmp.gt.f32.partialorder %v1405, 0.0
  %vm1534 = vcmp.gt.f32.partialorder %v1406, 0.0
  %vm1535 = vcmp.gt.f32.partialorder %v1407, 0.0
  %vm1536 = vcmp.gt.f32.partialorder %v1408, 0.0
  %vm1537 = vcmp.gt.f32.partialorder %v1409, 0.0
  %vm1538 = vcmp.gt.f32.partialorder %v1410, 0.0
  %vm1539 = vcmp.gt.f32.partialorder %v1411, 0.0
  %vm1540 = vcmp.gt.f32.partialorder %v1412, 0.0
  %vm1541 = vcmp.gt.f32.partialorder %v1413, 0.0
  %vm1542 = vcmp.gt.f32.partialorder %v1414, 0.0
  %vm1543 = vcmp.gt.f32.partialorder %v1415, 0.0
  %vm1544 = vcmp.gt.f32.partialorder %v1416, 0.0
  %vm1545 = vcmp.gt.f32.partialorder %v1417, 0.0
  %vm1546 = vcmp.gt.f32.partialorder %v1418, 0.0
  %vm1547 = vcmp.gt.f32.partialorder %v1419, 0.0
  %vm1548 = vcmp.gt.f32.partialorder %v1420, 0.0
  %vm1549 = vcmp.gt.f32.partialorder %v1421, 0.0
  %vm1550 = vcmp.gt.f32.partialorder %v1422, 0.0
  %vm1551 = vcmp.gt.f32.partialorder %v1423, 0.0
  %vm1552 = vcmp.gt.f32.partialorder %v1424, 0.0
  %vm1553 = vcmp.gt.f32.partialorder %v1425, 0.0
  %vm1554 = vcmp.gt.f32.partialorder %v1426, 0.0
  %vm1555 = vcmp.gt.f32.partialorder %v1427, 0.0
  %vm1556 = vcmp.gt.f32.partialorder %v1428, 0.0
  %vm1557 = vcmp.gt.f32.partialorder %v1429, 0.0
  %vm1558 = vcmp.gt.f32.partialorder %v1430, 0.0
  %vm1559 = vcmp.gt.f32.partialorder %v1431, 0.0
  %vm1560 = vcmp.gt.f32.partialorder %v1432, 0.0
  %vm1561 = vcmp.gt.f32.partialorder %v1433, 0.0
  %vm1562 = vcmp.gt.f32.partialorder %v1434, 0.0
  %vm1563 = vcmp.gt.f32.partialorder %v1435, 0.0
  %vm1564 = vcmp.gt.f32.partialorder %v1436, 0.0
  %vm1565 = vcmp.gt.f32.partialorder %v1437, 0.0
  %vm1566 = vcmp.gt.f32.partialorder %v1438, 0.0
  %vm1567 = vcmp.gt.f32.partialorder %v1439, 0.0
  %vm1568 = vcmp.gt.f32.partialorder %v1440, 0.0
  %vm1569 = vcmp.gt.f32.partialorder %v1441, 0.0
  %vm1570 = vcmp.gt.f32.partialorder %v1442, 0.0
  %vm1571 = vcmp.gt.f32.partialorder %v1443, 0.0
  %vm1572 = vcmp.gt.f32.partialorder %v1444, 0.0
  %vm1573 = vcmp.gt.f32.partialorder %v1445, 0.0
  %vm1574 = vcmp.gt.f32.partialorder %v1446, 0.0
  %vm1575 = vcmp.gt.f32.partialorder %v1447, 0.0
  %vm1576 = vcmp.gt.f32.partialorder %v1448, 0.0
  %vm1577 = vcmp.gt.f32.partialorder %v1449, 0.0
  %vm1578 = vcmp.gt.f32.partialorder %v1450, 0.0
  %vm1579 = vcmp.gt.f32.partialorder %v1451, 0.0
  %vm1580 = vcmp.gt.f32.partialorder %v1452, 0.0
  %vm1581 = vcmp.gt.f32.partialorder %v1453, 0.0
  %vm1582 = vcmp.gt.f32.partialorder %v1454, 0.0
  %vm1583 = vcmp.gt.f32.partialorder %v1455, 0.0
  %vm1584 = vcmp.gt.f32.partialorder %v1456, 0.0
  %vm1585 = vcmp.gt.f32.partialorder %v1457, 0.0
  %vm1586 = vcmp.gt.f32.partialorder %v1458, 0.0
  %vm1587 = vcmp.gt.f32.partialorder %v1459, 0.0
  %vm1588 = vcmp.gt.f32.partialorder %v1460, 0.0
  %v1589 = vmul.f32 %v1333, 0.2
  %v1590 = vmul.f32 %v1334, 0.2
  %v1591 = vmul.f32 %v1335, 0.2
  %v1592 = vmul.f32 %v1336, 0.2
  %v1593 = vmul.f32 %v1337, 0.2
  %v1594 = vmul.f32 %v1338, 0.2
  %v1595 = vmul.f32 %v1339, 0.2
  %v1596 = vmul.f32 %v1340, 0.2
  %v1597 = vmul.f32 %v1341, 0.2
  %v1598 = vmul.f32 %v1342, 0.2
  %v1599 = vmul.f32 %v1343, 0.2
  %v1600 = vmul.f32 %v1344, 0.2
  %v1601 = vmul.f32 %v1345, 0.2
  %v1602 = vmul.f32 %v1346, 0.2
  %v1603 = vmul.f32 %v1347, 0.2
  %v1604 = vmul.f32 %v1348, 0.2
  %v1605 = vmul.f32 %v1349, 0.2
  %v1606 = vmul.f32 %v1350, 0.2
  %v1607 = vmul.f32 %v1351, 0.2
  %v1608 = vmul.f32 %v1352, 0.2
  %v1609 = vmul.f32 %v1353, 0.2
  %v1610 = vmul.f32 %v1354, 0.2
  %v1611 = vmul.f32 %v1355, 0.2
  %v1612 = vmul.f32 %v1356, 0.2
  %v1613 = vmul.f32 %v1357, 0.2
  %v1614 = vmul.f32 %v1358, 0.2
  %v1615 = vmul.f32 %v1359, 0.2
  %v1616 = vmul.f32 %v1360, 0.2
  %v1617 = vmul.f32 %v1361, 0.2
  %v1618 = vmul.f32 %v1362, 0.2
  %v1619 = vmul.f32 %v1363, 0.2
  %v1620 = vmul.f32 %v1364, 0.2
  %v1621 = vmul.f32 %v1365, 0.2
  %v1622 = vmul.f32 %v1366, 0.2
  %v1623 = vmul.f32 %v1367, 0.2
  %v1624 = vmul.f32 %v1368, 0.2
  %v1625 = vmul.f32 %v1369, 0.2
  %v1626 = vmul.f32 %v1370, 0.2
  %v1627 = vmul.f32 %v1371, 0.2
  %v1628 = vmul.f32 %v1372, 0.2
  %v1629 = vmul.f32 %v1373, 0.2
  %v1630 = vmul.f32 %v1374, 0.2
  %v1631 = vmul.f32 %v1375, 0.2
  %v1632 = vmul.f32 %v1376, 0.2
  %v1633 = vmul.f32 %v1377, 0.2
  %v1634 = vmul.f32 %v1378, 0.2
  %v1635 = vmul.f32 %v1379, 0.2
  %v1636 = vmul.f32 %v1380, 0.2
  %v1637 = vmul.f32 %v1381, 0.2
  %v1638 = vmul.f32 %v1382, 0.2
  %v1639 = vmul.f32 %v1383, 0.2
  %v1640 = vmul.f32 %v1384, 0.2
  %v1641 = vmul.f32 %v1385, 0.2
  %v1642 = vmul.f32 %v1386, 0.2
  %v1643 = vmul.f32 %v1387, 0.2
  %v1644 = vmul.f32 %v1388, 0.2
  %v1645 = vmul.f32 %v1389, 0.2
  %v1646 = vmul.f32 %v1390, 0.2
  %v1647 = vmul.f32 %v1391, 0.2
  %v1648 = vmul.f32 %v1392, 0.2
  %v1649 = vmul.f32 %v1393, 0.2
  %v1650 = vmul.f32 %v1394, 0.2
  %v1651 = vmul.f32 %v1395, 0.2
  %v1652 = vmul.f32 %v1396, 0.2
  %v1653 = vmul.f32 %v1397, 0.2
  %v1654 = vmul.f32 %v1398, 0.2
  %v1655 = vmul.f32 %v1399, 0.2
  %v1656 = vmul.f32 %v1400, 0.2
  %v1657 = vmul.f32 %v1401, 0.2
  %v1658 = vmul.f32 %v1402, 0.2
  %v1659 = vmul.f32 %v1403, 0.2
  %v1660 = vmul.f32 %v1404, 0.2
  %v1661 = vmul.f32 %v1405, 0.2
  %v1662 = vmul.f32 %v1406, 0.2
  %v1663 = vmul.f32 %v1407, 0.2
  %v1664 = vmul.f32 %v1408, 0.2
  %v1665 = vmul.f32 %v1409, 0.2
  %v1666 = vmul.f32 %v1410, 0.2
  %v1667 = vmul.f32 %v1411, 0.2
  %v1668 = vmul.f32 %v1412, 0.2
  %v1669 = vmul.f32 %v1413, 0.2
  %v1670 = vmul.f32 %v1414, 0.2
  %v1671 = vmul.f32 %v1415, 0.2
  %v1672 = vmul.f32 %v1416, 0.2
  %v1673 = vmul.f32 %v1417, 0.2
  %v1674 = vmul.f32 %v1418, 0.2
  %v1675 = vmul.f32 %v1419, 0.2
  %v1676 = vmul.f32 %v1420, 0.2
  %v1677 = vmul.f32 %v1421, 0.2
  %v1678 = vmul.f32 %v1422, 0.2
  %v1679 = vmul.f32 %v1423, 0.2
  %v1680 = vmul.f32 %v1424, 0.2
  %v1681 = vmul.f32 %v1425, 0.2
  %v1682 = vmul.f32 %v1426, 0.2
  %v1683 = vmul.f32 %v1427, 0.2
  %v1684 = vmul.f32 %v1428, 0.2
  %v1685 = vmul.f32 %v1429, 0.2
  %v1686 = vmul.f32 %v1430, 0.2
  %v1687 = vmul.f32 %v1431, 0.2
  %v1688 = vmul.f32 %v1432, 0.2
  %v1689 = vmul.f32 %v1433, 0.2
  %v1690 = vmul.f32 %v1434, 0.2
  %v1691 = vmul.f32 %v1435, 0.2
  %v1692 = vmul.f32 %v1436, 0.2
  %v1693 = vmul.f32 %v1437, 0.2
  %v1694 = vmul.f32 %v1438, 0.2
  %v1695 = vmul.f32 %v1439, 0.2
  %v1696 = vmul.f32 %v1440, 0.2
  %v1697 = vmul.f32 %v1441, 0.2
  %v1698 = vmul.f32 %v1442, 0.2
  %v1699 = vmul.f32 %v1443, 0.2
  %v1700 = vmul.f32 %v1444, 0.2
  %v1701 = vmul.f32 %v1445, 0.2
  %v1702 = vmul.f32 %v1446, 0.2
  %v1703 = vmul.f32 %v1447, 0.2
  %v1704 = vmul.f32 %v1448, 0.2
  %v1705 = vmul.f32 %v1449, 0.2
  %v1706 = vmul.f32 %v1450, 0.2
  %v1707 = vmul.f32 %v1451, 0.2
  %v1708 = vmul.f32 %v1452, 0.2
  %v1709 = vmul.f32 %v1453, 0.2
  %v1710 = vmul.f32 %v1454, 0.2
  %v1711 = vmul.f32 %v1455, 0.2
  %v1712 = vmul.f32 %v1456, 0.2
  %v1713 = vmul.f32 %v1457, 0.2
  %v1714 = vmul.f32 %v1458, 0.2
  %v1715 = vmul.f32 %v1459, 0.2
  %v1716 = vmul.f32 %v1460, 0.2
  %v1717 = vsel %vm1461, %v1333, %v1589
  %v1718 = vsel %vm1462, %v1334, %v1590
  %v1719 = vsel %vm1463, %v1335, %v1591
  %v1720 = vsel %vm1464, %v1336, %v1592
  %v1721 = vsel %vm1465, %v1337, %v1593
  %v1722 = vsel %vm1466, %v1338, %v1594
  %v1723 = vsel %vm1467, %v1339, %v1595
  %v1724 = vsel %vm1468, %v1340, %v1596
  %v1725 = vsel %vm1469, %v1341, %v1597
  %v1726 = vsel %vm1470, %v1342, %v1598
  %v1727 = vsel %vm1471, %v1343, %v1599
  %v1728 = vsel %vm1472, %v1344, %v1600
  %v1729 = vsel %vm1473, %v1345, %v1601
  %v1730 = vsel %vm1474, %v1346, %v1602
  %v1731 = vsel %vm1475, %v1347, %v1603
  %v1732 = vsel %vm1476, %v1348, %v1604
  %v1733 = vsel %vm1477, %v1349, %v1605
  %v1734 = vsel %vm1478, %v1350, %v1606
  %v1735 = vsel %vm1479, %v1351, %v1607
  %v1736 = vsel %vm1480, %v1352, %v1608
  %v1737 = vsel %vm1481, %v1353, %v1609
  %v1738 = vsel %vm1482, %v1354, %v1610
  %v1739 = vsel %vm1483, %v1355, %v1611
  %v1740 = vsel %vm1484, %v1356, %v1612
  %v1741 = vsel %vm1485, %v1357, %v1613
  %v1742 = vsel %vm1486, %v1358, %v1614
  %v1743 = vsel %vm1487, %v1359, %v1615
  %v1744 = vsel %vm1488, %v1360, %v1616
  %v1745 = vsel %vm1489, %v1361, %v1617
  %v1746 = vsel %vm1490, %v1362, %v1618
  %v1747 = vsel %vm1491, %v1363, %v1619
  %v1748 = vsel %vm1492, %v1364, %v1620
  %v1749 = vsel %vm1493, %v1365, %v1621
  %v1750 = vsel %vm1494, %v1366, %v1622
  %v1751 = vsel %vm1495, %v1367, %v1623
  %v1752 = vsel %vm1496, %v1368, %v1624
  %v1753 = vsel %vm1497, %v1369, %v1625
  %v1754 = vsel %vm1498, %v1370, %v1626
  %v1755 = vsel %vm1499, %v1371, %v1627
  %v1756 = vsel %vm1500, %v1372, %v1628
  %v1757 = vsel %vm1501, %v1373, %v1629
  %v1758 = vsel %vm1502, %v1374, %v1630
  %v1759 = vsel %vm1503, %v1375, %v1631
  %v1760 = vsel %vm1504, %v1376, %v1632
  %v1761 = vsel %vm1505, %v1377, %v1633
  %v1762 = vsel %vm1506, %v1378, %v1634
  %v1763 = vsel %vm1507, %v1379, %v1635
  %v1764 = vsel %vm1508, %v1380, %v1636
  %v1765 = vsel %vm1509, %v1381, %v1637
  %v1766 = vsel %vm1510, %v1382, %v1638
  %v1767 = vsel %vm1511, %v1383, %v1639
  %v1768 = vsel %vm1512, %v1384, %v1640
  %v1769 = vsel %vm1513, %v1385, %v1641
  %v1770 = vsel %vm1514, %v1386, %v1642
  %v1771 = vsel %vm1515, %v1387, %v1643
  %v1772 = vsel %vm1516, %v1388, %v1644
  %v1773 = vsel %vm1517, %v1389, %v1645
  %v1774 = vsel %vm1518, %v1390, %v1646
  %v1775 = vsel %vm1519, %v1391, %v1647
  %v1776 = vsel %vm1520, %v1392, %v1648
  %v1777 = vsel %vm1521, %v1393, %v1649
  %v1778 = vsel %vm1522, %v1394, %v1650
  %v1779 = vsel %vm1523, %v1395, %v1651
  %v1780 = vsel %vm1524, %v1396, %v1652
  %v1781 = vsel %vm1525, %v1397, %v1653
  %v1782 = vsel %vm1526, %v1398, %v1654
  %v1783 = vsel %vm1527, %v1399, %v1655
  %v1784 = vsel %vm1528, %v1400, %v1656
  %v1785 = vsel %vm1529, %v1401, %v1657
  %v1786 = vsel %vm1530, %v1402, %v1658
  %v1787 = vsel %vm1531, %v1403, %v1659
  %v1788 = vsel %vm1532, %v1404, %v1660
  %v1789 = vsel %vm1533, %v1405, %v1661
  %v1790 = vsel %vm1534, %v1406, %v1662
  %v1791 = vsel %vm1535, %v1407, %v1663
  %v1792 = vsel %vm1536, %v1408, %v1664
  %v1793 = vsel %vm1537, %v1409, %v1665
  %v1794 = vsel %vm1538, %v1410, %v1666
  %v1795 = vsel %vm1539, %v1411, %v1667
  %v1796 = vsel %vm1540, %v1412, %v1668
  %v1797 = vsel %vm1541, %v1413, %v1669
  %v1798 = vsel %vm1542, %v1414, %v1670
  %v1799 = vsel %vm1543, %v1415, %v1671
  %v1800 = vsel %vm1544, %v1416, %v1672
  %v1801 = vsel %vm1545, %v1417, %v1673
  %v1802 = vsel %vm1546, %v1418, %v1674
  %v1803 = vsel %vm1547, %v1419, %v1675
  %v1804 = vsel %vm1548, %v1420, %v1676
  %v1805 = vsel %vm1549, %v1421, %v1677
  %v1806 = vsel %vm1550, %v1422, %v1678
  %v1807 = vsel %vm1551, %v1423, %v1679
  %v1808 = vsel %vm1552, %v1424, %v1680
  %v1809 = vsel %vm1553, %v1425, %v1681
  %v1810 = vsel %vm1554, %v1426, %v1682
  %v1811 = vsel %vm1555, %v1427, %v1683
  %v1812 = vsel %vm1556, %v1428, %v1684
  %v1813 = vsel %vm1557, %v1429, %v1685
  %v1814 = vsel %vm1558, %v1430, %v1686
  %v1815 = vsel %vm1559, %v1431, %v1687
  %v1816 = vsel %vm1560, %v1432, %v1688
  %v1817 = vsel %vm1561, %v1433, %v1689
  %v1818 = vsel %vm1562, %v1434, %v1690
  %v1819 = vsel %vm1563, %v1435, %v1691
  %v1820 = vsel %vm1564, %v1436, %v1692
  %v1821 = vsel %vm1565, %v1437, %v1693
  %v1822 = vsel %vm1566, %v1438, %v1694
  %v1823 = vsel %vm1567, %v1439, %v1695
  %v1824 = vsel %vm1568, %v1440, %v1696
  %v1825 = vsel %vm1569, %v1441, %v1697
  %v1826 = vsel %vm1570, %v1442, %v1698
  %v1827 = vsel %vm1571, %v1443, %v1699
  %v1828 = vsel %vm1572, %v1444, %v1700
  %v1829 = vsel %vm1573, %v1445, %v1701
  %v1830 = vsel %vm1574, %v1446, %v1702
  %v1831 = vsel %vm1575, %v1447, %v1703
  %v1832 = vsel %vm1576, %v1448, %v1704
  %v1833 = vsel %vm1577, %v1449, %v1705
  %v1834 = vsel %vm1578, %v1450, %v1706
  %v1835 = vsel %vm1579, %v1451, %v1707
  %v1836 = vsel %vm1580, %v1452, %v1708
  %v1837 = vsel %vm1581, %v1453, %v1709
  %v1838 = vsel %vm1582, %v1454, %v1710
  %v1839 = vsel %vm1583, %v1455, %v1711
  %v1840 = vsel %vm1584, %v1456, %v1712
  %v1841 = vsel %vm1585, %v1457, %v1713
  %v1842 = vsel %vm1586, %v1458, %v1714
  %v1843 = vsel %vm1587, %v1459, %v1715
  %v1844 = vsel %vm1588, %v1460, %v1716
  %v1845 = vld [vmem:[%s2] sm:$0xf]
  %v1846 = vld [vmem:[%s2 + $0x4] sm:$0xf]
  %v1847 = vld [vmem:[%s2 + $0x8] sm:$0xf]
  %v1848 = vld [vmem:[%s2 + $0xc] sm:$0xf]
  %v1849 = vld [vmem:[%s2 + $0x10] sm:$0xf]
  %v1850 = vld [vmem:[%s2 + $0x14] sm:$0xf]
  %v1851 = vld [vmem:[%s2 + $0x18] sm:$0xf]
  %v1852 = vld [vmem:[%s2 + $0x1c] sm:$0xf]
  %v1853 = vld [vmem:[%s2 + $0x20] sm:$0xf]
  %v1854 = vld [vmem:[%s2 + $0x24] sm:$0xf]
  %v1855 = vld [vmem:[%s2 + $0x28] sm:$0xf]
  %v1856 = vld [vmem:[%s2 + $0x2c] sm:$0xf]
  %v1857 = vld [vmem:[%s2 + $0x30] sm:$0xf]
  %v1858 = vld [vmem:[%s2 + $0x34] sm:$0xf]
  %v1859 = vld [vmem:[%s2 + $0x38] sm:$0xf]
  %v1860 = vld [vmem:[%s2 + $0x3c] sm:$0xf]
  %v1861 = vunpack.c.l.bf16 %v1845
  %v1862 = vunpack.c.l.bf16 %v1846
  %v1863 = vunpack.c.l.bf16 %v1847
  %v1864 = vunpack.c.l.bf16 %v1848
  %v1865 = vunpack.c.l.bf16 %v1849
  %v1866 = vunpack.c.l.bf16 %v1850
  %v1867 = vunpack.c.l.bf16 %v1851
  %v1868 = vunpack.c.l.bf16 %v1852
  %v1869 = vunpack.c.l.bf16 %v1853
  %v1870 = vunpack.c.l.bf16 %v1854
  %v1871 = vunpack.c.l.bf16 %v1855
  %v1872 = vunpack.c.l.bf16 %v1856
  %v1873 = vunpack.c.l.bf16 %v1857
  %v1874 = vunpack.c.l.bf16 %v1858
  %v1875 = vunpack.c.l.bf16 %v1859
  %v1876 = vunpack.c.l.bf16 %v1860
  %v1877 = vadd.f32 %v1717, %v1861
  %v1878 = vadd.f32 %v1718, %v1862
  %v1879 = vadd.f32 %v1719, %v1863
  %v1880 = vadd.f32 %v1720, %v1864
  %v1881 = vadd.f32 %v1721, %v1865
  %v1882 = vadd.f32 %v1722, %v1866
  %v1883 = vadd.f32 %v1723, %v1867
  %v1884 = vadd.f32 %v1724, %v1868
  %v1885 = vadd.f32 %v1725, %v1869
  %v1886 = vadd.f32 %v1726, %v1870
  %v1887 = vadd.f32 %v1727, %v1871
  %v1888 = vadd.f32 %v1728, %v1872
  %v1889 = vadd.f32 %v1729, %v1873
  %v1890 = vadd.f32 %v1730, %v1874
  %v1891 = vadd.f32 %v1731, %v1875
  %v1892 = vadd.f32 %v1732, %v1876
  %v1893 = vadd.f32 %v1733, %v1861
  %v1894 = vadd.f32 %v1734, %v1862
  %v1895 = vadd.f32 %v1735, %v1863
  %v1896 = vadd.f32 %v1736, %v1864
  %v1897 = vadd.f32 %v1737, %v1865
  %v1898 = vadd.f32 %v1738, %v1866
  %v1899 = vadd.f32 %v1739, %v1867
  %v1900 = vadd.f32 %v1740, %v1868
  %v1901 = vadd.f32 %v1741, %v1869
  %v1902 = vadd.f32 %v1742, %v1870
  %v1903 = vadd.f32 %v1743, %v1871
  %v1904 = vadd.f32 %v1744, %v1872
  %v1905 = vadd.f32 %v1745, %v1873
  %v1906 = vadd.f32 %v1746, %v1874
  %v1907 = vadd.f32 %v1747, %v1875
  %v1908 = vadd.f32 %v1748, %v1876
  %v1909 = vadd.f32 %v1749, %v1861
  %v1910 = vadd.f32 %v1750, %v1862
  %v1911 = vadd.f32 %v1751, %v1863
  %v1912 = vadd.f32 %v1752, %v1864
  %v1913 = vadd.f32 %v1753, %v1865
  %v1914 = vadd.f32 %v1754, %v1866
  %v1915 = vadd.f32 %v1755, %v1867
  %v1916 = vadd.f32 %v1756, %v1868
  %v1917 = vadd.f32 %v1757, %v1869
  %v1918 = vadd.f32 %v1758, %v1870
  %v1919 = vadd.f32 %v1759, %v1871
  %v1920 = vadd.f32 %v1760, %v1872
  %v1921 = vadd.f32 %v1761, %v1873
  %v1922 = vadd.f32 %v1762, %v1874
  %v1923 = vadd.f32 %v1763, %v1875
  %v1924 = vadd.f32 %v1764, %v1876
  %v1925 = vadd.f32 %v1765, %v1861
  %v1926 = vadd.f32 %v1766, %v1862
  %v1927 = vadd.f32 %v1767, %v1863
  %v1928 = vadd.f32 %v1768, %v1864
  %v1929 = vadd.f32 %v1769, %v1865
  %v1930 = vadd.f32 %v1770, %v1866
  %v1931 = vadd.f32 %v1771, %v1867
  %v1932 = vadd.f32 %v1772, %v1868
  %v1933 = vadd.f32 %v1773, %v1869
  %v1934 = vadd.f32 %v1774, %v1870
  %v1935 = vadd.f32 %v1775, %v1871
  %v1936 = vadd.f32 %v1776, %v1872
  %v1937 = vadd.f32 %v1777, %v1873
  %v1938 = vadd.f32 %v1778, %v1874
  %v1939 = vadd.f32 %v1779, %v1875
  %v1940 = vadd.f32 %v1780, %v1876
  %v1941 = vadd.f32 %v1781, %v1861
  %v1942 = vadd.f32 %v1782, %v1862
  %v1943 = vadd.f32 %v1783, %v1863
  %v1944 = vadd.f32 %v1784, %v1864
  %v1945 = vadd.f32 %v1785, %v1865
  %v1946 = vadd.f32 %v1786, %v1866
  %v1947 = vadd.f32 %v1787, %v1867
  %v1948 = vadd.f32 %v1788, %v1868
  %v1949 = vadd.f32 %v1789, %v1869
  %v1950 = vadd.f32 %v1790, %v1870
  %v1951 = vadd.f32 %v1791, %v1871
  %v1952 = vadd.f32 %v1792, %v1872
  %v1953 = vadd.f32 %v1793, %v1873
  %v1954 = vadd.f32 %v1794, %v1874
  %v1955 = vadd.f32 %v1795, %v1875
  %v1956 = vadd.f32 %v1796, %v1876
  %v1957 = vadd.f32 %v1797, %v1861
  %v1958 = vadd.f32 %v1798, %v1862
  %v1959 = vadd.f32 %v1799, %v1863
  %v1960 = vadd.f32 %v1800, %v1864
  %v1961 = vadd.f32 %v1801, %v1865
  %v1962 = vadd.f32 %v1802, %v1866
  %v1963 = vadd.f32 %v1803, %v1867
  %v1964 = vadd.f32 %v1804, %v1868
  %v1965 = vadd.f32 %v1805, %v1869
  %v1966 = vadd.f32 %v1806, %v1870
  %v1967 = vadd.f32 %v1807, %v1871
  %v1968 = vadd.f32 %v1808, %v1872
  %v1969 = vadd.f32 %v1809, %v1873
  %v1970 = vadd.f32 %v1810, %v1874
  %v1971 = vadd.f32 %v1811, %v1875
  %v1972 = vadd.f32 %v1812, %v1876
  %v1973 = vadd.f32 %v1813, %v1861
  %v1974 = vadd.f32 %v1814, %v1862
  %v1975 = vadd.f32 %v1815, %v1863
  %v1976 = vadd.f32 %v1816, %v1864
  %v1977 = vadd.f32 %v1817, %v1865
  %v1978 = vadd.f32 %v1818, %v1866
  %v1979 = vadd.f32 %v1819, %v1867
  %v1980 = vadd.f32 %v1820, %v1868
  %v1981 = vadd.f32 %v1821, %v1869
  %v1982 = vadd.f32 %v1822, %v1870
  %v1983 = vadd.f32 %v1823, %v1871
  %v1984 = vadd.f32 %v1824, %v1872
  %v1985 = vadd.f32 %v1825, %v1873
  %v1986 = vadd.f32 %v1826, %v1874
  %v1987 = vadd.f32 %v1827, %v1875
  %v1988 = vadd.f32 %v1828, %v1876
  %v1989 = vadd.f32 %v1829, %v1861
  %v1990 = vadd.f32 %v1830, %v1862
  %v1991 = vadd.f32 %v1831, %v1863
  %v1992 = vadd.f32 %v1832, %v1864
  %v1993 = vadd.f32 %v1833, %v1865
  %v1994 = vadd.f32 %v1834, %v1866
  %v1995 = vadd.f32 %v1835, %v1867
  %v1996 = vadd.f32 %v1836, %v1868
  %v1997 = vadd.f32 %v1837, %v1869
  %v1998 = vadd.f32 %v1838, %v1870
  %v1999 = vadd.f32 %v1839, %v1871
  %v2000 = vadd.f32 %v1840, %v1872
  %v2001 = vadd.f32 %v1841, %v1873
  %v2002 = vadd.f32 %v1842, %v1874
  %v2003 = vadd.f32 %v1843, %v1875
  %v2004 = vadd.f32 %v1844, %v1876
  %2005 = vmax.xlane.f32.xlu0 %v1877
  %v2006 = vpop.xlane.xlu0 %2005
  %2007 = vmax.xlane.f32.xlu0 %v1878
  %v2008 = vpop.xlane.xlu0 %2007
  %2009 = vmax.xlane.f32.xlu0 %v1879
  %v2010 = vpop.xlane.xlu0 %2009
  %2011 = vmax.xlane.f32.xlu0 %v1880
  %v2012 = vpop.xlane.xlu0 %2011
  %2013 = vmax.xlane.f32.xlu0 %v1881
  %v2014 = vpop.xlane.xlu0 %2013
  %2015 = vmax.xlane.f32.xlu0 %v1882
  %v2016 = vpop.xlane.xlu0 %2015
  %2017 = vmax.xlane.f32.xlu0 %v1883
  %v2018 = vpop.xlane.xlu0 %2017
  %2019 = vmax.xlane.f32.xlu0 %v1884
  %v2020 = vpop.xlane.xlu0 %2019
  %2021 = vmax.xlane.f32.xlu0 %v1885
  %v2022 = vpop.xlane.xlu0 %2021
  %2023 = vmax.xlane.f32.xlu0 %v1886
  %v2024 = vpop.xlane.xlu0 %2023
  %2025 = vmax.xlane.f32.xlu0 %v1887
  %v2026 = vpop.xlane.xlu0 %2025
  %2027 = vmax.xlane.f32.xlu0 %v1888
  %v2028 = vpop.xlane.xlu0 %2027
  %2029 = vmax.xlane.f32.xlu0 %v1889
  %v2030 = vpop.xlane.xlu0 %2029
  %2031 = vmax.xlane.f32.xlu0 %v1890
  %v2032 = vpop.xlane.xlu0 %2031
  %2033 = vmax.xlane.f32.xlu0 %v1891
  %v2034 = vpop.xlane.xlu0 %2033
  %2035 = vmax.xlane.f32.xlu0 %v1892
  %v2036 = vpop.xlane.xlu0 %2035
  %2037 = vmax.xlane.f32.xlu0 %v1893
  %v2038 = vpop.xlane.xlu0 %2037
  %2039 = vmax.xlane.f32.xlu0 %v1894
  %v2040 = vpop.xlane.xlu0 %2039
  %2041 = vmax.xlane.f32.xlu0 %v1895
  %v2042 = vpop.xlane.xlu0 %2041
  %2043 = vmax.xlane.f32.xlu0 %v1896
  %v2044 = vpop.xlane.xlu0 %2043
  %2045 = vmax.xlane.f32.xlu0 %v1897
  %v2046 = vpop.xlane.xlu0 %2045
  %2047 = vmax.xlane.f32.xlu0 %v1898
  %v2048 = vpop.xlane.xlu0 %2047
  %2049 = vmax.xlane.f32.xlu0 %v1899
  %v2050 = vpop.xlane.xlu0 %2049
  %2051 = vmax.xlane.f32.xlu0 %v1900
  %v2052 = vpop.xlane.xlu0 %2051
  %2053 = vmax.xlane.f32.xlu0 %v1901
  %v2054 = vpop.xlane.xlu0 %2053
  %2055 = vmax.xlane.f32.xlu0 %v1902
  %v2056 = vpop.xlane.xlu0 %2055
  %2057 = vmax.xlane.f32.xlu0 %v1903
  %v2058 = vpop.xlane.xlu0 %2057
  %2059 = vmax.xlane.f32.xlu0 %v1904
  %v2060 = vpop.xlane.xlu0 %2059
  %2061 = vmax.xlane.f32.xlu0 %v1905
  %v2062 = vpop.xlane.xlu0 %2061
  %2063 = vmax.xlane.f32.xlu0 %v1906
  %v2064 = vpop.xlane.xlu0 %2063
  %2065 = vmax.xlane.f32.xlu0 %v1907
  %v2066 = vpop.xlane.xlu0 %2065
  %2067 = vmax.xlane.f32.xlu0 %v1908
  %v2068 = vpop.xlane.xlu0 %2067
  %2069 = vmax.xlane.f32.xlu0 %v1909
  %v2070 = vpop.xlane.xlu0 %2069
  %2071 = vmax.xlane.f32.xlu0 %v1910
  %v2072 = vpop.xlane.xlu0 %2071
  %2073 = vmax.xlane.f32.xlu0 %v1911
  %v2074 = vpop.xlane.xlu0 %2073
  %2075 = vmax.xlane.f32.xlu0 %v1912
  %v2076 = vpop.xlane.xlu0 %2075
  %2077 = vmax.xlane.f32.xlu0 %v1913
  %v2078 = vpop.xlane.xlu0 %2077
  %2079 = vmax.xlane.f32.xlu0 %v1914
  %v2080 = vpop.xlane.xlu0 %2079
  %2081 = vmax.xlane.f32.xlu0 %v1915
  %v2082 = vpop.xlane.xlu0 %2081
  %2083 = vmax.xlane.f32.xlu0 %v1916
  %v2084 = vpop.xlane.xlu0 %2083
  %2085 = vmax.xlane.f32.xlu0 %v1917
  %v2086 = vpop.xlane.xlu0 %2085
  %2087 = vmax.xlane.f32.xlu0 %v1918
  %v2088 = vpop.xlane.xlu0 %2087
  %2089 = vmax.xlane.f32.xlu0 %v1919
  %v2090 = vpop.xlane.xlu0 %2089
  %2091 = vmax.xlane.f32.xlu0 %v1920
  %v2092 = vpop.xlane.xlu0 %2091
  %2093 = vmax.xlane.f32.xlu0 %v1921
  %v2094 = vpop.xlane.xlu0 %2093
  %2095 = vmax.xlane.f32.xlu0 %v1922
  %v2096 = vpop.xlane.xlu0 %2095
  %2097 = vmax.xlane.f32.xlu0 %v1923
  %v2098 = vpop.xlane.xlu0 %2097
  %2099 = vmax.xlane.f32.xlu0 %v1924
  %v2100 = vpop.xlane.xlu0 %2099
  %2101 = vmax.xlane.f32.xlu0 %v1925
  %v2102 = vpop.xlane.xlu0 %2101
  %2103 = vmax.xlane.f32.xlu0 %v1926
  %v2104 = vpop.xlane.xlu0 %2103
  %2105 = vmax.xlane.f32.xlu0 %v1927
  %v2106 = vpop.xlane.xlu0 %2105
  %2107 = vmax.xlane.f32.xlu0 %v1928
  %v2108 = vpop.xlane.xlu0 %2107
  %2109 = vmax.xlane.f32.xlu0 %v1929
  %v2110 = vpop.xlane.xlu0 %2109
  %2111 = vmax.xlane.f32.xlu0 %v1930
  %v2112 = vpop.xlane.xlu0 %2111
  %2113 = vmax.xlane.f32.xlu0 %v1931
  %v2114 = vpop.xlane.xlu0 %2113
  %2115 = vmax.xlane.f32.xlu0 %v1932
  %v2116 = vpop.xlane.xlu0 %2115
  %2117 = vmax.xlane.f32.xlu0 %v1933
  %v2118 = vpop.xlane.xlu0 %2117
  %2119 = vmax.xlane.f32.xlu0 %v1934
  %v2120 = vpop.xlane.xlu0 %2119
  %2121 = vmax.xlane.f32.xlu0 %v1935
  %v2122 = vpop.xlane.xlu0 %2121
  %2123 = vmax.xlane.f32.xlu0 %v1936
  %v2124 = vpop.xlane.xlu0 %2123
  %2125 = vmax.xlane.f32.xlu0 %v1937
  %v2126 = vpop.xlane.xlu0 %2125
  %2127 = vmax.xlane.f32.xlu0 %v1938
  %v2128 = vpop.xlane.xlu0 %2127
  %2129 = vmax.xlane.f32.xlu0 %v1939
  %v2130 = vpop.xlane.xlu0 %2129
  %2131 = vmax.xlane.f32.xlu0 %v1940
  %v2132 = vpop.xlane.xlu0 %2131
  %2133 = vmax.xlane.f32.xlu0 %v1941
  %v2134 = vpop.xlane.xlu0 %2133
  %2135 = vmax.xlane.f32.xlu0 %v1942
  %v2136 = vpop.xlane.xlu0 %2135
  %2137 = vmax.xlane.f32.xlu0 %v1943
  %v2138 = vpop.xlane.xlu0 %2137
  %2139 = vmax.xlane.f32.xlu0 %v1944
  %v2140 = vpop.xlane.xlu0 %2139
  %2141 = vmax.xlane.f32.xlu0 %v1945
  %v2142 = vpop.xlane.xlu0 %2141
  %2143 = vmax.xlane.f32.xlu0 %v1946
  %v2144 = vpop.xlane.xlu0 %2143
  %2145 = vmax.xlane.f32.xlu0 %v1947
  %v2146 = vpop.xlane.xlu0 %2145
  %2147 = vmax.xlane.f32.xlu0 %v1948
  %v2148 = vpop.xlane.xlu0 %2147
  %2149 = vmax.xlane.f32.xlu0 %v1949
  %v2150 = vpop.xlane.xlu0 %2149
  %2151 = vmax.xlane.f32.xlu0 %v1950
  %v2152 = vpop.xlane.xlu0 %2151
  %2153 = vmax.xlane.f32.xlu0 %v1951
  %v2154 = vpop.xlane.xlu0 %2153
  %2155 = vmax.xlane.f32.xlu0 %v1952
  %v2156 = vpop.xlane.xlu0 %2155
  %2157 = vmax.xlane.f32.xlu0 %v1953
  %v2158 = vpop.xlane.xlu0 %2157
  %2159 = vmax.xlane.f32.xlu0 %v1954
  %v2160 = vpop.xlane.xlu0 %2159
  %2161 = vmax.xlane.f32.xlu0 %v1955
  %v2162 = vpop.xlane.xlu0 %2161
  %2163 = vmax.xlane.f32.xlu0 %v1956
  %v2164 = vpop.xlane.xlu0 %2163
  %2165 = vmax.xlane.f32.xlu0 %v1957
  %v2166 = vpop.xlane.xlu0 %2165
  %2167 = vmax.xlane.f32.xlu0 %v1958
  %v2168 = vpop.xlane.xlu0 %2167
  %2169 = vmax.xlane.f32.xlu0 %v1959
  %v2170 = vpop.xlane.xlu0 %2169
  %2171 = vmax.xlane.f32.xlu0 %v1960
  %v2172 = vpop.xlane.xlu0 %2171
  %2173 = vmax.xlane.f32.xlu0 %v1961
  %v2174 = vpop.xlane.xlu0 %2173
  %2175 = vmax.xlane.f32.xlu0 %v1962
  %v2176 = vpop.xlane.xlu0 %2175
  %2177 = vmax.xlane.f32.xlu0 %v1963
  %v2178 = vpop.xlane.xlu0 %2177
  %2179 = vmax.xlane.f32.xlu0 %v1964
  %v2180 = vpop.xlane.xlu0 %2179
  %2181 = vmax.xlane.f32.xlu0 %v1965
  %v2182 = vpop.xlane.xlu0 %2181
  %2183 = vmax.xlane.f32.xlu0 %v1966
  %v2184 = vpop.xlane.xlu0 %2183
  %2185 = vmax.xlane.f32.xlu0 %v1967
  %v2186 = vpop.xlane.xlu0 %2185
  %2187 = vmax.xlane.f32.xlu0 %v1968
  %v2188 = vpop.xlane.xlu0 %2187
  %2189 = vmax.xlane.f32.xlu0 %v1969
  %v2190 = vpop.xlane.xlu0 %2189
  %2191 = vmax.xlane.f32.xlu0 %v1970
  %v2192 = vpop.xlane.xlu0 %2191
  %2193 = vmax.xlane.f32.xlu0 %v1971
  %v2194 = vpop.xlane.xlu0 %2193
  %2195 = vmax.xlane.f32.xlu0 %v1972
  %v2196 = vpop.xlane.xlu0 %2195
  %2197 = vmax.xlane.f32.xlu0 %v1973
  %v2198 = vpop.xlane.xlu0 %2197
  %2199 = vmax.xlane.f32.xlu0 %v1974
  %v2200 = vpop.xlane.xlu0 %2199
  %2201 = vmax.xlane.f32.xlu0 %v1975
  %v2202 = vpop.xlane.xlu0 %2201
  %2203 = vmax.xlane.f32.xlu0 %v1976
  %v2204 = vpop.xlane.xlu0 %2203
  %2205 = vmax.xlane.f32.xlu0 %v1977
  %v2206 = vpop.xlane.xlu0 %2205
  %2207 = vmax.xlane.f32.xlu0 %v1978
  %v2208 = vpop.xlane.xlu0 %2207
  %2209 = vmax.xlane.f32.xlu0 %v1979
  %v2210 = vpop.xlane.xlu0 %2209
  %2211 = vmax.xlane.f32.xlu0 %v1980
  %v2212 = vpop.xlane.xlu0 %2211
  %2213 = vmax.xlane.f32.xlu0 %v1981
  %v2214 = vpop.xlane.xlu0 %2213
  %2215 = vmax.xlane.f32.xlu0 %v1982
  %v2216 = vpop.xlane.xlu0 %2215
  %2217 = vmax.xlane.f32.xlu0 %v1983
  %v2218 = vpop.xlane.xlu0 %2217
  %2219 = vmax.xlane.f32.xlu0 %v1984
  %v2220 = vpop.xlane.xlu0 %2219
  %2221 = vmax.xlane.f32.xlu0 %v1985
  %v2222 = vpop.xlane.xlu0 %2221
  %2223 = vmax.xlane.f32.xlu0 %v1986
  %v2224 = vpop.xlane.xlu0 %2223
  %2225 = vmax.xlane.f32.xlu0 %v1987
  %v2226 = vpop.xlane.xlu0 %2225
  %2227 = vmax.xlane.f32.xlu0 %v1988
  %v2228 = vpop.xlane.xlu0 %2227
  %2229 = vmax.xlane.f32.xlu0 %v1989
  %v2230 = vpop.xlane.xlu0 %2229
  %2231 = vmax.xlane.f32.xlu0 %v1990
  %v2232 = vpop.xlane.xlu0 %2231
  %2233 = vmax.xlane.f32.xlu0 %v1991
  %v2234 = vpop.xlane.xlu0 %2233
  %2235 = vmax.xlane.f32.xlu0 %v1992
  %v2236 = vpop.xlane.xlu0 %2235
  %2237 = vmax.xlane.f32.xlu0 %v1993
  %v2238 = vpop.xlane.xlu0 %2237
  %2239 = vmax.xlane.f32.xlu0 %v1994
  %v2240 = vpop.xlane.xlu0 %2239
  %2241 = vmax.xlane.f32.xlu0 %v1995
  %v2242 = vpop.xlane.xlu0 %2241
  %2243 = vmax.xlane.f32.xlu0 %v1996
  %v2244 = vpop.xlane.xlu0 %2243
  %2245 = vmax.xlane.f32.xlu0 %v1997
  %v2246 = vpop.xlane.xlu0 %2245
  %2247 = vmax.xlane.f32.xlu0 %v1998
  %v2248 = vpop.xlane.xlu0 %2247
  %2249 = vmax.xlane.f32.xlu0 %v1999
  %v2250 = vpop.xlane.xlu0 %2249
  %2251 = vmax.xlane.f32.xlu0 %v2000
  %v2252 = vpop.xlane.xlu0 %2251
  %2253 = vmax.xlane.f32.xlu0 %v2001
  %v2254 = vpop.xlane.xlu0 %2253
  %2255 = vmax.xlane.f32.xlu0 %v2002
  %v2256 = vpop.xlane.xlu0 %2255
  %2257 = vmax.xlane.f32.xlu0 %v2003
  %v2258 = vpop.xlane.xlu0 %2257
  %2259 = vmax.xlane.f32.xlu0 %v2004
  %v2260 = vpop.xlane.xlu0 %2259
  %v2261 = vsub.f32 %v1877, %v2006
  %v2262 = vsub.f32 %v1878, %v2008
  %v2263 = vsub.f32 %v1879, %v2010
  %v2264 = vsub.f32 %v1880, %v2012
  %v2265 = vsub.f32 %v1881, %v2014
  %v2266 = vsub.f32 %v1882, %v2016
  %v2267 = vsub.f32 %v1883, %v2018
  %v2268 = vsub.f32 %v1884, %v2020
  %v2269 = vsub.f32 %v1885, %v2022
  %v2270 = vsub.f32 %v1886, %v2024
  %v2271 = vsub.f32 %v1887, %v2026
  %v2272 = vsub.f32 %v1888, %v2028
  %v2273 = vsub.f32 %v1889, %v2030
  %v2274 = vsub.f32 %v1890, %v2032
  %v2275 = vsub.f32 %v1891, %v2034
  %v2276 = vsub.f32 %v1892, %v2036
  %v2277 = vsub.f32 %v1893, %v2038
  %v2278 = vsub.f32 %v1894, %v2040
  %v2279 = vsub.f32 %v1895, %v2042
  %v2280 = vsub.f32 %v1896, %v2044
  %v2281 = vsub.f32 %v1897, %v2046
  %v2282 = vsub.f32 %v1898, %v2048
  %v2283 = vsub.f32 %v1899, %v2050
  %v2284 = vsub.f32 %v1900, %v2052
  %v2285 = vsub.f32 %v1901, %v2054
  %v2286 = vsub.f32 %v1902, %v2056
  %v2287 = vsub.f32 %v1903, %v2058
  %v2288 = vsub.f32 %v1904, %v2060
  %v2289 = vsub.f32 %v1905, %v2062
  %v2290 = vsub.f32 %v1906, %v2064
  %v2291 = vsub.f32 %v1907, %v2066
  %v2292 = vsub.f32 %v1908, %v2068
  %v2293 = vsub.f32 %v1909, %v2070
  %v2294 = vsub.f32 %v1910, %v2072
  %v2295 = vsub.f32 %v1911, %v2074
  %v2296 = vsub.f32 %v1912, %v2076
  %v2297 = vsub.f32 %v1913, %v2078
  %v2298 = vsub.f32 %v1914, %v2080
  %v2299 = vsub.f32 %v1915, %v2082
  %v2300 = vsub.f32 %v1916, %v2084
  %v2301 = vsub.f32 %v1917, %v2086
  %v2302 = vsub.f32 %v1918, %v2088
  %v2303 = vsub.f32 %v1919, %v2090
  %v2304 = vsub.f32 %v1920, %v2092
  %v2305 = vsub.f32 %v1921, %v2094
  %v2306 = vsub.f32 %v1922, %v2096
  %v2307 = vsub.f32 %v1923, %v2098
  %v2308 = vsub.f32 %v1924, %v2100
  %v2309 = vsub.f32 %v1925, %v2102
  %v2310 = vsub.f32 %v1926, %v2104
  %v2311 = vsub.f32 %v1927, %v2106
  %v2312 = vsub.f32 %v1928, %v2108
  %v2313 = vsub.f32 %v1929, %v2110
  %v2314 = vsub.f32 %v1930, %v2112
  %v2315 = vsub.f32 %v1931, %v2114
  %v2316 = vsub.f32 %v1932, %v2116
  %v2317 = vsub.f32 %v1933, %v2118
  %v2318 = vsub.f32 %v1934, %v2120
  %v2319 = vsub.f32 %v1935, %v2122
  %v2320 = vsub.f32 %v1936, %v2124
  %v2321 = vsub.f32 %v1937, %v2126
  %v2322 = vsub.f32 %v1938, %v2128
  %v2323 = vsub.f32 %v1939, %v2130
  %v2324 = vsub.f32 %v1940, %v2132
  %v2325 = vsub.f32 %v1941, %v2134
  %v2326 = vsub.f32 %v1942, %v2136
  %v2327 = vsub.f32 %v1943, %v2138
  %v2328 = vsub.f32 %v1944, %v2140
  %v2329 = vsub.f32 %v1945, %v2142
  %v2330 = vsub.f32 %v1946, %v2144
  %v2331 = vsub.f32 %v1947, %v2146
  %v2332 = vsub.f32 %v1948, %v2148
  %v2333 = vsub.f32 %v1949, %v2150
  %v2334 = vsub.f32 %v1950, %v2152
  %v2335 = vsub.f32 %v1951, %v2154
  %v2336 = vsub.f32 %v1952, %v2156
  %v2337 = vsub.f32 %v1953, %v2158
  %v2338 = vsub.f32 %v1954, %v2160
  %v2339 = vsub.f32 %v1955, %v2162
  %v2340 = vsub.f32 %v1956, %v2164
  %v2341 = vsub.f32 %v1957, %v2166
  %v2342 = vsub.f32 %v1958, %v2168
  %v2343 = vsub.f32 %v1959, %v2170
  %v2344 = vsub.f32 %v1960, %v2172
  %v2345 = vsub.f32 %v1961, %v2174
  %v2346 = vsub.f32 %v1962, %v2176
  %v2347 = vsub.f32 %v1963, %v2178
  %v2348 = vsub.f32 %v1964, %v2180
  %v2349 = vsub.f32 %v1965, %v2182
  %v2350 = vsub.f32 %v1966, %v2184
  %v2351 = vsub.f32 %v1967, %v2186
  %v2352 = vsub.f32 %v1968, %v2188
  %v2353 = vsub.f32 %v1969, %v2190
  %v2354 = vsub.f32 %v1970, %v2192
  %v2355 = vsub.f32 %v1971, %v2194
  %v2356 = vsub.f32 %v1972, %v2196
  %v2357 = vsub.f32 %v1973, %v2198
  %v2358 = vsub.f32 %v1974, %v2200
  %v2359 = vsub.f32 %v1975, %v2202
  %v2360 = vsub.f32 %v1976, %v2204
  %v2361 = vsub.f32 %v1977, %v2206
  %v2362 = vsub.f32 %v1978, %v2208
  %v2363 = vsub.f32 %v1979, %v2210
  %v2364 = vsub.f32 %v1980, %v2212
  %v2365 = vsub.f32 %v1981, %v2214
  %v2366 = vsub.f32 %v1982, %v2216
  %v2367 = vsub.f32 %v1983, %v2218
  %v2368 = vsub.f32 %v1984, %v2220
  %v2369 = vsub.f32 %v1985, %v2222
  %v2370 = vsub.f32 %v1986, %v2224
  %v2371 = vsub.f32 %v1987, %v2226
  %v2372 = vsub.f32 %v1988, %v2228
  %v2373 = vsub.f32 %v1989, %v2230
  %v2374 = vsub.f32 %v1990, %v2232
  %v2375 = vsub.f32 %v1991, %v2234
  %v2376 = vsub.f32 %v1992, %v2236
  %v2377 = vsub.f32 %v1993, %v2238
  %v2378 = vsub.f32 %v1994, %v2240
  %v2379 = vsub.f32 %v1995, %v2242
  %v2380 = vsub.f32 %v1996, %v2244
  %v2381 = vsub.f32 %v1997, %v2246
  %v2382 = vsub.f32 %v1998, %v2248
  %v2383 = vsub.f32 %v1999, %v2250
  %v2384 = vsub.f32 %v2000, %v2252
  %v2385 = vsub.f32 %v2001, %v2254
  %v2386 = vsub.f32 %v2002, %v2256
  %v2387 = vsub.f32 %v2003, %v2258
  %v2388 = vsub.f32 %v2004, %v2260
  %v2389 = vmul.f32 %v2261, 1.442695
  %v2390 = vpow.pop %v2389
  %v2391 = vmul.f32 %v2262, 1.442695
  %v2392 = vpow.pop %v2391
  %v2393 = vmul.f32 %v2263, 1.442695
  %v2394 = vpow.pop %v2393
  %v2395 = vmul.f32 %v2264, 1.442695
  %v2396 = vpow.pop %v2395
  %v2397 = vmul.f32 %v2265, 1.442695
  %v2398 = vpow.pop %v2397
  %v2399 = vmul.f32 %v2266, 1.442695
  %v2400 = vpow.pop %v2399
  %v2401 = vmul.f32 %v2267, 1.442695
  %v2402 = vpow.pop %v2401
  %v2403 = vmul.f32 %v2268, 1.442695
  %v2404 = vpow.pop %v2403
  %v2405 = vmul.f32 %v2269, 1.442695
  %v2406 = vpow.pop %v2405
  %v2407 = vmul.f32 %v2270, 1.442695
  %v2408 = vpow.pop %v2407
  %v2409 = vmul.f32 %v2271, 1.442695
  %v2410 = vpow.pop %v2409
  %v2411 = vmul.f32 %v2272, 1.442695
  %v2412 = vpow.pop %v2411
  %v2413 = vmul.f32 %v2273, 1.442695
  %v2414 = vpow.pop %v2413
  %v2415 = vmul.f32 %v2274, 1.442695
  %v2416 = vpow.pop %v2415
  %v2417 = vmul.f32 %v2275, 1.442695
  %v2418 = vpow.pop %v2417
  %v2419 = vmul.f32 %v2276, 1.442695
  %v2420 = vpow.pop %v2419
  %v2421 = vmul.f32 %v2277, 1.442695
  %v2422 = vpow.pop %v2421
  %v2423 = vmul.f32 %v2278, 1.442695
  %v2424 = vpow.pop %v2423
  %v2425 = vmul.f32 %v2279, 1.442695
  %v2426 = vpow.pop %v2425
  %v2427 = vmul.f32 %v2280, 1.442695
  %v2428 = vpow.pop %v2427
  %v2429 = vmul.f32 %v2281, 1.442695
  %v2430 = vpow.pop %v2429
  %v2431 = vmul.f32 %v2282, 1.442695
  %v2432 = vpow.pop %v2431
  %v2433 = vmul.f32 %v2283, 1.442695
  %v2434 = vpow.pop %v2433
  %v2435 = vmul.f32 %v2284, 1.442695
  %v2436 = vpow.pop %v2435
  %v2437 = vmul.f32 %v2285, 1.442695
  %v2438 = vpow.pop %v2437
  %v2439 = vmul.f32 %v2286, 1.442695
  %v2440 = vpow.pop %v2439
  %v2441 = vmul.f32 %v2287, 1.442695
  %v2442 = vpow.pop %v2441
  %v2443 = vmul.f32 %v2288, 1.442695
  %v2444 = vpow.pop %v2443
  %v2445 = vmul.f32 %v2289, 1.442695
  %v2446 = vpow.pop %v2445
  %v2447 = vmul.f32 %v2290, 1.442695
  %v2448 = vpow.pop %v2447
  %v2449 = vmul.f32 %v2291, 1.442695
  %v2450 = vpow.pop %v2449
  %v2451 = vmul.f32 %v2292, 1.442695
  %v2452 = vpow.pop %v2451
  %v2453 = vmul.f32 %v2293, 1.442695
  %v2454 = vpow.pop %v2453
  %v2455 = vmul.f32 %v2294, 1.442695
  %v2456 = vpow.pop %v2455
  %v2457 = vmul.f32 %v2295, 1.442695
  %v2458 = vpow.pop %v2457
  %v2459 = vmul.f32 %v2296, 1.442695
  %v2460 = vpow.pop %v2459
  %v2461 = vmul.f32 %v2297, 1.442695
  %v2462 = vpow.pop %v2461
  %v2463 = vmul.f32 %v2298, 1.442695
  %v2464 = vpow.pop %v2463
  %v2465 = vmul.f32 %v2299, 1.442695
  %v2466 = vpow.pop %v2465
  %v2467 = vmul.f32 %v2300, 1.442695
  %v2468 = vpow.pop %v2467
  %v2469 = vmul.f32 %v2301, 1.442695
  %v2470 = vpow.pop %v2469
  %v2471 = vmul.f32 %v2302, 1.442695
  %v2472 = vpow.pop %v2471
  %v2473 = vmul.f32 %v2303, 1.442695
  %v2474 = vpow.pop %v2473
  %v2475 = vmul.f32 %v2304, 1.442695
  %v2476 = vpow.pop %v2475
  %v2477 = vmul.f32 %v2305, 1.442695
  %v2478 = vpow.pop %v2477
  %v2479 = vmul.f32 %v2306, 1.442695
  %v2480 = vpow.pop %v2479
  %v2481 = vmul.f32 %v2307, 1.442695
  %v2482 = vpow.pop %v2481
  %v2483 = vmul.f32 %v2308, 1.442695
  %v2484 = vpow.pop %v2483
  %v2485 = vmul.f32 %v2309, 1.442695
  %v2486 = vpow.pop %v2485
  %v2487 = vmul.f32 %v2310, 1.442695
  %v2488 = vpow.pop %v2487
  %v2489 = vmul.f32 %v2311, 1.442695
  %v2490 = vpow.pop %v2489
  %v2491 = vmul.f32 %v2312, 1.442695
  %v2492 = vpow.pop %v2491
  %v2493 = vmul.f32 %v2313, 1.442695
  %v2494 = vpow.pop %v2493
  %v2495 = vmul.f32 %v2314, 1.442695
  %v2496 = vpow.pop %v2495
  %v2497 = vmul.f32 %v2315, 1.442695
  %v2498 = vpow.pop %v2497
  %v2499 = vmul.f32 %v2316, 1.442695
  %v2500 = vpow.pop %v2499
  %v2501 = vmul.f32 %v2317, 1.442695
  %v2502 = vpow.pop %v2501
  %v2503 = vmul.f32 %v2318, 1.442695
  %v2504 = vpow.pop %v2503
  %v2505 = vmul.f32 %v2319, 1.442695
  %v2506 = vpow.pop %v2505
  %v2507 = vmul.f32 %v2320, 1.442695
  %v2508 = vpow.pop %v2507
  %v2509 = vmul.f32 %v2321, 1.442695
  %v2510 = vpow.pop %v2509
  %v2511 = vmul.f32 %v2322, 1.442695
  %v2512 = vpow.pop %v2511
  %v2513 = vmul.f32 %v2323, 1.442695
  %v2514 = vpow.pop %v2513
  %v2515 = vmul.f32 %v2324, 1.442695
  %v2516 = vpow.pop %v2515
  %v2517 = vmul.f32 %v2325, 1.442695
  %v2518 = vpow.pop %v2517
  %v2519 = vmul.f32 %v2326, 1.442695
  %v2520 = vpow.pop %v2519
  %v2521 = vmul.f32 %v2327, 1.442695
  %v2522 = vpow.pop %v2521
  %v2523 = vmul.f32 %v2328, 1.442695
  %v2524 = vpow.pop %v2523
  %v2525 = vmul.f32 %v2329, 1.442695
  %v2526 = vpow.pop %v2525
  %v2527 = vmul.f32 %v2330, 1.442695
  %v2528 = vpow.pop %v2527
  %v2529 = vmul.f32 %v2331, 1.442695
  %v2530 = vpow.pop %v2529
  %v2531 = vmul.f32 %v2332, 1.442695
  %v2532 = vpow.pop %v2531
  %v2533 = vmul.f32 %v2333, 1.442695
  %v2534 = vpow.pop %v2533
  %v2535 = vmul.f32 %v2334, 1.442695
  %v2536 = vpow.pop %v2535
  %v2537 = vmul.f32 %v2335, 1.442695
  %v2538 = vpow.pop %v2537
  %v2539 = vmul.f32 %v2336, 1.442695
  %v2540 = vpow.pop %v2539
  %v2541 = vmul.f32 %v2337, 1.442695
  %v2542 = vpow.pop %v2541
  %v2543 = vmul.f32 %v2338, 1.442695
  %v2544 = vpow.pop %v2543
  %v2545 = vmul.f32 %v2339, 1.442695
  %v2546 = vpow.pop %v2545
  %v2547 = vmul.f32 %v2340, 1.442695
  %v2548 = vpow.pop %v2547
  %v2549 = vmul.f32 %v2341, 1.442695
  %v2550 = vpow.pop %v2549
  %v2551 = vmul.f32 %v2342, 1.442695
  %v2552 = vpow.pop %v2551
  %v2553 = vmul.f32 %v2343, 1.442695
  %v2554 = vpow.pop %v2553
  %v2555 = vmul.f32 %v2344, 1.442695
  %v2556 = vpow.pop %v2555
  %v2557 = vmul.f32 %v2345, 1.442695
  %v2558 = vpow.pop %v2557
  %v2559 = vmul.f32 %v2346, 1.442695
  %v2560 = vpow.pop %v2559
  %v2561 = vmul.f32 %v2347, 1.442695
  %v2562 = vpow.pop %v2561
  %v2563 = vmul.f32 %v2348, 1.442695
  %v2564 = vpow.pop %v2563
  %v2565 = vmul.f32 %v2349, 1.442695
  %v2566 = vpow.pop %v2565
  %v2567 = vmul.f32 %v2350, 1.442695
  %v2568 = vpow.pop %v2567
  %v2569 = vmul.f32 %v2351, 1.442695
  %v2570 = vpow.pop %v2569
  %v2571 = vmul.f32 %v2352, 1.442695
  %v2572 = vpow.pop %v2571
  %v2573 = vmul.f32 %v2353, 1.442695
  %v2574 = vpow.pop %v2573
  %v2575 = vmul.f32 %v2354, 1.442695
  %v2576 = vpow.pop %v2575
  %v2577 = vmul.f32 %v2355, 1.442695
  %v2578 = vpow.pop %v2577
  %v2579 = vmul.f32 %v2356, 1.442695
  %v2580 = vpow.pop %v2579
  %v2581 = vmul.f32 %v2357, 1.442695
  %v2582 = vpow.pop %v2581
  %v2583 = vmul.f32 %v2358, 1.442695
  %v2584 = vpow.pop %v2583
  %v2585 = vmul.f32 %v2359, 1.442695
  %v2586 = vpow.pop %v2585
  %v2587 = vmul.f32 %v2360, 1.442695
  %v2588 = vpow.pop %v2587
  %v2589 = vmul.f32 %v2361, 1.442695
  %v2590 = vpow.pop %v2589
  %v2591 = vmul.f32 %v2362, 1.442695
  %v2592 = vpow.pop %v2591
  %v2593 = vmul.f32 %v2363, 1.442695
  %v2594 = vpow.pop %v2593
  %v2595 = vmul.f32 %v2364, 1.442695
  %v2596 = vpow.pop %v2595
  %v2597 = vmul.f32 %v2365, 1.442695
  %v2598 = vpow.pop %v2597
  %v2599 = vmul.f32 %v2366, 1.442695
  %v2600 = vpow.pop %v2599
  %v2601 = vmul.f32 %v2367, 1.442695
  %v2602 = vpow.pop %v2601
  %v2603 = vmul.f32 %v2368, 1.442695
  %v2604 = vpow.pop %v2603
  %v2605 = vmul.f32 %v2369, 1.442695
  %v2606 = vpow.pop %v2605
  %v2607 = vmul.f32 %v2370, 1.442695
  %v2608 = vpow.pop %v2607
  %v2609 = vmul.f32 %v2371, 1.442695
  %v2610 = vpow.pop %v2609
  %v2611 = vmul.f32 %v2372, 1.442695
  %v2612 = vpow.pop %v2611
  %v2613 = vmul.f32 %v2373, 1.442695
  %v2614 = vpow.pop %v2613
  %v2615 = vmul.f32 %v2374, 1.442695
  %v2616 = vpow.pop %v2615
  %v2617 = vmul.f32 %v2375, 1.442695
  %v2618 = vpow.pop %v2617
  %v2619 = vmul.f32 %v2376, 1.442695
  %v2620 = vpow.pop %v2619
  %v2621 = vmul.f32 %v2377, 1.442695
  %v2622 = vpow.pop %v2621
  %v2623 = vmul.f32 %v2378, 1.442695
  %v2624 = vpow.pop %v2623
  %v2625 = vmul.f32 %v2379, 1.442695
  %v2626 = vpow.pop %v2625
  %v2627 = vmul.f32 %v2380, 1.442695
  %v2628 = vpow.pop %v2627
  %v2629 = vmul.f32 %v2381, 1.442695
  %v2630 = vpow.pop %v2629
  %v2631 = vmul.f32 %v2382, 1.442695
  %v2632 = vpow.pop %v2631
  %v2633 = vmul.f32 %v2383, 1.442695
  %v2634 = vpow.pop %v2633
  %v2635 = vmul.f32 %v2384, 1.442695
  %v2636 = vpow.pop %v2635
  %v2637 = vmul.f32 %v2385, 1.442695
  %v2638 = vpow.pop %v2637
  %v2639 = vmul.f32 %v2386, 1.442695
  %v2640 = vpow.pop %v2639
  %v2641 = vmul.f32 %v2387, 1.442695
  %v2642 = vpow.pop %v2641
  %v2643 = vmul.f32 %v2388, 1.442695
  %v2644 = vpow.pop %v2643
  %2645 = vadd.xlane.f32.xlu0 %v2390
  %v2646 = vpop.xlane.xlu0 %2645
  %2647 = vadd.xlane.f32.xlu0 %v2392
  %v2648 = vpop.xlane.xlu0 %2647
  %2649 = vadd.xlane.f32.xlu0 %v2394
  %v2650 = vpop.xlane.xlu0 %2649
  %2651 = vadd.xlane.f32.xlu0 %v2396
  %v2652 = vpop.xlane.xlu0 %2651
  %2653 = vadd.xlane.f32.xlu0 %v2398
  %v2654 = vpop.xlane.xlu0 %2653
  %2655 = vadd.xlane.f32.xlu0 %v2400
  %v2656 = vpop.xlane.xlu0 %2655
  %2657 = vadd.xlane.f32.xlu0 %v2402
  %v2658 = vpop.xlane.xlu0 %2657
  %2659 = vadd.xlane.f32.xlu0 %v2404
  %v2660 = vpop.xlane.xlu0 %2659
  %2661 = vadd.xlane.f32.xlu0 %v2406
  %v2662 = vpop.xlane.xlu0 %2661
  %2663 = vadd.xlane.f32.xlu0 %v2408
  %v2664 = vpop.xlane.xlu0 %2663
  %2665 = vadd.xlane.f32.xlu0 %v2410
  %v2666 = vpop.xlane.xlu0 %2665
  %2667 = vadd.xlane.f32.xlu0 %v2412
  %v2668 = vpop.xlane.xlu0 %2667
  %2669 = vadd.xlane.f32.xlu0 %v2414
  %v2670 = vpop.xlane.xlu0 %2669
  %2671 = vadd.xlane.f32.xlu0 %v2416
  %v2672 = vpop.xlane.xlu0 %2671
  %2673 = vadd.xlane.f32.xlu0 %v2418
  %v2674 = vpop.xlane.xlu0 %2673
  %2675 = vadd.xlane.f32.xlu0 %v2420
  %v2676 = vpop.xlane.xlu0 %2675
  %2677 = vadd.xlane.f32.xlu0 %v2422
  %v2678 = vpop.xlane.xlu0 %2677
  %2679 = vadd.xlane.f32.xlu0 %v2424
  %v2680 = vpop.xlane.xlu0 %2679
  %2681 = vadd.xlane.f32.xlu0 %v2426
  %v2682 = vpop.xlane.xlu0 %2681
  %2683 = vadd.xlane.f32.xlu0 %v2428
  %v2684 = vpop.xlane.xlu0 %2683
  %2685 = vadd.xlane.f32.xlu0 %v2430
  %v2686 = vpop.xlane.xlu0 %2685
  %2687 = vadd.xlane.f32.xlu0 %v2432
  %v2688 = vpop.xlane.xlu0 %2687
  %2689 = vadd.xlane.f32.xlu0 %v2434
  %v2690 = vpop.xlane.xlu0 %2689
  %2691 = vadd.xlane.f32.xlu0 %v2436
  %v2692 = vpop.xlane.xlu0 %2691
  %2693 = vadd.xlane.f32.xlu0 %v2438
  %v2694 = vpop.xlane.xlu0 %2693
  %2695 = vadd.xlane.f32.xlu0 %v2440
  %v2696 = vpop.xlane.xlu0 %2695
  %2697 = vadd.xlane.f32.xlu0 %v2442
  %v2698 = vpop.xlane.xlu0 %2697
  %2699 = vadd.xlane.f32.xlu0 %v2444
  %v2700 = vpop.xlane.xlu0 %2699
  %2701 = vadd.xlane.f32.xlu0 %v2446
  %v2702 = vpop.xlane.xlu0 %2701
  %2703 = vadd.xlane.f32.xlu0 %v2448
  %v2704 = vpop.xlane.xlu0 %2703
  %2705 = vadd.xlane.f32.xlu0 %v2450
  %v2706 = vpop.xlane.xlu0 %2705
  %2707 = vadd.xlane.f32.xlu0 %v2452
  %v2708 = vpop.xlane.xlu0 %2707
  %2709 = vadd.xlane.f32.xlu0 %v2454
  %v2710 = vpop.xlane.xlu0 %2709
  %2711 = vadd.xlane.f32.xlu0 %v2456
  %v2712 = vpop.xlane.xlu0 %2711
  %2713 = vadd.xlane.f32.xlu0 %v2458
  %v2714 = vpop.xlane.xlu0 %2713
  %2715 = vadd.xlane.f32.xlu0 %v2460
  %v2716 = vpop.xlane.xlu0 %2715
  %2717 = vadd.xlane.f32.xlu0 %v2462
  %v2718 = vpop.xlane.xlu0 %2717
  %2719 = vadd.xlane.f32.xlu0 %v2464
  %v2720 = vpop.xlane.xlu0 %2719
  %2721 = vadd.xlane.f32.xlu0 %v2466
  %v2722 = vpop.xlane.xlu0 %2721
  %2723 = vadd.xlane.f32.xlu0 %v2468
  %v2724 = vpop.xlane.xlu0 %2723
  %2725 = vadd.xlane.f32.xlu0 %v2470
  %v2726 = vpop.xlane.xlu0 %2725
  %2727 = vadd.xlane.f32.xlu0 %v2472
  %v2728 = vpop.xlane.xlu0 %2727
  %2729 = vadd.xlane.f32.xlu0 %v2474
  %v2730 = vpop.xlane.xlu0 %2729
  %2731 = vadd.xlane.f32.xlu0 %v2476
  %v2732 = vpop.xlane.xlu0 %2731
  %2733 = vadd.xlane.f32.xlu0 %v2478
  %v2734 = vpop.xlane.xlu0 %2733
  %2735 = vadd.xlane.f32.xlu0 %v2480
  %v2736 = vpop.xlane.xlu0 %2735
  %2737 = vadd.xlane.f32.xlu0 %v2482
  %v2738 = vpop.xlane.xlu0 %2737
  %2739 = vadd.xlane.f32.xlu0 %v2484
  %v2740 = vpop.xlane.xlu0 %2739
  %2741 = vadd.xlane.f32.xlu0 %v2486
  %v2742 = vpop.xlane.xlu0 %2741
  %2743 = vadd.xlane.f32.xlu0 %v2488
  %v2744 = vpop.xlane.xlu0 %2743
  %2745 = vadd.xlane.f32.xlu0 %v2490
  %v2746 = vpop.xlane.xlu0 %2745
  %2747 = vadd.xlane.f32.xlu0 %v2492
  %v2748 = vpop.xlane.xlu0 %2747
  %2749 = vadd.xlane.f32.xlu0 %v2494
  %v2750 = vpop.xlane.xlu0 %2749
  %2751 = vadd.xlane.f32.xlu0 %v2496
  %v2752 = vpop.xlane.xlu0 %2751
  %2753 = vadd.xlane.f32.xlu0 %v2498
  %v2754 = vpop.xlane.xlu0 %2753
  %2755 = vadd.xlane.f32.xlu0 %v2500
  %v2756 = vpop.xlane.xlu0 %2755
  %2757 = vadd.xlane.f32.xlu0 %v2502
  %v2758 = vpop.xlane.xlu0 %2757
  %2759 = vadd.xlane.f32.xlu0 %v2504
  %v2760 = vpop.xlane.xlu0 %2759
  %2761 = vadd.xlane.f32.xlu0 %v2506
  %v2762 = vpop.xlane.xlu0 %2761
  %2763 = vadd.xlane.f32.xlu0 %v2508
  %v2764 = vpop.xlane.xlu0 %2763
  %2765 = vadd.xlane.f32.xlu0 %v2510
  %v2766 = vpop.xlane.xlu0 %2765
  %2767 = vadd.xlane.f32.xlu0 %v2512
  %v2768 = vpop.xlane.xlu0 %2767
  %2769 = vadd.xlane.f32.xlu0 %v2514
  %v2770 = vpop.xlane.xlu0 %2769
  %2771 = vadd.xlane.f32.xlu0 %v2516
  %v2772 = vpop.xlane.xlu0 %2771
  %2773 = vadd.xlane.f32.xlu0 %v2518
  %v2774 = vpop.xlane.xlu0 %2773
  %2775 = vadd.xlane.f32.xlu0 %v2520
  %v2776 = vpop.xlane.xlu0 %2775
  %2777 = vadd.xlane.f32.xlu0 %v2522
  %v2778 = vpop.xlane.xlu0 %2777
  %2779 = vadd.xlane.f32.xlu0 %v2524
  %v2780 = vpop.xlane.xlu0 %2779
  %2781 = vadd.xlane.f32.xlu0 %v2526
  %v2782 = vpop.xlane.xlu0 %2781
  %2783 = vadd.xlane.f32.xlu0 %v2528
  %v2784 = vpop.xlane.xlu0 %2783
  %2785 = vadd.xlane.f32.xlu0 %v2530
  %v2786 = vpop.xlane.xlu0 %2785
  %2787 = vadd.xlane.f32.xlu0 %v2532
  %v2788 = vpop.xlane.xlu0 %2787
  %2789 = vadd.xlane.f32.xlu0 %v2534
  %v2790 = vpop.xlane.xlu0 %2789
  %2791 = vadd.xlane.f32.xlu0 %v2536
  %v2792 = vpop.xlane.xlu0 %2791
  %2793 = vadd.xlane.f32.xlu0 %v2538
  %v2794 = vpop.xlane.xlu0 %2793
  %2795 = vadd.xlane.f32.xlu0 %v2540
  %v2796 = vpop.xlane.xlu0 %2795
  %2797 = vadd.xlane.f32.xlu0 %v2542
  %v2798 = vpop.xlane.xlu0 %2797
  %2799 = vadd.xlane.f32.xlu0 %v2544
  %v2800 = vpop.xlane.xlu0 %2799
  %2801 = vadd.xlane.f32.xlu0 %v2546
  %v2802 = vpop.xlane.xlu0 %2801
  %2803 = vadd.xlane.f32.xlu0 %v2548
  %v2804 = vpop.xlane.xlu0 %2803
  %2805 = vadd.xlane.f32.xlu0 %v2550
  %v2806 = vpop.xlane.xlu0 %2805
  %2807 = vadd.xlane.f32.xlu0 %v2552
  %v2808 = vpop.xlane.xlu0 %2807
  %2809 = vadd.xlane.f32.xlu0 %v2554
  %v2810 = vpop.xlane.xlu0 %2809
  %2811 = vadd.xlane.f32.xlu0 %v2556
  %v2812 = vpop.xlane.xlu0 %2811
  %2813 = vadd.xlane.f32.xlu0 %v2558
  %v2814 = vpop.xlane.xlu0 %2813
  %2815 = vadd.xlane.f32.xlu0 %v2560
  %v2816 = vpop.xlane.xlu0 %2815
  %2817 = vadd.xlane.f32.xlu0 %v2562
  %v2818 = vpop.xlane.xlu0 %2817
  %2819 = vadd.xlane.f32.xlu0 %v2564
  %v2820 = vpop.xlane.xlu0 %2819
  %2821 = vadd.xlane.f32.xlu0 %v2566
  %v2822 = vpop.xlane.xlu0 %2821
  %2823 = vadd.xlane.f32.xlu0 %v2568
  %v2824 = vpop.xlane.xlu0 %2823
  %2825 = vadd.xlane.f32.xlu0 %v2570
  %v2826 = vpop.xlane.xlu0 %2825
  %2827 = vadd.xlane.f32.xlu0 %v2572
  %v2828 = vpop.xlane.xlu0 %2827
  %2829 = vadd.xlane.f32.xlu0 %v2574
  %v2830 = vpop.xlane.xlu0 %2829
  %2831 = vadd.xlane.f32.xlu0 %v2576
  %v2832 = vpop.xlane.xlu0 %2831
  %2833 = vadd.xlane.f32.xlu0 %v2578
  %v2834 = vpop.xlane.xlu0 %2833
  %2835 = vadd.xlane.f32.xlu0 %v2580
  %v2836 = vpop.xlane.xlu0 %2835
  %2837 = vadd.xlane.f32.xlu0 %v2582
  %v2838 = vpop.xlane.xlu0 %2837
  %2839 = vadd.xlane.f32.xlu0 %v2584
  %v2840 = vpop.xlane.xlu0 %2839
  %2841 = vadd.xlane.f32.xlu0 %v2586
  %v2842 = vpop.xlane.xlu0 %2841
  %2843 = vadd.xlane.f32.xlu0 %v2588
  %v2844 = vpop.xlane.xlu0 %2843
  %2845 = vadd.xlane.f32.xlu0 %v2590
  %v2846 = vpop.xlane.xlu0 %2845
  %2847 = vadd.xlane.f32.xlu0 %v2592
  %v2848 = vpop.xlane.xlu0 %2847
  %2849 = vadd.xlane.f32.xlu0 %v2594
  %v2850 = vpop.xlane.xlu0 %2849
  %2851 = vadd.xlane.f32.xlu0 %v2596
  %v2852 = vpop.xlane.xlu0 %2851
  %2853 = vadd.xlane.f32.xlu0 %v2598
  %v2854 = vpop.xlane.xlu0 %2853
  %2855 = vadd.xlane.f32.xlu0 %v2600
  %v2856 = vpop.xlane.xlu0 %2855
  %2857 = vadd.xlane.f32.xlu0 %v2602
  %v2858 = vpop.xlane.xlu0 %2857
  %2859 = vadd.xlane.f32.xlu0 %v2604
  %v2860 = vpop.xlane.xlu0 %2859
  %2861 = vadd.xlane.f32.xlu0 %v2606
  %v2862 = vpop.xlane.xlu0 %2861
  %2863 = vadd.xlane.f32.xlu0 %v2608
  %v2864 = vpop.xlane.xlu0 %2863
  %2865 = vadd.xlane.f32.xlu0 %v2610
  %v2866 = vpop.xlane.xlu0 %2865
  %2867 = vadd.xlane.f32.xlu0 %v2612
  %v2868 = vpop.xlane.xlu0 %2867
  %2869 = vadd.xlane.f32.xlu0 %v2614
  %v2870 = vpop.xlane.xlu0 %2869
  %2871 = vadd.xlane.f32.xlu0 %v2616
  %v2872 = vpop.xlane.xlu0 %2871
  %2873 = vadd.xlane.f32.xlu0 %v2618
  %v2874 = vpop.xlane.xlu0 %2873
  %2875 = vadd.xlane.f32.xlu0 %v2620
  %v2876 = vpop.xlane.xlu0 %2875
  %2877 = vadd.xlane.f32.xlu0 %v2622
  %v2878 = vpop.xlane.xlu0 %2877
  %2879 = vadd.xlane.f32.xlu0 %v2624
  %v2880 = vpop.xlane.xlu0 %2879
  %2881 = vadd.xlane.f32.xlu0 %v2626
  %v2882 = vpop.xlane.xlu0 %2881
  %2883 = vadd.xlane.f32.xlu0 %v2628
  %v2884 = vpop.xlane.xlu0 %2883
  %2885 = vadd.xlane.f32.xlu0 %v2630
  %v2886 = vpop.xlane.xlu0 %2885
  %2887 = vadd.xlane.f32.xlu0 %v2632
  %v2888 = vpop.xlane.xlu0 %2887
  %2889 = vadd.xlane.f32.xlu0 %v2634
  %v2890 = vpop.xlane.xlu0 %2889
  %2891 = vadd.xlane.f32.xlu0 %v2636
  %v2892 = vpop.xlane.xlu0 %2891
  %2893 = vadd.xlane.f32.xlu0 %v2638
  %v2894 = vpop.xlane.xlu0 %2893
  %2895 = vadd.xlane.f32.xlu0 %v2640
  %v2896 = vpop.xlane.xlu0 %2895
  %2897 = vadd.xlane.f32.xlu0 %v2642
  %v2898 = vpop.xlane.xlu0 %2897
  %2899 = vadd.xlane.f32.xlu0 %v2644
  %v2900 = vpop.xlane.xlu0 %2899
  %v2901 = vpack.c.bf16 %v2392, %v2390
  %v2902 = vpack.c.bf16 %v2396, %v2394
  %v2903 = vpack.c.bf16 %v2400, %v2398
  %v2904 = vpack.c.bf16 %v2404, %v2402
  %v2905 = vpack.c.bf16 %v2408, %v2406
  %v2906 = vpack.c.bf16 %v2412, %v2410
  %v2907 = vpack.c.bf16 %v2416, %v2414
  %v2908 = vpack.c.bf16 %v2420, %v2418
  %v2909 = vpack.c.bf16 %v2424, %v2422
  %v2910 = vpack.c.bf16 %v2428, %v2426
  %v2911 = vpack.c.bf16 %v2432, %v2430
  %v2912 = vpack.c.bf16 %v2436, %v2434
  %v2913 = vpack.c.bf16 %v2440, %v2438
  %v2914 = vpack.c.bf16 %v2444, %v2442
  %v2915 = vpack.c.bf16 %v2448, %v2446
  %v2916 = vpack.c.bf16 %v2452, %v2450
  %v2917 = vpack.c.bf16 %v2456, %v2454
  %v2918 = vpack.c.bf16 %v2460, %v2458
  %v2919 = vpack.c.bf16 %v2464, %v2462
  %v2920 = vpack.c.bf16 %v2468, %v2466
  %v2921 = vpack.c.bf16 %v2472, %v2470
  %v2922 = vpack.c.bf16 %v2476, %v2474
  %v2923 = vpack.c.bf16 %v2480, %v2478
  %v2924 = vpack.c.bf16 %v2484, %v2482
  %v2925 = vpack.c.bf16 %v2488, %v2486
  %v2926 = vpack.c.bf16 %v2492, %v2490
  %v2927 = vpack.c.bf16 %v2496, %v2494
  %v2928 = vpack.c.bf16 %v2500, %v2498
  %v2929 = vpack.c.bf16 %v2504, %v2502
  %v2930 = vpack.c.bf16 %v2508, %v2506
  %v2931 = vpack.c.bf16 %v2512, %v2510
  %v2932 = vpack.c.bf16 %v2516, %v2514
  %v2933 = vpack.c.bf16 %v2520, %v2518
  %v2934 = vpack.c.bf16 %v2524, %v2522
  %v2935 = vpack.c.bf16 %v2528, %v2526
  %v2936 = vpack.c.bf16 %v2532, %v2530
  %v2937 = vpack.c.bf16 %v2536, %v2534
  %v2938 = vpack.c.bf16 %v2540, %v2538
  %v2939 = vpack.c.bf16 %v2544, %v2542
  %v2940 = vpack.c.bf16 %v2548, %v2546
  %v2941 = vpack.c.bf16 %v2552, %v2550
  %v2942 = vpack.c.bf16 %v2556, %v2554
  %v2943 = vpack.c.bf16 %v2560, %v2558
  %v2944 = vpack.c.bf16 %v2564, %v2562
  %v2945 = vpack.c.bf16 %v2568, %v2566
  %v2946 = vpack.c.bf16 %v2572, %v2570
  %v2947 = vpack.c.bf16 %v2576, %v2574
  %v2948 = vpack.c.bf16 %v2580, %v2578
  %v2949 = vpack.c.bf16 %v2584, %v2582
  %v2950 = vpack.c.bf16 %v2588, %v2586
  %v2951 = vpack.c.bf16 %v2592, %v2590
  %v2952 = vpack.c.bf16 %v2596, %v2594
  %v2953 = vpack.c.bf16 %v2600, %v2598
  %v2954 = vpack.c.bf16 %v2604, %v2602
  %v2955 = vpack.c.bf16 %v2608, %v2606
  %v2956 = vpack.c.bf16 %v2612, %v2610
  %v2957 = vpack.c.bf16 %v2616, %v2614
  %v2958 = vpack.c.bf16 %v2620, %v2618
  %v2959 = vpack.c.bf16 %v2624, %v2622
  %v2960 = vpack.c.bf16 %v2628, %v2626
  %v2961 = vpack.c.bf16 %v2632, %v2630
  %v2962 = vpack.c.bf16 %v2636, %v2634
  %v2963 = vpack.c.bf16 %v2640, %v2638
  %v2964 = vpack.c.bf16 %v2644, %v2642
  %v2965 = vpack.c.bf16 %v117, %v114
  %v2966 = vpack.c.bf16 %v125, %v122
  %v2967 = vpack.c.bf16 %v133, %v130
  %v2968 = vpack.c.bf16 %v141, %v138
  %v2969 = vpack.c.bf16 %v149, %v146
  %v2970 = vpack.c.bf16 %v157, %v154
  %v2971 = vpack.c.bf16 %v165, %v162
  %v2972 = vpack.c.bf16 %v173, %v170
  %2973 = vmatprep.subr.bf16.mxu0 0
  %2974 = vmatpush1.bf16.msra.mxu0 %v2972
  %2975 = vmatprep.subr.bf16.mxu0 0
  %2976 = vmatpush1.bf16.msra.mxu0 %v2971
  %2977 = vmatprep.subr.bf16.mxu0 0
  %2978 = vmatpush1.bf16.msra.mxu0 %v2970
  %2979 = vmatprep.subr.bf16.mxu0 0
  %2980 = vmatpush1.bf16.msra.mxu0 %v2969
  %2981 = vmatprep.subr.bf16.mxu0 0
  %2982 = vmatpush1.bf16.msra.mxu0 %v2968
  %2983 = vmatprep.subr.bf16.mxu0 0
  %2984 = vmatpush1.bf16.msra.mxu0 %v2967
  %2985 = vmatprep.subr.bf16.mxu0 0
  %2986 = vmatpush1.bf16.msra.mxu0 %v2966
  %2987 = vmatprep.subr.bf16.mxu0 0
  %2988 = vmatpush1.bf16.msra.mxu0 %v2965
  %2989 = vmatprep.subr.bf16.mxu0 0
  %2990 = vmatpush2.bf16.msra.mxu0 0
  %2991 = vmatprep.subr.bf16.mxu0 0
  %2992 = vmatpush2.bf16.msra.mxu0 0
  %2993 = vmatprep.subr.bf16.mxu0 0
  %2994 = vmatpush2.bf16.msra.mxu0 0
  %2995 = vmatprep.subr.bf16.mxu0 0
  %2996 = vmatpush2.bf16.msra.mxu0 0
  %2997 = vmatprep.subr.bf16.mxu0 0
  %2998 = vmatpush2.bf16.msra.mxu0 0
  %2999 = vmatprep.subr.bf16.mxu0 0
  %3000 = vmatpush2.bf16.msra.mxu0 0
  %3001 = vmatprep.subr.bf16.mxu0 0
  %3002 = vmatpush2.bf16.msra.mxu0 0
  %3003 = vmatprep.subr.bf16.mxu0 0
  %3004 = vmatpush2.bf16.msra.mxu0 0
  %3005 = vmatprep.mubr.bf16.mxu0 0
  %3006 = vmatmul.mubr.bf16.gmra.mxu0 %v2901
  %v3007 = vpop.f32.mrf.mxu0
  %v3008 = vadd.f32 0.0, %v3007
  %v3009 = vpop.f32.mrf.mxu0
  %v3010 = vpop.f32.mrf.mxu0
  %v3011 = vadd.f32 0.0, %v3010
  %v3012 = vpop.f32.mrf.mxu0
  %3013 = vmatprep.mubr.bf16.mxu0 0
  %3014 = vmatmul.mubr.bf16.gmra.mxu0 %v2902
  %v3015 = vpop.f32.mrf.mxu0
  %v3016 = vadd.f32 0.0, %v3015
  %v3017 = vpop.f32.mrf.mxu0
  %v3018 = vpop.f32.mrf.mxu0
  %v3019 = vadd.f32 0.0, %v3018
  %v3020 = vpop.f32.mrf.mxu0
  %3021 = vmatprep.mubr.bf16.mxu0 0
  %3022 = vmatmul.mubr.bf16.gmra.mxu0 %v2903
  %v3023 = vpop.f32.mrf.mxu0
  %v3024 = vadd.f32 0.0, %v3023
  %v3025 = vpop.f32.mrf.mxu0
  %v3026 = vpop.f32.mrf.mxu0
  %v3027 = vadd.f32 0.0, %v3026
  %v3028 = vpop.f32.mrf.mxu0
  %3029 = vmatprep.mubr.bf16.mxu0 0
  %3030 = vmatmul.mubr.bf16.gmra.mxu0 %v2904
  %v3031 = vpop.f32.mrf.mxu0
  %v3032 = vadd.f32 0.0, %v3031
  %v3033 = vpop.f32.mrf.mxu0
  %v3034 = vpop.f32.mrf.mxu0
  %v3035 = vadd.f32 0.0, %v3034
  %v3036 = vpop.f32.mrf.mxu0
  %3037 = vmatprep.mubr.bf16.mxu0 0
  %3038 = vmatmul.mubr.bf16.gmra.mxu0 %v2905
  %v3039 = vpop.f32.mrf.mxu0
  %v3040 = vadd.f32 0.0, %v3039
  %v3041 = vpop.f32.mrf.mxu0
  %v3042 = vpop.f32.mrf.mxu0
  %v3043 = vadd.f32 0.0, %v3042
  %v3044 = vpop.f32.mrf.mxu0
  %3045 = vmatprep.mubr.bf16.mxu0 0
  %3046 = vmatmul.mubr.bf16.gmra.mxu0 %v2906
  %v3047 = vpop.f32.mrf.mxu0
  %v3048 = vadd.f32 0.0, %v3047
  %v3049 = vpop.f32.mrf.mxu0
  %v3050 = vpop.f32.mrf.mxu0
  %v3051 = vadd.f32 0.0, %v3050
  %v3052 = vpop.f32.mrf.mxu0
  %3053 = vmatprep.mubr.bf16.mxu0 0
  %3054 = vmatmul.mubr.bf16.gmra.mxu0 %v2907
  %v3055 = vpop.f32.mrf.mxu0
  %v3056 = vadd.f32 0.0, %v3055
  %v3057 = vpop.f32.mrf.mxu0
  %v3058 = vpop.f32.mrf.mxu0
  %v3059 = vadd.f32 0.0, %v3058
  %v3060 = vpop.f32.mrf.mxu0
  %3061 = vmatprep.mubr.bf16.mxu0 0
  %3062 = vmatmul.mubr.bf16.gmra.mxu0 %v2908
  %v3063 = vpop.f32.mrf.mxu0
  %v3064 = vadd.f32 0.0, %v3063
  %v3065 = vpop.f32.mrf.mxu0
  %v3066 = vpop.f32.mrf.mxu0
  %v3067 = vadd.f32 0.0, %v3066
  %v3068 = vpop.f32.mrf.mxu0
  %3069 = vmatprep.mubr.bf16.mxu0 0
  %3070 = vmatmul.mubr.bf16.gmra.mxu0 %v2909
  %v3071 = vpop.f32.mrf.mxu0
  %v3072 = vadd.f32 0.0, %v3071
  %v3073 = vpop.f32.mrf.mxu0
  %v3074 = vpop.f32.mrf.mxu0
  %v3075 = vadd.f32 0.0, %v3074
  %v3076 = vpop.f32.mrf.mxu0
  %3077 = vmatprep.mubr.bf16.mxu0 0
  %3078 = vmatmul.mubr.bf16.gmra.mxu0 %v2910
  %v3079 = vpop.f32.mrf.mxu0
  %v3080 = vadd.f32 0.0, %v3079
  %v3081 = vpop.f32.mrf.mxu0
  %v3082 = vpop.f32.mrf.mxu0
  %v3083 = vadd.f32 0.0, %v3082
  %v3084 = vpop.f32.mrf.mxu0
  %3085 = vmatprep.mubr.bf16.mxu0 0
  %3086 = vmatmul.mubr.bf16.gmra.mxu0 %v2911
  %v3087 = vpop.f32.mrf.mxu0
  %v3088 = vadd.f32 0.0, %v3087
  %v3089 = vpop.f32.mrf.mxu0
  %v3090 = vpop.f32.mrf.mxu0
  %v3091 = vadd.f32 0.0, %v3090
  %v3092 = vpop.f32.mrf.mxu0
  %3093 = vmatprep.mubr.bf16.mxu0 0
  %3094 = vmatmul.mubr.bf16.gmra.mxu0 %v2912
  %v3095 = vpop.f32.mrf.mxu0
  %v3096 = vadd.f32 0.0, %v3095
  %v3097 = vpop.f32.mrf.mxu0
  %v3098 = vpop.f32.mrf.mxu0
  %v3099 = vadd.f32 0.0, %v3098
  %v3100 = vpop.f32.mrf.mxu0
  %3101 = vmatprep.mubr.bf16.mxu0 0
  %3102 = vmatmul.mubr.bf16.gmra.mxu0 %v2913
  %v3103 = vpop.f32.mrf.mxu0
  %v3104 = vadd.f32 0.0, %v3103
  %v3105 = vpop.f32.mrf.mxu0
  %v3106 = vpop.f32.mrf.mxu0
  %v3107 = vadd.f32 0.0, %v3106
  %v3108 = vpop.f32.mrf.mxu0
  %3109 = vmatprep.mubr.bf16.mxu0 0
  %3110 = vmatmul.mubr.bf16.gmra.mxu0 %v2914
  %v3111 = vpop.f32.mrf.mxu0
  %v3112 = vadd.f32 0.0, %v3111
  %v3113 = vpop.f32.mrf.mxu0
  %v3114 = vpop.f32.mrf.mxu0
  %v3115 = vadd.f32 0.0, %v3114
  %v3116 = vpop.f32.mrf.mxu0
  %3117 = vmatprep.mubr.bf16.mxu0 0
  %3118 = vmatmul.mubr.bf16.gmra.mxu0 %v2915
  %v3119 = vpop.f32.mrf.mxu0
  %v3120 = vadd.f32 0.0, %v3119
  %v3121 = vpop.f32.mrf.mxu0
  %v3122 = vpop.f32.mrf.mxu0
  %v3123 = vadd.f32 0.0, %v3122
  %v3124 = vpop.f32.mrf.mxu0
  %3125 = vmatprep.mubr.bf16.mxu0 0
  %3126 = vmatmul.mubr.bf16.gmra.mxu0 %v2916
  %v3127 = vpop.f32.mrf.mxu0
  %v3128 = vadd.f32 0.0, %v3127
  %v3129 = vpop.f32.mrf.mxu0
  %v3130 = vpop.f32.mrf.mxu0
  %v3131 = vadd.f32 0.0, %v3130
  %v3132 = vpop.f32.mrf.mxu0
  %3133 = vmatprep.mubr.bf16.mxu0 0
  %3134 = vmatmul.mubr.bf16.gmra.mxu0 %v2917
  %v3135 = vpop.f32.mrf.mxu0
  %v3136 = vadd.f32 0.0, %v3135
  %v3137 = vpop.f32.mrf.mxu0
  %v3138 = vpop.f32.mrf.mxu0
  %v3139 = vadd.f32 0.0, %v3138
  %v3140 = vpop.f32.mrf.mxu0
  %3141 = vmatprep.mubr.bf16.mxu0 0
  %3142 = vmatmul.mubr.bf16.gmra.mxu0 %v2918
  %v3143 = vpop.f32.mrf.mxu0
  %v3144 = vadd.f32 0.0, %v3143
  %v3145 = vpop.f32.mrf.mxu0
  %v3146 = vpop.f32.mrf.mxu0
  %v3147 = vadd.f32 0.0, %v3146
  %v3148 = vpop.f32.mrf.mxu0
  %3149 = vmatprep.mubr.bf16.mxu0 0
  %3150 = vmatmul.mubr.bf16.gmra.mxu0 %v2919
  %v3151 = vpop.f32.mrf.mxu0
  %v3152 = vadd.f32 0.0, %v3151
  %v3153 = vpop.f32.mrf.mxu0
  %v3154 = vpop.f32.mrf.mxu0
  %v3155 = vadd.f32 0.0, %v3154
  %v3156 = vpop.f32.mrf.mxu0
  %3157 = vmatprep.mubr.bf16.mxu0 0
  %3158 = vmatmul.mubr.bf16.gmra.mxu0 %v2920
  %v3159 = vpop.f32.mrf.mxu0
  %v3160 = vadd.f32 0.0, %v3159
  %v3161 = vpop.f32.mrf.mxu0
  %v3162 = vpop.f32.mrf.mxu0
  %v3163 = vadd.f32 0.0, %v3162
  %v3164 = vpop.f32.mrf.mxu0
  %3165 = vmatprep.mubr.bf16.mxu0 0
  %3166 = vmatmul.mubr.bf16.gmra.mxu0 %v2921
  %v3167 = vpop.f32.mrf.mxu0
  %v3168 = vadd.f32 0.0, %v3167
  %v3169 = vpop.f32.mrf.mxu0
  %v3170 = vpop.f32.mrf.mxu0
  %v3171 = vadd.f32 0.0, %v3170
  %v3172 = vpop.f32.mrf.mxu0
  %3173 = vmatprep.mubr.bf16.mxu0 0
  %3174 = vmatmul.mubr.bf16.gmra.mxu0 %v2922
  %v3175 = vpop.f32.mrf.mxu0
  %v3176 = vadd.f32 0.0, %v3175
  %v3177 = vpop.f32.mrf.mxu0
  %v3178 = vpop.f32.mrf.mxu0
  %v3179 = vadd.f32 0.0, %v3178
  %v3180 = vpop.f32.mrf.mxu0
  %3181 = vmatprep.mubr.bf16.mxu0 0
  %3182 = vmatmul.mubr.bf16.gmra.mxu0 %v2923
  %v3183 = vpop.f32.mrf.mxu0
  %v3184 = vadd.f32 0.0, %v3183
  %v3185 = vpop.f32.mrf.mxu0
  %v3186 = vpop.f32.mrf.mxu0
  %v3187 = vadd.f32 0.0, %v3186
  %v3188 = vpop.f32.mrf.mxu0
  %3189 = vmatprep.mubr.bf16.mxu0 0
  %3190 = vmatmul.mubr.bf16.gmra.mxu0 %v2924
  %v3191 = vpop.f32.mrf.mxu0
  %v3192 = vadd.f32 0.0, %v3191
  %v3193 = vpop.f32.mrf.mxu0
  %v3194 = vpop.f32.mrf.mxu0
  %v3195 = vadd.f32 0.0, %v3194
  %v3196 = vpop.f32.mrf.mxu0
  %3197 = vmatprep.mubr.bf16.mxu0 0
  %3198 = vmatmul.mubr.bf16.gmra.mxu0 %v2925
  %v3199 = vpop.f32.mrf.mxu0
  %v3200 = vadd.f32 0.0, %v3199
  %v3201 = vpop.f32.mrf.mxu0
  %v3202 = vpop.f32.mrf.mxu0
  %v3203 = vadd.f32 0.0, %v3202
  %v3204 = vpop.f32.mrf.mxu0
  %3205 = vmatprep.mubr.bf16.mxu0 0
  %3206 = vmatmul.mubr.bf16.gmra.mxu0 %v2926
  %v3207 = vpop.f32.mrf.mxu0
  %v3208 = vadd.f32 0.0, %v3207
  %v3209 = vpop.f32.mrf.mxu0
  %v3210 = vpop.f32.mrf.mxu0
  %v3211 = vadd.f32 0.0, %v3210
  %v3212 = vpop.f32.mrf.mxu0
  %3213 = vmatprep.mubr.bf16.mxu0 0
  %3214 = vmatmul.mubr.bf16.gmra.mxu0 %v2927
  %v3215 = vpop.f32.mrf.mxu0
  %v3216 = vadd.f32 0.0, %v3215
  %v3217 = vpop.f32.mrf.mxu0
  %v3218 = vpop.f32.mrf.mxu0
  %v3219 = vadd.f32 0.0, %v3218
  %v3220 = vpop.f32.mrf.mxu0
  %3221 = vmatprep.mubr.bf16.mxu0 0
  %3222 = vmatmul.mubr.bf16.gmra.mxu0 %v2928
  %v3223 = vpop.f32.mrf.mxu0
  %v3224 = vadd.f32 0.0, %v3223
  %v3225 = vpop.f32.mrf.mxu0
  %v3226 = vpop.f32.mrf.mxu0
  %v3227 = vadd.f32 0.0, %v3226
  %v3228 = vpop.f32.mrf.mxu0
  %3229 = vmatprep.mubr.bf16.mxu0 0
  %3230 = vmatmul.mubr.bf16.gmra.mxu0 %v2929
  %v3231 = vpop.f32.mrf.mxu0
  %v3232 = vadd.f32 0.0, %v3231
  %v3233 = vpop.f32.mrf.mxu0
  %v3234 = vpop.f32.mrf.mxu0
  %v3235 = vadd.f32 0.0, %v3234
  %v3236 = vpop.f32.mrf.mxu0
  %3237 = vmatprep.mubr.bf16.mxu0 0
  %3238 = vmatmul.mubr.bf16.gmra.mxu0 %v2930
  %v3239 = vpop.f32.mrf.mxu0
  %v3240 = vadd.f32 0.0, %v3239
  %v3241 = vpop.f32.mrf.mxu0
  %v3242 = vpop.f32.mrf.mxu0
  %v3243 = vadd.f32 0.0, %v3242
  %v3244 = vpop.f32.mrf.mxu0
  %3245 = vmatprep.mubr.bf16.mxu0 0
  %3246 = vmatmul.mubr.bf16.gmra.mxu0 %v2931
  %v3247 = vpop.f32.mrf.mxu0
  %v3248 = vadd.f32 0.0, %v3247
  %v3249 = vpop.f32.mrf.mxu0
  %v3250 = vpop.f32.mrf.mxu0
  %v3251 = vadd.f32 0.0, %v3250
  %v3252 = vpop.f32.mrf.mxu0
  %3253 = vmatprep.mubr.bf16.mxu0 0
  %3254 = vmatmul.mubr.bf16.gmra.mxu0 %v2932
  %v3255 = vpop.f32.mrf.mxu0
  %v3256 = vadd.f32 0.0, %v3255
  %v3257 = vpop.f32.mrf.mxu0
  %v3258 = vpop.f32.mrf.mxu0
  %v3259 = vadd.f32 0.0, %v3258
  %v3260 = vpop.f32.mrf.mxu0
  %3261 = vmatprep.mubr.bf16.mxu0 0
  %3262 = vmatmul.mubr.bf16.gmra.mxu0 %v2933
  %v3263 = vpop.f32.mrf.mxu0
  %v3264 = vadd.f32 0.0, %v3263
  %v3265 = vpop.f32.mrf.mxu0
  %v3266 = vpop.f32.mrf.mxu0
  %v3267 = vadd.f32 0.0, %v3266
  %v3268 = vpop.f32.mrf.mxu0
  %3269 = vmatprep.mubr.bf16.mxu0 0
  %3270 = vmatmul.mubr.bf16.gmra.mxu0 %v2934
  %v3271 = vpop.f32.mrf.mxu0
  %v3272 = vadd.f32 0.0, %v3271
  %v3273 = vpop.f32.mrf.mxu0
  %v3274 = vpop.f32.mrf.mxu0
  %v3275 = vadd.f32 0.0, %v3274
  %v3276 = vpop.f32.mrf.mxu0
  %3277 = vmatprep.mubr.bf16.mxu0 0
  %3278 = vmatmul.mubr.bf16.gmra.mxu0 %v2935
  %v3279 = vpop.f32.mrf.mxu0
  %v3280 = vadd.f32 0.0, %v3279
  %v3281 = vpop.f32.mrf.mxu0
  %v3282 = vpop.f32.mrf.mxu0
  %v3283 = vadd.f32 0.0, %v3282
  %v3284 = vpop.f32.mrf.mxu0
  %3285 = vmatprep.mubr.bf16.mxu0 0
  %3286 = vmatmul.mubr.bf16.gmra.mxu0 %v2936
  %v3287 = vpop.f32.mrf.mxu0
  %v3288 = vadd.f32 0.0, %v3287
  %v3289 = vpop.f32.mrf.mxu0
  %v3290 = vpop.f32.mrf.mxu0
  %v3291 = vadd.f32 0.0, %v3290
  %v3292 = vpop.f32.mrf.mxu0
  %3293 = vmatprep.mubr.bf16.mxu0 0
  %3294 = vmatmul.mubr.bf16.gmra.mxu0 %v2937
  %v3295 = vpop.f32.mrf.mxu0
  %v3296 = vadd.f32 0.0, %v3295
  %v3297 = vpop.f32.mrf.mxu0
  %v3298 = vpop.f32.mrf.mxu0
  %v3299 = vadd.f32 0.0, %v3298
  %v3300 = vpop.f32.mrf.mxu0
  %3301 = vmatprep.mubr.bf16.mxu0 0
  %3302 = vmatmul.mubr.bf16.gmra.mxu0 %v2938
  %v3303 = vpop.f32.mrf.mxu0
  %v3304 = vadd.f32 0.0, %v3303
  %v3305 = vpop.f32.mrf.mxu0
  %v3306 = vpop.f32.mrf.mxu0
  %v3307 = vadd.f32 0.0, %v3306
  %v3308 = vpop.f32.mrf.mxu0
  %3309 = vmatprep.mubr.bf16.mxu0 0
  %3310 = vmatmul.mubr.bf16.gmra.mxu0 %v2939
  %v3311 = vpop.f32.mrf.mxu0
  %v3312 = vadd.f32 0.0, %v3311
  %v3313 = vpop.f32.mrf.mxu0
  %v3314 = vpop.f32.mrf.mxu0
  %v3315 = vadd.f32 0.0, %v3314
  %v3316 = vpop.f32.mrf.mxu0
  %3317 = vmatprep.mubr.bf16.mxu0 0
  %3318 = vmatmul.mubr.bf16.gmra.mxu0 %v2940
  %v3319 = vpop.f32.mrf.mxu0
  %v3320 = vadd.f32 0.0, %v3319
  %v3321 = vpop.f32.mrf.mxu0
  %v3322 = vpop.f32.mrf.mxu0
  %v3323 = vadd.f32 0.0, %v3322
  %v3324 = vpop.f32.mrf.mxu0
  %3325 = vmatprep.mubr.bf16.mxu0 0
  %3326 = vmatmul.mubr.bf16.gmra.mxu0 %v2941
  %v3327 = vpop.f32.mrf.mxu0
  %v3328 = vadd.f32 0.0, %v3327
  %v3329 = vpop.f32.mrf.mxu0
  %v3330 = vpop.f32.mrf.mxu0
  %v3331 = vadd.f32 0.0, %v3330
  %v3332 = vpop.f32.mrf.mxu0
  %3333 = vmatprep.mubr.bf16.mxu0 0
  %3334 = vmatmul.mubr.bf16.gmra.mxu0 %v2942
  %v3335 = vpop.f32.mrf.mxu0
  %v3336 = vadd.f32 0.0, %v3335
  %v3337 = vpop.f32.mrf.mxu0
  %v3338 = vpop.f32.mrf.mxu0
  %v3339 = vadd.f32 0.0, %v3338
  %v3340 = vpop.f32.mrf.mxu0
  %3341 = vmatprep.mubr.bf16.mxu0 0
  %3342 = vmatmul.mubr.bf16.gmra.mxu0 %v2943
  %v3343 = vpop.f32.mrf.mxu0
  %v3344 = vadd.f32 0.0, %v3343
  %v3345 = vpop.f32.mrf.mxu0
  %v3346 = vpop.f32.mrf.mxu0
  %v3347 = vadd.f32 0.0, %v3346
  %v3348 = vpop.f32.mrf.mxu0
  %3349 = vmatprep.mubr.bf16.mxu0 0
  %3350 = vmatmul.mubr.bf16.gmra.mxu0 %v2944
  %v3351 = vpop.f32.mrf.mxu0
  %v3352 = vadd.f32 0.0, %v3351
  %v3353 = vpop.f32.mrf.mxu0
  %v3354 = vpop.f32.mrf.mxu0
  %v3355 = vadd.f32 0.0, %v3354
  %v3356 = vpop.f32.mrf.mxu0
  %3357 = vmatprep.mubr.bf16.mxu0 0
  %3358 = vmatmul.mubr.bf16.gmra.mxu0 %v2945
  %v3359 = vpop.f32.mrf.mxu0
  %v3360 = vadd.f32 0.0, %v3359
  %v3361 = vpop.f32.mrf.mxu0
  %v3362 = vpop.f32.mrf.mxu0
  %v3363 = vadd.f32 0.0, %v3362
  %v3364 = vpop.f32.mrf.mxu0
  %3365 = vmatprep.mubr.bf16.mxu0 0
  %3366 = vmatmul.mubr.bf16.gmra.mxu0 %v2946
  %v3367 = vpop.f32.mrf.mxu0
  %v3368 = vadd.f32 0.0, %v3367
  %v3369 = vpop.f32.mrf.mxu0
  %v3370 = vpop.f32.mrf.mxu0
  %v3371 = vadd.f32 0.0, %v3370
  %v3372 = vpop.f32.mrf.mxu0
  %3373 = vmatprep.mubr.bf16.mxu0 0
  %3374 = vmatmul.mubr.bf16.gmra.mxu0 %v2947
  %v3375 = vpop.f32.mrf.mxu0
  %v3376 = vadd.f32 0.0, %v3375
  %v3377 = vpop.f32.mrf.mxu0
  %v3378 = vpop.f32.mrf.mxu0
  %v3379 = vadd.f32 0.0, %v3378
  %v3380 = vpop.f32.mrf.mxu0
  %3381 = vmatprep.mubr.bf16.mxu0 0
  %3382 = vmatmul.mubr.bf16.gmra.mxu0 %v2948
  %v3383 = vpop.f32.mrf.mxu0
  %v3384 = vadd.f32 0.0, %v3383
  %v3385 = vpop.f32.mrf.mxu0
  %v3386 = vpop.f32.mrf.mxu0
  %v3387 = vadd.f32 0.0, %v3386
  %v3388 = vpop.f32.mrf.mxu0
  %3389 = vmatprep.mubr.bf16.mxu0 0
  %3390 = vmatmul.mubr.bf16.gmra.mxu0 %v2949
  %v3391 = vpop.f32.mrf.mxu0
  %v3392 = vadd.f32 0.0, %v3391
  %v3393 = vpop.f32.mrf.mxu0
  %v3394 = vpop.f32.mrf.mxu0
  %v3395 = vadd.f32 0.0, %v3394
  %v3396 = vpop.f32.mrf.mxu0
  %3397 = vmatprep.mubr.bf16.mxu0 0
  %3398 = vmatmul.mubr.bf16.gmra.mxu0 %v2950
  %v3399 = vpop.f32.mrf.mxu0
  %v3400 = vadd.f32 0.0, %v3399
  %v3401 = vpop.f32.mrf.mxu0
  %v3402 = vpop.f32.mrf.mxu0
  %v3403 = vadd.f32 0.0, %v3402
  %v3404 = vpop.f32.mrf.mxu0
  %3405 = vmatprep.mubr.bf16.mxu0 0
  %3406 = vmatmul.mubr.bf16.gmra.mxu0 %v2951
  %v3407 = vpop.f32.mrf.mxu0
  %v3408 = vadd.f32 0.0, %v3407
  %v3409 = vpop.f32.mrf.mxu0
  %v3410 = vpop.f32.mrf.mxu0
  %v3411 = vadd.f32 0.0, %v3410
  %v3412 = vpop.f32.mrf.mxu0
  %3413 = vmatprep.mubr.bf16.mxu0 0
  %3414 = vmatmul.mubr.bf16.gmra.mxu0 %v2952
  %v3415 = vpop.f32.mrf.mxu0
  %v3416 = vadd.f32 0.0, %v3415
  %v3417 = vpop.f32.mrf.mxu0
  %v3418 = vpop.f32.mrf.mxu0
  %v3419 = vadd.f32 0.0, %v3418
  %v3420 = vpop.f32.mrf.mxu0
  %3421 = vmatprep.mubr.bf16.mxu0 0
  %3422 = vmatmul.mubr.bf16.gmra.mxu0 %v2953
  %v3423 = vpop.f32.mrf.mxu0
  %v3424 = vadd.f32 0.0, %v3423
  %v3425 = vpop.f32.mrf.mxu0
  %v3426 = vpop.f32.mrf.mxu0
  %v3427 = vadd.f32 0.0, %v3426
  %v3428 = vpop.f32.mrf.mxu0
  %3429 = vmatprep.mubr.bf16.mxu0 0
  %3430 = vmatmul.mubr.bf16.gmra.mxu0 %v2954
  %v3431 = vpop.f32.mrf.mxu0
  %v3432 = vadd.f32 0.0, %v3431
  %v3433 = vpop.f32.mrf.mxu0
  %v3434 = vpop.f32.mrf.mxu0
  %v3435 = vadd.f32 0.0, %v3434
  %v3436 = vpop.f32.mrf.mxu0
  %3437 = vmatprep.mubr.bf16.mxu0 0
  %3438 = vmatmul.mubr.bf16.gmra.mxu0 %v2955
  %v3439 = vpop.f32.mrf.mxu0
  %v3440 = vadd.f32 0.0, %v3439
  %v3441 = vpop.f32.mrf.mxu0
  %v3442 = vpop.f32.mrf.mxu0
  %v3443 = vadd.f32 0.0, %v3442
  %v3444 = vpop.f32.mrf.mxu0
  %3445 = vmatprep.mubr.bf16.mxu0 0
  %3446 = vmatmul.mubr.bf16.gmra.mxu0 %v2956
  %v3447 = vpop.f32.mrf.mxu0
  %v3448 = vadd.f32 0.0, %v3447
  %v3449 = vpop.f32.mrf.mxu0
  %v3450 = vpop.f32.mrf.mxu0
  %v3451 = vadd.f32 0.0, %v3450
  %v3452 = vpop.f32.mrf.mxu0
  %3453 = vmatprep.mubr.bf16.mxu0 0
  %3454 = vmatmul.mubr.bf16.gmra.mxu0 %v2957
  %v3455 = vpop.f32.mrf.mxu0
  %v3456 = vadd.f32 0.0, %v3455
  %v3457 = vpop.f32.mrf.mxu0
  %v3458 = vpop.f32.mrf.mxu0
  %v3459 = vadd.f32 0.0, %v3458
  %v3460 = vpop.f32.mrf.mxu0
  %3461 = vmatprep.mubr.bf16.mxu0 0
  %3462 = vmatmul.mubr.bf16.gmra.mxu0 %v2958
  %v3463 = vpop.f32.mrf.mxu0
  %v3464 = vadd.f32 0.0, %v3463
  %v3465 = vpop.f32.mrf.mxu0
  %v3466 = vpop.f32.mrf.mxu0
  %v3467 = vadd.f32 0.0, %v3466
  %v3468 = vpop.f32.mrf.mxu0
  %3469 = vmatprep.mubr.bf16.mxu0 0
  %3470 = vmatmul.mubr.bf16.gmra.mxu0 %v2959
  %v3471 = vpop.f32.mrf.mxu0
  %v3472 = vadd.f32 0.0, %v3471
  %v3473 = vpop.f32.mrf.mxu0
  %v3474 = vpop.f32.mrf.mxu0
  %v3475 = vadd.f32 0.0, %v3474
  %v3476 = vpop.f32.mrf.mxu0
  %3477 = vmatprep.mubr.bf16.mxu0 0
  %3478 = vmatmul.mubr.bf16.gmra.mxu0 %v2960
  %v3479 = vpop.f32.mrf.mxu0
  %v3480 = vadd.f32 0.0, %v3479
  %v3481 = vpop.f32.mrf.mxu0
  %v3482 = vpop.f32.mrf.mxu0
  %v3483 = vadd.f32 0.0, %v3482
  %v3484 = vpop.f32.mrf.mxu0
  %3485 = vmatprep.mubr.bf16.mxu0 0
  %3486 = vmatmul.mubr.bf16.gmra.mxu0 %v2961
  %v3487 = vpop.f32.mrf.mxu0
  %v3488 = vadd.f32 0.0, %v3487
  %v3489 = vpop.f32.mrf.mxu0
  %v3490 = vpop.f32.mrf.mxu0
  %v3491 = vadd.f32 0.0, %v3490
  %v3492 = vpop.f32.mrf.mxu0
  %3493 = vmatprep.mubr.bf16.mxu0 0
  %3494 = vmatmul.mubr.bf16.gmra.mxu0 %v2962
  %v3495 = vpop.f32.mrf.mxu0
  %v3496 = vadd.f32 0.0, %v3495
  %v3497 = vpop.f32.mrf.mxu0
  %v3498 = vpop.f32.mrf.mxu0
  %v3499 = vadd.f32 0.0, %v3498
  %v3500 = vpop.f32.mrf.mxu0
  %3501 = vmatprep.mubr.bf16.mxu0 0
  %3502 = vmatmul.mubr.bf16.gmra.mxu0 %v2963
  %v3503 = vpop.f32.mrf.mxu0
  %v3504 = vadd.f32 0.0, %v3503
  %v3505 = vpop.f32.mrf.mxu0
  %v3506 = vpop.f32.mrf.mxu0
  %v3507 = vadd.f32 0.0, %v3506
  %v3508 = vpop.f32.mrf.mxu0
  %3509 = vmatprep.mubr.bf16.mxu0 0
  %3510 = vmatmul.mubr.bf16.gmra.mxu0 %v2964
  %v3511 = vpop.f32.mrf.mxu0
  %v3512 = vadd.f32 0.0, %v3511
  %v3513 = vpop.f32.mrf.mxu0
  %v3514 = vpop.f32.mrf.mxu0
  %v3515 = vadd.f32 0.0, %v3514
  %v3516 = vpop.f32.mrf.mxu0
  %3517 = vdwg.mxu0
  %v3518 = vrcp.pop %v2646
  %v3519 = vrcp.pop %v2648
  %v3520 = vrcp.pop %v2650
  %v3521 = vrcp.pop %v2652
  %v3522 = vrcp.pop %v2654
  %v3523 = vrcp.pop %v2656
  %v3524 = vrcp.pop %v2658
  %v3525 = vrcp.pop %v2660
  %v3526 = vrcp.pop %v2662
  %v3527 = vrcp.pop %v2664
  %v3528 = vrcp.pop %v2666
  %v3529 = vrcp.pop %v2668
  %v3530 = vrcp.pop %v2670
  %v3531 = vrcp.pop %v2672
  %v3532 = vrcp.pop %v2674
  %v3533 = vrcp.pop %v2676
  %v3534 = vrcp.pop %v2678
  %v3535 = vrcp.pop %v2680
  %v3536 = vrcp.pop %v2682
  %v3537 = vrcp.pop %v2684
  %v3538 = vrcp.pop %v2686
  %v3539 = vrcp.pop %v2688
  %v3540 = vrcp.pop %v2690
  %v3541 = vrcp.pop %v2692
  %v3542 = vrcp.pop %v2694
  %v3543 = vrcp.pop %v2696
  %v3544 = vrcp.pop %v2698
  %v3545 = vrcp.pop %v2700
  %v3546 = vrcp.pop %v2702
  %v3547 = vrcp.pop %v2704
  %v3548 = vrcp.pop %v2706
  %v3549 = vrcp.pop %v2708
  %v3550 = vrcp.pop %v2710
  %v3551 = vrcp.pop %v2712
  %v3552 = vrcp.pop %v2714
  %v3553 = vrcp.pop %v2716
  %v3554 = vrcp.pop %v2718
  %v3555 = vrcp.pop %v2720
  %v3556 = vrcp.pop %v2722
  %v3557 = vrcp.pop %v2724
  %v3558 = vrcp.pop %v2726
  %v3559 = vrcp.pop %v2728
  %v3560 = vrcp.pop %v2730
  %v3561 = vrcp.pop %v2732
  %v3562 = vrcp.pop %v2734
  %v3563 = vrcp.pop %v2736
  %v3564 = vrcp.pop %v2738
  %v3565 = vrcp.pop %v2740
  %v3566 = vrcp.pop %v2742
  %v3567 = vrcp.pop %v2744
  %v3568 = vrcp.pop %v2746
  %v3569 = vrcp.pop %v2748
  %v3570 = vrcp.pop %v2750
  %v3571 = vrcp.pop %v2752
  %v3572 = vrcp.pop %v2754
  %v3573 = vrcp.pop %v2756
  %v3574 = vrcp.pop %v2758
  %v3575 = vrcp.pop %v2760
  %v3576 = vrcp.pop %v2762
  %v3577 = vrcp.pop %v2764
  %v3578 = vrcp.pop %v2766
  %v3579 = vrcp.pop %v2768
  %v3580 = vrcp.pop %v2770
  %v3581 = vrcp.pop %v2772
  %v3582 = vrcp.pop %v2774
  %v3583 = vrcp.pop %v2776
  %v3584 = vrcp.pop %v2778
  %v3585 = vrcp.pop %v2780
  %v3586 = vrcp.pop %v2782
  %v3587 = vrcp.pop %v2784
  %v3588 = vrcp.pop %v2786
  %v3589 = vrcp.pop %v2788
  %v3590 = vrcp.pop %v2790
  %v3591 = vrcp.pop %v2792
  %v3592 = vrcp.pop %v2794
  %v3593 = vrcp.pop %v2796
  %v3594 = vrcp.pop %v2798
  %v3595 = vrcp.pop %v2800
  %v3596 = vrcp.pop %v2802
  %v3597 = vrcp.pop %v2804
  %v3598 = vrcp.pop %v2806
  %v3599 = vrcp.pop %v2808
  %v3600 = vrcp.pop %v2810
  %v3601 = vrcp.pop %v2812
  %v3602 = vrcp.pop %v2814
  %v3603 = vrcp.pop %v2816
  %v3604 = vrcp.pop %v2818
  %v3605 = vrcp.pop %v2820
  %v3606 = vrcp.pop %v2822
  %v3607 = vrcp.pop %v2824
  %v3608 = vrcp.pop %v2826
  %v3609 = vrcp.pop %v2828
  %v3610 = vrcp.pop %v2830
  %v3611 = vrcp.pop %v2832
  %v3612 = vrcp.pop %v2834
  %v3613 = vrcp.pop %v2836
  %v3614 = vrcp.pop %v2838
  %v3615 = vrcp.pop %v2840
  %v3616 = vrcp.pop %v2842
  %v3617 = vrcp.pop %v2844
  %v3618 = vrcp.pop %v2846
  %v3619 = vrcp.pop %v2848
  %v3620 = vrcp.pop %v2850
  %v3621 = vrcp.pop %v2852
  %v3622 = vrcp.pop %v2854
  %v3623 = vrcp.pop %v2856
  %v3624 = vrcp.pop %v2858
  %v3625 = vrcp.pop %v2860
  %v3626 = vrcp.pop %v2862
  %v3627 = vrcp.pop %v2864
  %v3628 = vrcp.pop %v2866
  %v3629 = vrcp.pop %v2868
  %v3630 = vrcp.pop %v2870
  %v3631 = vrcp.pop %v2872
  %v3632 = vrcp.pop %v2874
  %v3633 = vrcp.pop %v2876
  %v3634 = vrcp.pop %v2878
  %v3635 = vrcp.pop %v2880
  %v3636 = vrcp.pop %v2882
  %v3637 = vrcp.pop %v2884
  %v3638 = vrcp.pop %v2886
  %v3639 = vrcp.pop %v2888
  %v3640 = vrcp.pop %v2890
  %v3641 = vrcp.pop %v2892
  %v3642 = vrcp.pop %v2894
  %v3643 = vrcp.pop %v2896
  %v3644 = vrcp.pop %v2898
  %v3645 = vrcp.pop %v2900
  %v3646 = vmul.f32 %v3008, %v3518
  %v3647 = vmul.f32 %v3011, %v3519
  %v3648 = vmul.f32 %v3016, %v3520
  %v3649 = vmul.f32 %v3019, %v3521
  %v3650 = vmul.f32 %v3024, %v3522
  %v3651 = vmul.f32 %v3027, %v3523
  %v3652 = vmul.f32 %v3032, %v3524
  %v3653 = vmul.f32 %v3035, %v3525
  %v3654 = vmul.f32 %v3040, %v3526
  %v3655 = vmul.f32 %v3043, %v3527
  %v3656 = vmul.f32 %v3048, %v3528
  %v3657 = vmul.f32 %v3051, %v3529
  %v3658 = vmul.f32 %v3056, %v3530
  %v3659 = vmul.f32 %v3059, %v3531
  %v3660 = vmul.f32 %v3064, %v3532
  %v3661 = vmul.f32 %v3067, %v3533
  %v3662 = vmul.f32 %v3072, %v3534
  %v3663 = vmul.f32 %v3075, %v3535
  %v3664 = vmul.f32 %v3080, %v3536
  %v3665 = vmul.f32 %v3083, %v3537
  %v3666 = vmul.f32 %v3088, %v3538
  %v3667 = vmul.f32 %v3091, %v3539
  %v3668 = vmul.f32 %v3096, %v3540
  %v3669 = vmul.f32 %v3099, %v3541
  %v3670 = vmul.f32 %v3104, %v3542
  %v3671 = vmul.f32 %v3107, %v3543
  %v3672 = vmul.f32 %v3112, %v3544
  %v3673 = vmul.f32 %v3115, %v3545
  %v3674 = vmul.f32 %v3120, %v3546
  %v3675 = vmul.f32 %v3123, %v3547
  %v3676 = vmul.f32 %v3128, %v3548
  %v3677 = vmul.f32 %v3131, %v3549
  %v3678 = vmul.f32 %v3136, %v3550
  %v3679 = vmul.f32 %v3139, %v3551
  %v3680 = vmul.f32 %v3144, %v3552
  %v3681 = vmul.f32 %v3147, %v3553
  %v3682 = vmul.f32 %v3152, %v3554
  %v3683 = vmul.f32 %v3155, %v3555
  %v3684 = vmul.f32 %v3160, %v3556
  %v3685 = vmul.f32 %v3163, %v3557
  %v3686 = vmul.f32 %v3168, %v3558
  %v3687 = vmul.f32 %v3171, %v3559
  %v3688 = vmul.f32 %v3176, %v3560
  %v3689 = vmul.f32 %v3179, %v3561
  %v3690 = vmul.f32 %v3184, %v3562
  %v3691 = vmul.f32 %v3187, %v3563
  %v3692 = vmul.f32 %v3192, %v3564
  %v3693 = vmul.f32 %v3195, %v3565
  %v3694 = vmul.f32 %v3200, %v3566
  %v3695 = vmul.f32 %v3203, %v3567
  %v3696 = vmul.f32 %v3208, %v3568
  %v3697 = vmul.f32 %v3211, %v3569
  %v3698 = vmul.f32 %v3216, %v3570
  %v3699 = vmul.f32 %v3219, %v3571
  %v3700 = vmul.f32 %v3224, %v3572
  %v3701 = vmul.f32 %v3227, %v3573
  %v3702 = vmul.f32 %v3232, %v3574
  %v3703 = vmul.f32 %v3235, %v3575
  %v3704 = vmul.f32 %v3240, %v3576
  %v3705 = vmul.f32 %v3243, %v3577
  %v3706 = vmul.f32 %v3248, %v3578
  %v3707 = vmul.f32 %v3251, %v3579
  %v3708 = vmul.f32 %v3256, %v3580
  %v3709 = vmul.f32 %v3259, %v3581
  %v3710 = vmul.f32 %v3264, %v3582
  %v3711 = vmul.f32 %v3267, %v3583
  %v3712 = vmul.f32 %v3272, %v3584
  %v3713 = vmul.f32 %v3275, %v3585
  %v3714 = vmul.f32 %v3280, %v3586
  %v3715 = vmul.f32 %v3283, %v3587
  %v3716 = vmul.f32 %v3288, %v3588
  %v3717 = vmul.f32 %v3291, %v3589
  %v3718 = vmul.f32 %v3296, %v3590
  %v3719 = vmul.f32 %v3299, %v3591
  %v3720 = vmul.f32 %v3304, %v3592
  %v3721 = vmul.f32 %v3307, %v3593
  %v3722 = vmul.f32 %v3312, %v3594
  %v3723 = vmul.f32 %v3315, %v3595
  %v3724 = vmul.f32 %v3320, %v3596
  %v3725 = vmul.f32 %v3323, %v3597
  %v3726 = vmul.f32 %v3328, %v3598
  %v3727 = vmul.f32 %v3331, %v3599
  %v3728 = vmul.f32 %v3336, %v3600
  %v3729 = vmul.f32 %v3339, %v3601
  %v3730 = vmul.f32 %v3344, %v3602
  %v3731 = vmul.f32 %v3347, %v3603
  %v3732 = vmul.f32 %v3352, %v3604
  %v3733 = vmul.f32 %v3355, %v3605
  %v3734 = vmul.f32 %v3360, %v3606
  %v3735 = vmul.f32 %v3363, %v3607
  %v3736 = vmul.f32 %v3368, %v3608
  %v3737 = vmul.f32 %v3371, %v3609
  %v3738 = vmul.f32 %v3376, %v3610
  %v3739 = vmul.f32 %v3379, %v3611
  %v3740 = vmul.f32 %v3384, %v3612
  %v3741 = vmul.f32 %v3387, %v3613
  %v3742 = vmul.f32 %v3392, %v3614
  %v3743 = vmul.f32 %v3395, %v3615
  %v3744 = vmul.f32 %v3400, %v3616
  %v3745 = vmul.f32 %v3403, %v3617
  %v3746 = vmul.f32 %v3408, %v3618
  %v3747 = vmul.f32 %v3411, %v3619
  %v3748 = vmul.f32 %v3416, %v3620
  %v3749 = vmul.f32 %v3419, %v3621
  %v3750 = vmul.f32 %v3424, %v3622
  %v3751 = vmul.f32 %v3427, %v3623
  %v3752 = vmul.f32 %v3432, %v3624
  %v3753 = vmul.f32 %v3435, %v3625
  %v3754 = vmul.f32 %v3440, %v3626
  %v3755 = vmul.f32 %v3443, %v3627
  %v3756 = vmul.f32 %v3448, %v3628
  %v3757 = vmul.f32 %v3451, %v3629
  %v3758 = vmul.f32 %v3456, %v3630
  %v3759 = vmul.f32 %v3459, %v3631
  %v3760 = vmul.f32 %v3464, %v3632
  %v3761 = vmul.f32 %v3467, %v3633
  %v3762 = vmul.f32 %v3472, %v3634
  %v3763 = vmul.f32 %v3475, %v3635
  %v3764 = vmul.f32 %v3480, %v3636
  %v3765 = vmul.f32 %v3483, %v3637
  %v3766 = vmul.f32 %v3488, %v3638
  %v3767 = vmul.f32 %v3491, %v3639
  %v3768 = vmul.f32 %v3496, %v3640
  %v3769 = vmul.f32 %v3499, %v3641
  %v3770 = vmul.f32 %v3504, %v3642
  %v3771 = vmul.f32 %v3507, %v3643
  %v3772 = vmul.f32 %v3512, %v3644
  %v3773 = vmul.f32 %v3515, %v3645
  %v3774 = vld [vmem:[%s6] sm:$0x1]
  %v3775 = vld [vmem:[%s6 + $0x1] sm:$0x1]
  %v3776 = vld [vmem:[%s6 + $0x2] sm:$0x1]
  %v3777 = vld [vmem:[%s6 + $0x3] sm:$0x1]
  %v3778 = vld [vmem:[%s6 + $0x4] sm:$0x1]
  %v3779 = vld [vmem:[%s6 + $0x5] sm:$0x1]
  %v3780 = vld [vmem:[%s6 + $0x6] sm:$0x1]
  %v3781 = vld [vmem:[%s6 + $0x7] sm:$0x1]
  %v3790 = vlaneseq
  %v3791 = vshrl.u32 %v3790, 7
  %v3792 = vsub.s32 0, %v3791
  %v3793 = vrot.slane %v3774, %v3792
  %v3794 = vlaneseq
  %v3795 = vshrl.u32 %v3794, 7
  %v3796 = vsub.s32 0, %v3795
  %v3797 = vrot.slane %v3775, %v3796
  %v3798 = vlaneseq
  %v3799 = vshrl.u32 %v3798, 7
  %v3800 = vsub.s32 0, %v3799
  %v3801 = vrot.slane %v3776, %v3800
  %v3802 = vlaneseq
  %v3803 = vshrl.u32 %v3802, 7
  %v3804 = vsub.s32 0, %v3803
  %v3805 = vrot.slane %v3777, %v3804
  %v3806 = vlaneseq
  %v3807 = vshrl.u32 %v3806, 7
  %v3808 = vsub.s32 0, %v3807
  %v3809 = vrot.slane %v3778, %v3808
  %v3810 = vlaneseq
  %v3811 = vshrl.u32 %v3810, 7
  %v3812 = vsub.s32 0, %v3811
  %v3813 = vrot.slane %v3779, %v3812
  %v3814 = vlaneseq
  %v3815 = vshrl.u32 %v3814, 7
  %v3816 = vsub.s32 0, %v3815
  %v3817 = vrot.slane %v3780, %v3816
  %v3818 = vlaneseq
  %v3819 = vshrl.u32 %v3818, 7
  %v3820 = vsub.s32 0, %v3819
  %v3821 = vrot.slane %v3781, %v3820
  %v3830 = vmul.f32 %v3646, %v3793
  %v3831 = vmul.f32 %v3647, %v3793
  %v3832 = vmul.f32 %v3648, %v3793
  %v3833 = vmul.f32 %v3649, %v3793
  %v3834 = vmul.f32 %v3650, %v3793
  %v3835 = vmul.f32 %v3651, %v3793
  %v3836 = vmul.f32 %v3652, %v3793
  %v3837 = vmul.f32 %v3653, %v3793
  %v3838 = vmul.f32 %v3654, %v3793
  %v3839 = vmul.f32 %v3655, %v3793
  %v3840 = vmul.f32 %v3656, %v3793
  %v3841 = vmul.f32 %v3657, %v3793
  %v3842 = vmul.f32 %v3658, %v3793
  %v3843 = vmul.f32 %v3659, %v3793
  %v3844 = vmul.f32 %v3660, %v3793
  %v3845 = vmul.f32 %v3661, %v3793
  %v3846 = vmul.f32 %v3662, %v3797
  %v3847 = vmul.f32 %v3663, %v3797
  %v3848 = vmul.f32 %v3664, %v3797
  %v3849 = vmul.f32 %v3665, %v3797
  %v3850 = vmul.f32 %v3666, %v3797
  %v3851 = vmul.f32 %v3667, %v3797
  %v3852 = vmul.f32 %v3668, %v3797
  %v3853 = vmul.f32 %v3669, %v3797
  %v3854 = vmul.f32 %v3670, %v3797
  %v3855 = vmul.f32 %v3671, %v3797
  %v3856 = vmul.f32 %v3672, %v3797
  %v3857 = vmul.f32 %v3673, %v3797
  %v3858 = vmul.f32 %v3674, %v3797
  %v3859 = vmul.f32 %v3675, %v3797
  %v3860 = vmul.f32 %v3676, %v3797
  %v3861 = vmul.f32 %v3677, %v3797
  %v3862 = vmul.f32 %v3678, %v3801
  %v3863 = vmul.f32 %v3679, %v3801
  %v3864 = vmul.f32 %v3680, %v3801
  %v3865 = vmul.f32 %v3681, %v3801
  %v3866 = vmul.f32 %v3682, %v3801
  %v3867 = vmul.f32 %v3683, %v3801
  %v3868 = vmul.f32 %v3684, %v3801
  %v3869 = vmul.f32 %v3685, %v3801
  %v3870 = vmul.f32 %v3686, %v3801
  %v3871 = vmul.f32 %v3687, %v3801
  %v3872 = vmul.f32 %v3688, %v3801
  %v3873 = vmul.f32 %v3689, %v3801
  %v3874 = vmul.f32 %v3690, %v3801
  %v3875 = vmul.f32 %v3691, %v3801
  %v3876 = vmul.f32 %v3692, %v3801
  %v3877 = vmul.f32 %v3693, %v3801
  %v3878 = vmul.f32 %v3694, %v3805
  %v3879 = vmul.f32 %v3695, %v3805
  %v3880 = vmul.f32 %v3696, %v3805
  %v3881 = vmul.f32 %v3697, %v3805
  %v3882 = vmul.f32 %v3698, %v3805
  %v3883 = vmul.f32 %v3699, %v3805
  %v3884 = vmul.f32 %v3700, %v3805
  %v3885 = vmul.f32 %v3701, %v3805
  %v3886 = vmul.f32 %v3702, %v3805
  %v3887 = vmul.f32 %v3703, %v3805
  %v3888 = vmul.f32 %v3704, %v3805
  %v3889 = vmul.f32 %v3705, %v3805
  %v3890 = vmul.f32 %v3706, %v3805
  %v3891 = vmul.f32 %v3707, %v3805
  %v3892 = vmul.f32 %v3708, %v3805
  %v3893 = vmul.f32 %v3709, %v3805
  %v3894 = vmul.f32 %v3710, %v3809
  %v3895 = vmul.f32 %v3711, %v3809
  %v3896 = vmul.f32 %v3712, %v3809
  %v3897 = vmul.f32 %v3713, %v3809
  %v3898 = vmul.f32 %v3714, %v3809
  %v3899 = vmul.f32 %v3715, %v3809
  %v3900 = vmul.f32 %v3716, %v3809
  %v3901 = vmul.f32 %v3717, %v3809
  %v3902 = vmul.f32 %v3718, %v3809
  %v3903 = vmul.f32 %v3719, %v3809
  %v3904 = vmul.f32 %v3720, %v3809
  %v3905 = vmul.f32 %v3721, %v3809
  %v3906 = vmul.f32 %v3722, %v3809
  %v3907 = vmul.f32 %v3723, %v3809
  %v3908 = vmul.f32 %v3724, %v3809
  %v3909 = vmul.f32 %v3725, %v3809
  %v3910 = vmul.f32 %v3726, %v3813
  %v3911 = vmul.f32 %v3727, %v3813
  %v3912 = vmul.f32 %v3728, %v3813
  %v3913 = vmul.f32 %v3729, %v3813
  %v3914 = vmul.f32 %v3730, %v3813
  %v3915 = vmul.f32 %v3731, %v3813
  %v3916 = vmul.f32 %v3732, %v3813
  %v3917 = vmul.f32 %v3733, %v3813
  %v3918 = vmul.f32 %v3734, %v3813
  %v3919 = vmul.f32 %v3735, %v3813
  %v3920 = vmul.f32 %v3736, %v3813
  %v3921 = vmul.f32 %v3737, %v3813
  %v3922 = vmul.f32 %v3738, %v3813
  %v3923 = vmul.f32 %v3739, %v3813
  %v3924 = vmul.f32 %v3740, %v3813
  %v3925 = vmul.f32 %v3741, %v3813
  %v3926 = vmul.f32 %v3742, %v3817
  %v3927 = vmul.f32 %v3743, %v3817
  %v3928 = vmul.f32 %v3744, %v3817
  %v3929 = vmul.f32 %v3745, %v3817
  %v3930 = vmul.f32 %v3746, %v3817
  %v3931 = vmul.f32 %v3747, %v3817
  %v3932 = vmul.f32 %v3748, %v3817
  %v3933 = vmul.f32 %v3749, %v3817
  %v3934 = vmul.f32 %v3750, %v3817
  %v3935 = vmul.f32 %v3751, %v3817
  %v3936 = vmul.f32 %v3752, %v3817
  %v3937 = vmul.f32 %v3753, %v3817
  %v3938 = vmul.f32 %v3754, %v3817
  %v3939 = vmul.f32 %v3755, %v3817
  %v3940 = vmul.f32 %v3756, %v3817
  %v3941 = vmul.f32 %v3757, %v3817
  %v3942 = vmul.f32 %v3758, %v3821
  %v3943 = vmul.f32 %v3759, %v3821
  %v3944 = vmul.f32 %v3760, %v3821
  %v3945 = vmul.f32 %v3761, %v3821
  %v3946 = vmul.f32 %v3762, %v3821
  %v3947 = vmul.f32 %v3763, %v3821
  %v3948 = vmul.f32 %v3764, %v3821
  %v3949 = vmul.f32 %v3765, %v3821
  %v3950 = vmul.f32 %v3766, %v3821
  %v3951 = vmul.f32 %v3767, %v3821
  %v3952 = vmul.f32 %v3768, %v3821
  %v3953 = vmul.f32 %v3769, %v3821
  %v3954 = vmul.f32 %v3770, %v3821
  %v3955 = vmul.f32 %v3771, %v3821
  %v3956 = vmul.f32 %v3772, %v3821
  %v3957 = vmul.f32 %v3773, %v3821
  %v3958 = vadd.f32 %v3830, %v3846
  %v3959 = vadd.f32 %v3958, %v3862
  %v3960 = vadd.f32 %v3959, %v3878
  %v3961 = vadd.f32 %v3960, %v3894
  %v3962 = vadd.f32 %v3961, %v3910
  %v3963 = vadd.f32 %v3962, %v3926
  %v3964 = vadd.f32 %v3963, %v3942
  %v3965 = vadd.f32 %v3831, %v3847
  %v3966 = vadd.f32 %v3965, %v3863
  %v3967 = vadd.f32 %v3966, %v3879
  %v3968 = vadd.f32 %v3967, %v3895
  %v3969 = vadd.f32 %v3968, %v3911
  %v3970 = vadd.f32 %v3969, %v3927
  %v3971 = vadd.f32 %v3970, %v3943
  %v3972 = vadd.f32 %v3832, %v3848
  %v3973 = vadd.f32 %v3972, %v3864
  %v3974 = vadd.f32 %v3973, %v3880
  %v3975 = vadd.f32 %v3974, %v3896
  %v3976 = vadd.f32 %v3975, %v3912
  %v3977 = vadd.f32 %v3976, %v3928
  %v3978 = vadd.f32 %v3977, %v3944
  %v3979 = vadd.f32 %v3833, %v3849
  %v3980 = vadd.f32 %v3979, %v3865
  %v3981 = vadd.f32 %v3980, %v3881
  %v3982 = vadd.f32 %v3981, %v3897
  %v3983 = vadd.f32 %v3982, %v3913
  %v3984 = vadd.f32 %v3983, %v3929
  %v3985 = vadd.f32 %v3984, %v3945
  %v3986 = vadd.f32 %v3834, %v3850
  %v3987 = vadd.f32 %v3986, %v3866
  %v3988 = vadd.f32 %v3987, %v3882
  %v3989 = vadd.f32 %v3988, %v3898
  %v3990 = vadd.f32 %v3989, %v3914
  %v3991 = vadd.f32 %v3990, %v3930
  %v3992 = vadd.f32 %v3991, %v3946
  %v3993 = vadd.f32 %v3835, %v3851
  %v3994 = vadd.f32 %v3993, %v3867
  %v3995 = vadd.f32 %v3994, %v3883
  %v3996 = vadd.f32 %v3995, %v3899
  %v3997 = vadd.f32 %v3996, %v3915
  %v3998 = vadd.f32 %v3997, %v3931
  %v3999 = vadd.f32 %v3998, %v3947
  %v4000 = vadd.f32 %v3836, %v3852
  %v4001 = vadd.f32 %v4000, %v3868
  %v4002 = vadd.f32 %v4001, %v3884
  %v4003 = vadd.f32 %v4002, %v3900
  %v4004 = vadd.f32 %v4003, %v3916
  %v4005 = vadd.f32 %v4004, %v3932
  %v4006 = vadd.f32 %v4005, %v3948
  %v4007 = vadd.f32 %v3837, %v3853
  %v4008 = vadd.f32 %v4007, %v3869
  %v4009 = vadd.f32 %v4008, %v3885
  %v4010 = vadd.f32 %v4009, %v3901
  %v4011 = vadd.f32 %v4010, %v3917
  %v4012 = vadd.f32 %v4011, %v3933
  %v4013 = vadd.f32 %v4012, %v3949
  %v4014 = vadd.f32 %v3838, %v3854
  %v4015 = vadd.f32 %v4014, %v3870
  %v4016 = vadd.f32 %v4015, %v3886
  %v4017 = vadd.f32 %v4016, %v3902
  %v4018 = vadd.f32 %v4017, %v3918
  %v4019 = vadd.f32 %v4018, %v3934
  %v4020 = vadd.f32 %v4019, %v3950
  %v4021 = vadd.f32 %v3839, %v3855
  %v4022 = vadd.f32 %v4021, %v3871
  %v4023 = vadd.f32 %v4022, %v3887
  %v4024 = vadd.f32 %v4023, %v3903
  %v4025 = vadd.f32 %v4024, %v3919
  %v4026 = vadd.f32 %v4025, %v3935
  %v4027 = vadd.f32 %v4026, %v3951
  %v4028 = vadd.f32 %v3840, %v3856
  %v4029 = vadd.f32 %v4028, %v3872
  %v4030 = vadd.f32 %v4029, %v3888
  %v4031 = vadd.f32 %v4030, %v3904
  %v4032 = vadd.f32 %v4031, %v3920
  %v4033 = vadd.f32 %v4032, %v3936
  %v4034 = vadd.f32 %v4033, %v3952
  %v4035 = vadd.f32 %v3841, %v3857
  %v4036 = vadd.f32 %v4035, %v3873
  %v4037 = vadd.f32 %v4036, %v3889
  %v4038 = vadd.f32 %v4037, %v3905
  %v4039 = vadd.f32 %v4038, %v3921
  %v4040 = vadd.f32 %v4039, %v3937
  %v4041 = vadd.f32 %v4040, %v3953
  %v4042 = vadd.f32 %v3842, %v3858
  %v4043 = vadd.f32 %v4042, %v3874
  %v4044 = vadd.f32 %v4043, %v3890
  %v4045 = vadd.f32 %v4044, %v3906
  %v4046 = vadd.f32 %v4045, %v3922
  %v4047 = vadd.f32 %v4046, %v3938
  %v4048 = vadd.f32 %v4047, %v3954
  %v4049 = vadd.f32 %v3843, %v3859
  %v4050 = vadd.f32 %v4049, %v3875
  %v4051 = vadd.f32 %v4050, %v3891
  %v4052 = vadd.f32 %v4051, %v3907
  %v4053 = vadd.f32 %v4052, %v3923
  %v4054 = vadd.f32 %v4053, %v3939
  %v4055 = vadd.f32 %v4054, %v3955
  %v4056 = vadd.f32 %v3844, %v3860
  %v4057 = vadd.f32 %v4056, %v3876
  %v4058 = vadd.f32 %v4057, %v3892
  %v4059 = vadd.f32 %v4058, %v3908
  %v4060 = vadd.f32 %v4059, %v3924
  %v4061 = vadd.f32 %v4060, %v3940
  %v4062 = vadd.f32 %v4061, %v3956
  %v4063 = vadd.f32 %v3845, %v3861
  %v4064 = vadd.f32 %v4063, %v3877
  %v4065 = vadd.f32 %v4064, %v3893
  %v4066 = vadd.f32 %v4065, %v3909
  %v4067 = vadd.f32 %v4066, %v3925
  %v4068 = vadd.f32 %v4067, %v3941
  %v4069 = vadd.f32 %v4068, %v3957
  %vm4070 = vcmp.gt.f32.partialorder %v3964, 0.0
  %vm4071 = vcmp.gt.f32.partialorder %v3971, 0.0
  %vm4072 = vcmp.gt.f32.partialorder %v3978, 0.0
  %vm4073 = vcmp.gt.f32.partialorder %v3985, 0.0
  %vm4074 = vcmp.gt.f32.partialorder %v3992, 0.0
  %vm4075 = vcmp.gt.f32.partialorder %v3999, 0.0
  %vm4076 = vcmp.gt.f32.partialorder %v4006, 0.0
  %vm4077 = vcmp.gt.f32.partialorder %v4013, 0.0
  %vm4078 = vcmp.gt.f32.partialorder %v4020, 0.0
  %vm4079 = vcmp.gt.f32.partialorder %v4027, 0.0
  %vm4080 = vcmp.gt.f32.partialorder %v4034, 0.0
  %vm4081 = vcmp.gt.f32.partialorder %v4041, 0.0
  %vm4082 = vcmp.gt.f32.partialorder %v4048, 0.0
  %vm4083 = vcmp.gt.f32.partialorder %v4055, 0.0
  %vm4084 = vcmp.gt.f32.partialorder %v4062, 0.0
  %vm4085 = vcmp.gt.f32.partialorder %v4069, 0.0
  %v4086 = vmin.f32 %v3964, 0.0
  %v4087 = vmin.f32 %v3971, 0.0
  %v4088 = vmin.f32 %v3978, 0.0
  %v4089 = vmin.f32 %v3985, 0.0
  %v4090 = vmin.f32 %v3992, 0.0
  %v4091 = vmin.f32 %v3999, 0.0
  %v4092 = vmin.f32 %v4006, 0.0
  %v4093 = vmin.f32 %v4013, 0.0
  %v4094 = vmin.f32 %v4020, 0.0
  %v4095 = vmin.f32 %v4027, 0.0
  %v4096 = vmin.f32 %v4034, 0.0
  %v4097 = vmin.f32 %v4041, 0.0
  %v4098 = vmin.f32 %v4048, 0.0
  %v4099 = vmin.f32 %v4055, 0.0
  %v4100 = vmin.f32 %v4062, 0.0
  %v4101 = vmin.f32 %v4069, 0.0
  %v4102 = vmul.f32 %v4086, 1.442695
  %v4103 = vpow.pop %v4102
  %v4104 = vmul.f32 %v4087, 1.442695
  %v4105 = vpow.pop %v4104
  %v4106 = vmul.f32 %v4088, 1.442695
  %v4107 = vpow.pop %v4106
  %v4108 = vmul.f32 %v4089, 1.442695
  %v4109 = vpow.pop %v4108
  %v4110 = vmul.f32 %v4090, 1.442695
  %v4111 = vpow.pop %v4110
  %v4112 = vmul.f32 %v4091, 1.442695
  %v4113 = vpow.pop %v4112
  %v4114 = vmul.f32 %v4092, 1.442695
  %v4115 = vpow.pop %v4114
  %v4116 = vmul.f32 %v4093, 1.442695
  %v4117 = vpow.pop %v4116
  %v4118 = vmul.f32 %v4094, 1.442695
  %v4119 = vpow.pop %v4118
  %v4120 = vmul.f32 %v4095, 1.442695
  %v4121 = vpow.pop %v4120
  %v4122 = vmul.f32 %v4096, 1.442695
  %v4123 = vpow.pop %v4122
  %v4124 = vmul.f32 %v4097, 1.442695
  %v4125 = vpow.pop %v4124
  %v4126 = vmul.f32 %v4098, 1.442695
  %v4127 = vpow.pop %v4126
  %v4128 = vmul.f32 %v4099, 1.442695
  %v4129 = vpow.pop %v4128
  %v4130 = vmul.f32 %v4100, 1.442695
  %v4131 = vpow.pop %v4130
  %v4132 = vmul.f32 %v4101, 1.442695
  %v4133 = vpow.pop %v4132
  %v4134 = vsub.f32 %v4103, 1.0
  %v4135 = vsub.f32 %v4105, 1.0
  %v4136 = vsub.f32 %v4107, 1.0
  %v4137 = vsub.f32 %v4109, 1.0
  %v4138 = vsub.f32 %v4111, 1.0
  %v4139 = vsub.f32 %v4113, 1.0
  %v4140 = vsub.f32 %v4115, 1.0
  %v4141 = vsub.f32 %v4117, 1.0
  %v4142 = vsub.f32 %v4119, 1.0
  %v4143 = vsub.f32 %v4121, 1.0
  %v4144 = vsub.f32 %v4123, 1.0
  %v4145 = vsub.f32 %v4125, 1.0
  %v4146 = vsub.f32 %v4127, 1.0
  %v4147 = vsub.f32 %v4129, 1.0
  %v4148 = vsub.f32 %v4131, 1.0
  %v4149 = vsub.f32 %v4133, 1.0
  %v4150 = vsel %vm4070, %v3964, %v4134
  %v4151 = vsel %vm4071, %v3971, %v4135
  %v4152 = vsel %vm4072, %v3978, %v4136
  %v4153 = vsel %vm4073, %v3985, %v4137
  %v4154 = vsel %vm4074, %v3992, %v4138
  %v4155 = vsel %vm4075, %v3999, %v4139
  %v4156 = vsel %vm4076, %v4006, %v4140
  %v4157 = vsel %vm4077, %v4013, %v4141
  %v4158 = vsel %vm4078, %v4020, %v4142
  %v4159 = vsel %vm4079, %v4027, %v4143
  %v4160 = vsel %vm4080, %v4034, %v4144
  %v4161 = vsel %vm4081, %v4041, %v4145
  %v4162 = vsel %vm4082, %v4048, %v4146
  %v4163 = vsel %vm4083, %v4055, %v4147
  %v4164 = vsel %vm4084, %v4062, %v4148
  %v4165 = vsel %vm4085, %v4069, %v4149
  %4166 = vst [vmem:[%s7] sm:$0xff] %v4150
  %4167 = vst [vmem:[%s7 + $0x8] sm:$0xff] %v4151
  %4168 = vst [vmem:[%s7 + $0x10] sm:$0xff] %v4152
  %4169 = vst [vmem:[%s7 + $0x18] sm:$0xff] %v4153
  %4170 = vst [vmem:[%s7 + $0x20] sm:$0xff] %v4154
  %4171 = vst [vmem:[%s7 + $0x28] sm:$0xff] %v4155
  %4172 = vst [vmem:[%s7 + $0x30] sm:$0xff] %v4156
  %4173 = vst [vmem:[%s7 + $0x38] sm:$0xff] %v4157
  %4174 = vst [vmem:[%s7 + $0x40] sm:$0xff] %v4158
  %4175 = vst [vmem:[%s7 + $0x48] sm:$0xff] %v4159
  %4176 = vst [vmem:[%s7 + $0x50] sm:$0xff] %v4160
  %4177 = vst [vmem:[%s7 + $0x58] sm:$0xff] %v4161
  %4178 = vst [vmem:[%s7 + $0x60] sm:$0xff] %v4162
  %4179 = vst [vmem:[%s7 + $0x68] sm:$0xff] %v4163
  %4180 = vst [vmem:[%s7 + $0x70] sm:$0xff] %v4164
  %4181 = vst [vmem:[%s7 + $0x78] sm:$0xff] %v4165
  // Predicated region
  $region30: #{gatnet_forward.2} parent=0 // pred_check
    _
  $region31: #{gatnet_forward.2} parent=0 // pred_check_branch
    %4183 = sbr.rel (0) target = $region33
  $region32: #{gatnet_forward.2} parent=0 // pred_region
    _
  $region33: #{gatnet_forward.2} parent=0 // pred_fallthru
    _
  // Predicated region
  $region34: #{gatnet_forward.2} parent=0 // pred_check
    _
  $region35: #{gatnet_forward.2} parent=0 // pred_check_branch
    %4185 = sbr.rel (0) target = $region37
  $region36: #{gatnet_forward.2} parent=0 // pred_region
    _
  $region37: #{gatnet_forward.2} parent=0 // pred_fallthru
    _

</llo_original>
